<compile_context>
chip_gen: v7x
topology: tpu7x:2x2x1
jax: 0.10.0
libtpu: 0.0.40
codegen_flags: <defaults>
</compile_context>

<pallas_src>
import functools

import jax
import jax.numpy as jnp
import numpy as np
from jax.experimental import pallas as pl
from jax.experimental.pallas import tpu as pltpu

IN_C = 3 * 23      # 69
HID = 256
OUT_C = 3
OUT_PAD = 128      # fc4 weight padded to 128 lanes for a clean MXU operand


def _layer(h, w, b):
    """bf16-operand matmul with f32 accumulation + bias + leaky_relu(0.2).

    Epilogue precision (bf16 vs f32) is controlled by the bias dtype."""
    acc = jnp.dot(h.astype(jnp.bfloat16), w, preferred_element_type=jnp.float32)
    act = acc.astype(b.dtype) + b
    return jnp.maximum(act, 0.2 * act)


def insp_kernel(x_ref,
                w1_ref, b1_ref,
                wmid_ref, bmid_ref,      # stacked fc2, fc3, fc5
                w4_ref, b4_ref,          # w4 padded to OUT_PAD lanes; b4 (1, OUT_C) f32
                o_ref,
                *, ts):
    tm = o_ref.shape[0]
    nst = tm // ts
    # Independent per-sub-tile chains -> MXU/VPU overlap across sub-tiles.
    for st in range(nst):
        rows = pl.ds(st * ts, ts)
        h = _layer(x_ref[rows, :], w1_ref[...], b1_ref[...])
        for i in range(3):               # fc2, fc3, fc5 (static unroll)
            h = _layer(h, wmid_ref[i], bmid_ref[i])
        y = jnp.dot(h.astype(jnp.bfloat16), w4_ref[...],
                    preferred_element_type=jnp.float32)
        y = y[:, :OUT_C] + b4_ref[...]   # final bias add in f32
        o_ref[rows, :] = y.astype(o_ref.dtype)


def insp_forward(x, params, *, tm=512, ts=256, bf16_epilogue=True):
    """x: [N, IN_C] float32.  params: dict name -> (w [in,out] f32, b [1,out] f32).

    tm: rows per grid step (keep >= 512; keep >= 2 grid steps on v7x).
    ts: rows per in-kernel sub-tile chain.
    bf16_epilogue: bias+activation in bf16 (set False on v5e: no bf16 VPU)."""
    N, in_c = x.shape
    assert in_c == IN_C
    tm = min(tm, N)
    ts = min(ts, tm)
    # TODO(synk): general N needs a cdiv grid with row masking or host-side row padding.
    assert N % tm == 0 and tm % ts == 0

    ep_dt = jnp.bfloat16 if bf16_epilogue else jnp.float32

    # One-time parameter prep (outside the kernel): bf16 weights, padded fc4.
    w1 = params["fc1"][0].astype(jnp.bfloat16)
    b1 = params["fc1"][1].astype(ep_dt)
    wmid = jnp.stack([params["fc2"][0], params["fc3"][0], params["fc5"][0]]
                     ).astype(jnp.bfloat16)                              # [3, HID, HID]
    bmid = jnp.stack([params["fc2"][1], params["fc3"][1], params["fc5"][1]]
                     ).astype(ep_dt)                                     # [3, 1, HID]
    w4, b4 = params["fc4"]
    w4p = jnp.zeros((HID, OUT_PAD), jnp.bfloat16).at[:, :OUT_C].set(
        w4.astype(jnp.bfloat16))
    b4 = b4.astype(jnp.float32)                                          # [1, OUT_C]

    grid = (N // tm,)

    def full(a):
        return pl.BlockSpec(a.shape, lambda i, nd=a.ndim: (0,) * nd)

    out = pl.pallas_call(
        functools.partial(insp_kernel, ts=ts),
        out_shape=jax.ShapeDtypeStruct((N, OUT_C), x.dtype),
        grid_spec=pltpu.PrefetchScalarGridSpec(
            num_scalar_prefetch=0,
            grid=grid,
            in_specs=[
                pl.BlockSpec((tm, IN_C), lambda i: (i, 0)),   # x tile
                full(w1), full(b1),
                full(wmid), full(bmid),
                full(w4p), full(b4),
            ],
            out_specs=pl.BlockSpec((tm, OUT_C), lambda i: (i, 0)),
        ),
        compiler_params=pltpu.CompilerParams(
            dimension_semantics=("parallel",)),
    )(x, w1, b1, wmid, bmid, w4p, b4)

    return out


def init_params(key):
    """Deterministic init; weights stored as [in, out], biases as [1, out]."""
    def linear(k, fan_in, fan_out):
        kw, kb = jax.random.split(k)
        bound = 1.0 / np.sqrt(fan_in)
        w = jax.random.uniform(kw, (fan_in, fan_out), jnp.float32, -bound, bound)
        b = jax.random.uniform(kb, (1, fan_out), jnp.float32, -bound, bound)
        return w, b

    ks = jax.random.split(key, 5)
    return {
        "fc1": linear(ks[0], IN_C, HID),
        "fc2": linear(ks[1], HID, HID),
        "fc3": linear(ks[2], HID, HID),
        "fc5": linear(ks[3], HID, HID),
        "fc4": linear(ks[4], HID, OUT_C),
    }


def insp_reference_f32(x, params):
    h = x
    for name in ("fc1", "fc2", "fc3", "fc5"):
        w, b = params[name]
        h = h @ w + b
        h = jnp.where(h > 0, h, 0.2 * h)
    w, b = params["fc4"]
    return h @ w + b


def insp_reference_matched(x, params, *, bf16_epilogue=True):
    """Same precision scheme as the kernel: bf16 matmul operands, f32 acc,
    bias+leaky in the epilogue dtype, final bias add in f32."""
    ep_dt = jnp.bfloat16 if bf16_epilogue else jnp.float32
    h = x
    for name in ("fc1", "fc2", "fc3", "fc5"):
        w, b = params[name]
        acc = jnp.dot(h.astype(jnp.bfloat16), w.astype(jnp.bfloat16),
                      preferred_element_type=jnp.float32)
        act = acc.astype(ep_dt) + b.astype(ep_dt)
        h = jnp.maximum(act, 0.2 * act)
    w, b = params["fc4"]
    return jnp.dot(h.astype(jnp.bfloat16), w.astype(jnp.bfloat16),
                   preferred_element_type=jnp.float32) + b


if __name__ == "__main__":
    key = jax.random.PRNGKey(0)
    kx, kp = jax.random.split(key)

    N = 1024                                  # rows ("pixels"); 2 grid steps @ tm=512
    x = jax.random.normal(kx, (N, IN_C), jnp.float32)
    params = init_params(kp)

    data = {"grad": x}                        # mirrors the torch dict input
    out = insp_forward(data["grad"], params, tm=512, ts=256, bf16_epilogue=True)
    out = jax.block_until_ready(out)
    result = {"new_img": out}

    assert result["new_img"].shape == (N, OUT_C)

    # Precision-matched reference (bf16 operands, f32 acc, bf16 epilogue).
    ref_m = insp_reference_matched(x, params, bf16_epilogue=True)
    assert np.allclose(np.asarray(result["new_img"]), np.asarray(ref_m),
                       rtol=2e-2, atol=2e-2)

    # Loose sanity check against the full-f32 reference (bf16 rounding only).
    ref_f32 = insp_reference_f32(x, params)
    assert np.allclose(np.asarray(result["new_img"]), np.asarray(ref_f32),
                       rtol=1e-1, atol=1e-1)

    print("KERNEL_OK")
</pallas_src>

<mosaic_0001>
module attributes {stable_mosaic.version = 11 : i64} {
  func.func @insp_kernel(%arg0: i32, %arg1: memref<512x69xf32, #tpu.memory_space<vmem>>, %arg2: memref<69x256xbf16, #tpu.memory_space<vmem>>, %arg3: memref<1x256xbf16, #tpu.memory_space<vmem>>, %arg4: memref<3x256x256xbf16, #tpu.memory_space<vmem>>, %arg5: memref<3x1x256xbf16, #tpu.memory_space<vmem>>, %arg6: memref<256x128xbf16, #tpu.memory_space<vmem>>, %arg7: memref<1x3xf32, #tpu.memory_space<vmem>>, %arg8: memref<512x3xf32, #tpu.memory_space<vmem>>) attributes {dimension_semantics = [#tpu.dimension_semantics<parallel>], iteration_bounds = array<i64: 2>, scalar_prefetch = 0 : i64, scratch_operands = 0 : i64, tpu.core_type = #tpu.core_type<tc>, window_params = [{transform_indices = @transform_0, window_bounds = array<i64: 512, 69>}, {pipeline_mode = #tpu.pipeline_mode<synchronous>, transform_indices = @transform_1, window_bounds = array<i64: 69, 256>}, {pipeline_mode = #tpu.pipeline_mode<synchronous>, transform_indices = @transform_2, window_bounds = array<i64: 1, 256>}, {pipeline_mode = #tpu.pipeline_mode<synchronous>, transform_indices = @transform_3, window_bounds = array<i64: 3, 256, 256>}, {pipeline_mode = #tpu.pipeline_mode<synchronous>, transform_indices = @transform_4, window_bounds = array<i64: 3, 1, 256>}, {pipeline_mode = #tpu.pipeline_mode<synchronous>, transform_indices = @transform_5, window_bounds = array<i64: 256, 128>}, {pipeline_mode = #tpu.pipeline_mode<synchronous>, transform_indices = @transform_6, window_bounds = array<i64: 1, 3>}, {transform_indices = @transform_7, window_bounds = array<i64: 512, 3>}]} {
    %c0 = arith.constant 0 : index
    %c0_0 = arith.constant 0 : index
    %0 = vector.load %arg1[%c0, %c0_0] : memref<512x69xf32, #tpu.memory_space<vmem>>, vector<256x69xf32>
    %c0_1 = arith.constant 0 : index
    %c0_2 = arith.constant 0 : index
    %1 = vector.load %arg2[%c0_1, %c0_2] : memref<69x256xbf16, #tpu.memory_space<vmem>>, vector<69x256xbf16>
    %c0_3 = arith.constant 0 : index
    %c0_4 = arith.constant 0 : index
    %2 = vector.load %arg3[%c0_3, %c0_4] : memref<1x256xbf16, #tpu.memory_space<vmem>>, vector<1x256xbf16>
    %3 = arith.truncf %0 : vector<256x69xf32> to vector<256x69xbf16>
    %cst = arith.constant dense<0.000000e+00> : vector<256x256xf32>
    %4 = tpu.matmul %3, %1, %cst {dimension_numbers = #tpu.dot_dimension_numbers<[1], [0], [0], [1], [0, 0, 1, 1], [], []>} : vector<256x69xbf16>, vector<69x256xbf16>, vector<256x256xf32> -> vector<256x256xf32>
    %5 = arith.truncf %4 : vector<256x256xf32> to vector<256x256xbf16>
    %6 = vector.broadcast %2 : vector<1x256xbf16> to vector<256x256xbf16>
    %7 = arith.addf %5, %6 : vector<256x256xbf16>
    %cst_5 = arith.constant 2.001950e-01 : bf16
    %8 = vector.broadcast %cst_5 : bf16 to vector<256x256xbf16>
    %9 = arith.mulf %8, %7 : vector<256x256xbf16>
    %10 = arith.maximumf %7, %9 : vector<256x256xbf16>
    %c0_6 = arith.constant 0 : index
    %c0_7 = arith.constant 0 : index
    %c0_8 = arith.constant 0 : index
    %11 = vector.load %arg4[%c0_6, %c0_7, %c0_8] : memref<3x256x256xbf16, #tpu.memory_space<vmem>>, vector<1x256x256xbf16>
    %12 = vector.shape_cast %11 : vector<1x256x256xbf16> to vector<256x256xbf16>
    %c0_9 = arith.constant 0 : index
    %c0_10 = arith.constant 0 : index
    %c0_11 = arith.constant 0 : index
    %13 = vector.load %arg5[%c0_9, %c0_10, %c0_11] : memref<3x1x256xbf16, #tpu.memory_space<vmem>>, vector<1x1x256xbf16>
    %14 = vector.shape_cast %13 : vector<1x1x256xbf16> to vector<1x256xbf16>
    %cst_12 = arith.constant dense<0.000000e+00> : vector<256x256xf32>
    %15 = tpu.matmul %10, %12, %cst_12 {dimension_numbers = #tpu.dot_dimension_numbers<[1], [0], [0], [1], [0, 0, 1, 1], [], []>} : vector<256x256xbf16>, vector<256x256xbf16>, vector<256x256xf32> -> vector<256x256xf32>
    %16 = arith.truncf %15 : vector<256x256xf32> to vector<256x256xbf16>
    %17 = vector.broadcast %14 : vector<1x256xbf16> to vector<256x256xbf16>
    %18 = arith.addf %16, %17 : vector<256x256xbf16>
    %cst_13 = arith.constant 2.001950e-01 : bf16
    %19 = vector.broadcast %cst_13 : bf16 to vector<256x256xbf16>
    %20 = arith.mulf %19, %18 : vector<256x256xbf16>
    %21 = arith.maximumf %18, %20 : vector<256x256xbf16>
    %c1 = arith.constant 1 : index
    %c0_14 = arith.constant 0 : index
    %c0_15 = arith.constant 0 : index
    %22 = vector.load %arg4[%c1, %c0_14, %c0_15] : memref<3x256x256xbf16, #tpu.memory_space<vmem>>, vector<1x256x256xbf16>
    %23 = vector.shape_cast %22 : vector<1x256x256xbf16> to vector<256x256xbf16>
    %c1_16 = arith.constant 1 : index
    %c0_17 = arith.constant 0 : index
    %c0_18 = arith.constant 0 : index
    %24 = vector.load %arg5[%c1_16, %c0_17, %c0_18] : memref<3x1x256xbf16, #tpu.memory_space<vmem>>, vector<1x1x256xbf16>
    %25 = vector.shape_cast %24 : vector<1x1x256xbf16> to vector<1x256xbf16>
    %cst_19 = arith.constant dense<0.000000e+00> : vector<256x256xf32>
    %26 = tpu.matmul %21, %23, %cst_19 {dimension_numbers = #tpu.dot_dimension_numbers<[1], [0], [0], [1], [0, 0, 1, 1], [], []>} : vector<256x256xbf16>, vector<256x256xbf16>, vector<256x256xf32> -> vector<256x256xf32>
    %27 = arith.truncf %26 : vector<256x256xf32> to vector<256x256xbf16>
    %28 = vector.broadcast %25 : vector<1x256xbf16> to vector<256x256xbf16>
    %29 = arith.addf %27, %28 : vector<256x256xbf16>
    %cst_20 = arith.constant 2.001950e-01 : bf16
    %30 = vector.broadcast %cst_20 : bf16 to vector<256x256xbf16>
    %31 = arith.mulf %30, %29 : vector<256x256xbf16>
    %32 = arith.maximumf %29, %31 : vector<256x256xbf16>
    %c2 = arith.constant 2 : index
    %c0_21 = arith.constant 0 : index
    %c0_22 = arith.constant 0 : index
    %33 = vector.load %arg4[%c2, %c0_21, %c0_22] : memref<3x256x256xbf16, #tpu.memory_space<vmem>>, vector<1x256x256xbf16>
    %34 = vector.shape_cast %33 : vector<1x256x256xbf16> to vector<256x256xbf16>
    %c2_23 = arith.constant 2 : index
    %c0_24 = arith.constant 0 : index
    %c0_25 = arith.constant 0 : index
    %35 = vector.load %arg5[%c2_23, %c0_24, %c0_25] : memref<3x1x256xbf16, #tpu.memory_space<vmem>>, vector<1x1x256xbf16>
    %36 = vector.shape_cast %35 : vector<1x1x256xbf16> to vector<1x256xbf16>
    %cst_26 = arith.constant dense<0.000000e+00> : vector<256x256xf32>
    %37 = tpu.matmul %32, %34, %cst_26 {dimension_numbers = #tpu.dot_dimension_numbers<[1], [0], [0], [1], [0, 0, 1, 1], [], []>} : vector<256x256xbf16>, vector<256x256xbf16>, vector<256x256xf32> -> vector<256x256xf32>
    %38 = arith.truncf %37 : vector<256x256xf32> to vector<256x256xbf16>
    %39 = vector.broadcast %36 : vector<1x256xbf16> to vector<256x256xbf16>
    %40 = arith.addf %38, %39 : vector<256x256xbf16>
    %cst_27 = arith.constant 2.001950e-01 : bf16
    %41 = vector.broadcast %cst_27 : bf16 to vector<256x256xbf16>
    %42 = arith.mulf %41, %40 : vector<256x256xbf16>
    %43 = arith.maximumf %40, %42 : vector<256x256xbf16>
    %c0_28 = arith.constant 0 : index
    %c0_29 = arith.constant 0 : index
    %44 = vector.load %arg6[%c0_28, %c0_29] : memref<256x128xbf16, #tpu.memory_space<vmem>>, vector<256x128xbf16>
    %cst_30 = arith.constant dense<0.000000e+00> : vector<256x128xf32>
    %45 = tpu.matmul %43, %44, %cst_30 {dimension_numbers = #tpu.dot_dimension_numbers<[1], [0], [0], [1], [0, 0, 1, 1], [], []>} : vector<256x256xbf16>, vector<256x128xbf16>, vector<256x128xf32> -> vector<256x128xf32>
    %46 = vector.extract_strided_slice %45 {offsets = [0, 0], sizes = [256, 3], strides = [1, 1]} : vector<256x128xf32> to vector<256x3xf32>
    %c0_31 = arith.constant 0 : index
    %c0_32 = arith.constant 0 : index
    %47 = vector.load %arg7[%c0_31, %c0_32] : memref<1x3xf32, #tpu.memory_space<vmem>>, vector<1x3xf32>
    %48 = vector.broadcast %47 : vector<1x3xf32> to vector<256x3xf32>
    %49 = arith.addf %46, %48 : vector<256x3xf32>
    %c0_33 = arith.constant 0 : index
    %c0_34 = arith.constant 0 : index
    %50 = vector.load %arg8[%c0_33, %c0_34] : memref<512x3xf32, #tpu.memory_space<vmem>>, vector<256x3xf32>
    tpu.vector_store %arg8[%c0_33, %c0_34], %49 {strides = array<i32>} : memref<512x3xf32, #tpu.memory_space<vmem>>, vector<256x3xf32>,
    %c256 = arith.constant 256 : index
    %c0_35 = arith.constant 0 : index
    %51 = vector.load %arg1[%c256, %c0_35] : memref<512x69xf32, #tpu.memory_space<vmem>>, vector<256x69xf32>
    %c0_36 = arith.constant 0 : index
    %c0_37 = arith.constant 0 : index
    %52 = vector.load %arg2[%c0_36, %c0_37] : memref<69x256xbf16, #tpu.memory_space<vmem>>, vector<69x256xbf16>
    %c0_38 = arith.constant 0 : index
    %c0_39 = arith.constant 0 : index
    %53 = vector.load %arg3[%c0_38, %c0_39] : memref<1x256xbf16, #tpu.memory_space<vmem>>, vector<1x256xbf16>
    %54 = arith.truncf %51 : vector<256x69xf32> to vector<256x69xbf16>
    %cst_40 = arith.constant dense<0.000000e+00> : vector<256x256xf32>
    %55 = tpu.matmul %54, %52, %cst_40 {dimension_numbers = #tpu.dot_dimension_numbers<[1], [0], [0], [1], [0, 0, 1, 1], [], []>} : vector<256x69xbf16>, vector<69x256xbf16>, vector<256x256xf32> -> vector<256x256xf32>
    %56 = arith.truncf %55 : vector<256x256xf32> to vector<256x256xbf16>
    %57 = vector.broadcast %53 : vector<1x256xbf16> to vector<256x256xbf16>
    %58 = arith.addf %56, %57 : vector<256x256xbf16>
    %cst_41 = arith.constant 2.001950e-01 : bf16
    %59 = vector.broadcast %cst_41 : bf16 to vector<256x256xbf16>
    %60 = arith.mulf %59, %58 : vector<256x256xbf16>
    %61 = arith.maximumf %58, %60 : vector<256x256xbf16>
    %c0_42 = arith.constant 0 : index
    %c0_43 = arith.constant 0 : index
    %c0_44 = arith.constant 0 : index
    %62 = vector.load %arg4[%c0_42, %c0_43, %c0_44] : memref<3x256x256xbf16, #tpu.memory_space<vmem>>, vector<1x256x256xbf16>
    %63 = vector.shape_cast %62 : vector<1x256x256xbf16> to vector<256x256xbf16>
    %c0_45 = arith.constant 0 : index
    %c0_46 = arith.constant 0 : index
    %c0_47 = arith.constant 0 : index
    %64 = vector.load %arg5[%c0_45, %c0_46, %c0_47] : memref<3x1x256xbf16, #tpu.memory_space<vmem>>, vector<1x1x256xbf16>
    %65 = vector.shape_cast %64 : vector<1x1x256xbf16> to vector<1x256xbf16>
    %cst_48 = arith.constant dense<0.000000e+00> : vector<256x256xf32>
    %66 = tpu.matmul %61, %63, %cst_48 {dimension_numbers = #tpu.dot_dimension_numbers<[1], [0], [0], [1], [0, 0, 1, 1], [], []>} : vector<256x256xbf16>, vector<256x256xbf16>, vector<256x256xf32> -> vector<256x256xf32>
    %67 = arith.truncf %66 : vector<256x256xf32> to vector<256x256xbf16>
    %68 = vector.broadcast %65 : vector<1x256xbf16> to vector<256x256xbf16>
    %69 = arith.addf %67, %68 : vector<256x256xbf16>
    %cst_49 = arith.constant 2.001950e-01 : bf16
    %70 = vector.broadcast %cst_49 : bf16 to vector<256x256xbf16>
    %71 = arith.mulf %70, %69 : vector<256x256xbf16>
    %72 = arith.maximumf %69, %71 : vector<256x256xbf16>
    %c1_50 = arith.constant 1 : index
    %c0_51 = arith.constant 0 : index
    %c0_52 = arith.constant 0 : index
    %73 = vector.load %arg4[%c1_50, %c0_51, %c0_52] : memref<3x256x256xbf16, #tpu.memory_space<vmem>>, vector<1x256x256xbf16>
    %74 = vector.shape_cast %73 : vector<1x256x256xbf16> to vector<256x256xbf16>
    %c1_53 = arith.constant 1 : index
    %c0_54 = arith.constant 0 : index
    %c0_55 = arith.constant 0 : index
    %75 = vector.load %arg5[%c1_53, %c0_54, %c0_55] : memref<3x1x256xbf16, #tpu.memory_space<vmem>>, vector<1x1x256xbf16>
    %76 = vector.shape_cast %75 : vector<1x1x256xbf16> to vector<1x256xbf16>
    %cst_56 = arith.constant dense<0.000000e+00> : vector<256x256xf32>
    %77 = tpu.matmul %72, %74, %cst_56 {dimension_numbers = #tpu.dot_dimension_numbers<[1], [0], [0], [1], [0, 0, 1, 1], [], []>} : vector<256x256xbf16>, vector<256x256xbf16>, vector<256x256xf32> -> vector<256x256xf32>
    %78 = arith.truncf %77 : vector<256x256xf32> to vector<256x256xbf16>
    %79 = vector.broadcast %76 : vector<1x256xbf16> to vector<256x256xbf16>
    %80 = arith.addf %78, %79 : vector<256x256xbf16>
    %cst_57 = arith.constant 2.001950e-01 : bf16
    %81 = vector.broadcast %cst_57 : bf16 to vector<256x256xbf16>
    %82 = arith.mulf %81, %80 : vector<256x256xbf16>
    %83 = arith.maximumf %80, %82 : vector<256x256xbf16>
    %c2_58 = arith.constant 2 : index
    %c0_59 = arith.constant 0 : index
    %c0_60 = arith.constant 0 : index
    %84 = vector.load %arg4[%c2_58, %c0_59, %c0_60] : memref<3x256x256xbf16, #tpu.memory_space<vmem>>, vector<1x256x256xbf16>
    %85 = vector.shape_cast %84 : vector<1x256x256xbf16> to vector<256x256xbf16>
    %c2_61 = arith.constant 2 : index
    %c0_62 = arith.constant 0 : index
    %c0_63 = arith.constant 0 : index
    %86 = vector.load %arg5[%c2_61, %c0_62, %c0_63] : memref<3x1x256xbf16, #tpu.memory_space<vmem>>, vector<1x1x256xbf16>
    %87 = vector.shape_cast %86 : vector<1x1x256xbf16> to vector<1x256xbf16>
    %cst_64 = arith.constant dense<0.000000e+00> : vector<256x256xf32>
    %88 = tpu.matmul %83, %85, %cst_64 {dimension_numbers = #tpu.dot_dimension_numbers<[1], [0], [0], [1], [0, 0, 1, 1], [], []>} : vector<256x256xbf16>, vector<256x256xbf16>, vector<256x256xf32> -> vector<256x256xf32>
    %89 = arith.truncf %88 : vector<256x256xf32> to vector<256x256xbf16>
    %90 = vector.broadcast %87 : vector<1x256xbf16> to vector<256x256xbf16>
    %91 = arith.addf %89, %90 : vector<256x256xbf16>
    %cst_65 = arith.constant 2.001950e-01 : bf16
    %92 = vector.broadcast %cst_65 : bf16 to vector<256x256xbf16>
    %93 = arith.mulf %92, %91 : vector<256x256xbf16>
    %94 = arith.maximumf %91, %93 : vector<256x256xbf16>
    %c0_66 = arith.constant 0 : index
    %c0_67 = arith.constant 0 : index
    %95 = vector.load %arg6[%c0_66, %c0_67] : memref<256x128xbf16, #tpu.memory_space<vmem>>, vector<256x128xbf16>
    %cst_68 = arith.constant dense<0.000000e+00> : vector<256x128xf32>
    %96 = tpu.matmul %94, %95, %cst_68 {dimension_numbers = #tpu.dot_dimension_numbers<[1], [0], [0], [1], [0, 0, 1, 1], [], []>} : vector<256x256xbf16>, vector<256x128xbf16>, vector<256x128xf32> -> vector<256x128xf32>
    %97 = vector.extract_strided_slice %96 {offsets = [0, 0], sizes = [256, 3], strides = [1, 1]} : vector<256x128xf32> to vector<256x3xf32>
    %c0_69 = arith.constant 0 : index
    %c0_70 = arith.constant 0 : index
    %98 = vector.load %arg7[%c0_69, %c0_70] : memref<1x3xf32, #tpu.memory_space<vmem>>, vector<1x3xf32>
    %99 = vector.broadcast %98 : vector<1x3xf32> to vector<256x3xf32>
    %100 = arith.addf %97, %99 : vector<256x3xf32>
    %c256_71 = arith.constant 256 : index
    %c0_72 = arith.constant 0 : index
    %101 = vector.load %arg8[%c256_71, %c0_72] : memref<512x3xf32, #tpu.memory_space<vmem>>, vector<256x3xf32>
    tpu.vector_store %arg8[%c256_71, %c0_72], %100 {strides = array<i32>} : memref<512x3xf32, #tpu.memory_space<vmem>>, vector<256x3xf32>,
    return
  }
  func.func @transform_0(%arg0: i32) -> (i32, i32) {
    %c0_i32 = arith.constant 0 : i32
    %c0_i32_0 = arith.constant 0 : i32
    return %arg0, %c0_i32 : i32, i32
  }
  func.func @transform_1(%arg0: i32) -> (i32, i32) {
    %c0_i32 = arith.constant 0 : i32
    %c0_i32_0 = arith.constant 0 : i32
    %c0_i32_1 = arith.constant 0 : i32
    return %c0_i32, %c0_i32_0 : i32, i32
  }
  func.func @transform_2(%arg0: i32) -> (i32, i32) {
    %c0_i32 = arith.constant 0 : i32
    %c0_i32_0 = arith.constant 0 : i32
    %c0_i32_1 = arith.constant 0 : i32
    return %c0_i32, %c0_i32_0 : i32, i32
  }
  func.func @transform_3(%arg0: i32) -> (i32, i32, i32) {
    %c0_i32 = arith.constant 0 : i32
    %c0_i32_0 = arith.constant 0 : i32
    %c0_i32_1 = arith.constant 0 : i32
    %c0_i32_2 = arith.constant 0 : i32
    return %c0_i32, %c0_i32_0, %c0_i32_1 : i32, i32, i32
  }
  func.func @transform_4(%arg0: i32) -> (i32, i32, i32) {
    %c0_i32 = arith.constant 0 : i32
    %c0_i32_0 = arith.constant 0 : i32
    %c0_i32_1 = arith.constant 0 : i32
    %c0_i32_2 = arith.constant 0 : i32
    return %c0_i32, %c0_i32_0, %c0_i32_1 : i32, i32, i32
  }
  func.func @transform_5(%arg0: i32) -> (i32, i32) {
    %c0_i32 = arith.constant 0 : i32
    %c0_i32_0 = arith.constant 0 : i32
    %c0_i32_1 = arith.constant 0 : i32
    return %c0_i32, %c0_i32_0 : i32, i32
  }
  func.func @transform_6(%arg0: i32) -> (i32, i32) {
    %c0_i32 = arith.constant 0 : i32
    %c0_i32_0 = arith.constant 0 : i32
    %c0_i32_1 = arith.constant 0 : i32
    return %c0_i32, %c0_i32_0 : i32, i32
  }
  func.func @transform_7(%arg0: i32) -> (i32, i32) {
    %c0_i32 = arith.constant 0 : i32
    %c0_i32_0 = arith.constant 0 : i32
    return %arg0, %c0_i32 : i32, i32
  }
}

</mosaic_0001>

<llo_original>
// kernel: tpu_custom_call.1
$region0: #{tpu_custom_call.1}
  #allocation0 [shape = 'u32[]', space=smem, size = 0x4, offset = 0x4, fixed_abs, tag = 'smem constant byte address 0x4 - core index']
  #allocation1 [shape = 'u32[144,128]{1,0:T(1,128)}', space=vmem, size = 0x12000, scoped, tag = 'internal scratch']
  %s0 = inlined_call_operand.vmem [shape: f32[1024,69], index: 0, kind: input, shape index: {}]
  %s1 = inlined_call_operand.vmem [shape: bf16[69,256], index: 1, kind: input, shape index: {}]
  %s2 = inlined_call_operand.vmem [shape: bf16[1,256], index: 2, kind: input, shape index: {}]
  %s3 = inlined_call_operand.vmem [shape: bf16[3,256,256], index: 3, kind: input, shape index: {}]
  %s4 = inlined_call_operand.vmem [shape: bf16[3,1,256], index: 4, kind: input, shape index: {}]
  %s5 = inlined_call_operand.vmem [shape: bf16[256,128], index: 5, kind: input, shape index: {}]
  %s6 = inlined_call_operand.vmem [shape: f32[1,3], index: 6, kind: input, shape index: {}]
  %s7 = inlined_call_operand.vmem [shape: f32[1024,3], index: 7, kind: output, shape index: {}]
  %s8 = sld [smem:[#allocation0]]
  $region61: #{tpu_custom_call.1} parent=0
    _
  %s10 = ssub.s32 1, %s8
  %s11 = scalar_select 0, %s10, %s8
  loop: start=0, step=1, limit=4
  $region2: #{tpu_custom_call.1} parent=0 // loop_pre_header
    _
  $region3: #{tpu_custom_call.1} parent=0 // loop_header
    %s13 = sphi 0, %s17
    %p14 = scmp.ge.s32.totalorder %s13, 4
    %s23 = sphi 0, %s25
    %s26 = sphi 0, %s23
    %s27 = sphi 0, %s26
    %s43 = sphi 0, %s27
    %s47 = sphi 0, %s47
    %s49 = sphi 0, %s47
    %s50 = sphi 0, %s49
    %s64 = sphi 0, %s50
    %s68 = sphi 0, %s68
    %s70 = sphi 0, %s68
    %s71 = sphi 0, %s70
    %s85 = sphi 0, %s71
    %s89 = sphi 0, %s89
    %s91 = sphi 0, %s89
    %s92 = sphi 0, %s91
    %s106 = sphi 0, %s92
    %s110 = sphi 0, %s110
    %s112 = sphi 0, %s110
    %s113 = sphi 0, %s112
    %s127 = sphi 0, %s113
    %s131 = sphi 0, %s131
    %s133 = sphi 0, %s131
    %s134 = sphi 0, %s133
    %s148 = sphi 0, %s134
    %s152 = sphi 0, %s152
    %s154 = sphi 0, %s152
    %s155 = sphi 0, %s154
    %s169 = sphi 0, %s155
    %s175 = sphi 0, %s177
    %s178 = sphi 0, %s175
    %s179 = sphi 0, %s178
    %s195 = sphi 0, %s179
  $region4: #{tpu_custom_call.1} parent=0 // loop_header_branch
    %16 = sbr.rel (%p14) target = $region8
  $region5: #{tpu_custom_call.1} parent=0 // loop_body
    %s18 = ssub.s32 %s13, 1
    %s19 = ssub.s32 %s13, 2
    %s20 = sadd.s32 %s13, 1
    %s21 = ssub.s32 %s13, %s20
    %p22 = scmp.eq.s32.totalorder %s21, 0
    %s24 = sadd.s32 %s23, 1
    %s25 = scalar_select %p22, %s23, %s24
    %p28 = pneg %p22
    %p29 = scmp.eq.s32.totalorder %s13, 1
    %p30 = por %p28, %p29
    %p31 = scmp.ne.s32.totalorder %s23, %s26
    %p32 = scmp.eq.s32.totalorder %s13, 0
    %p33 = por %p31, %p32
    %p34 = scmp.ne.s32.totalorder %s23, %s26
    %p35 = scmp.eq.s32.totalorder %s18, 1
    %p36 = por %p34, %p35
    %p37 = scmp.ne.s32.totalorder %s26, %s27
    %p38 = scmp.eq.s32.totalorder %s18, 0
    %p39 = por %p37, %p38
    %p40 = scmp.ne.s32.totalorder %s26, %s27
    %p41 = scmp.eq.s32.totalorder %s19, 1
    %p42 = por %p40, %p41
    %p44 = scmp.ne.s32.totalorder %s27, %s43
    %p45 = scmp.eq.s32.totalorder %s19, 0
    %p46 = por %p44, %p45
    %s48 = sadd.s32 %s47, 1
    %p51 = scmp.eq.s32.totalorder %s13, 1
    %p52 = scmp.ne.s32.totalorder %s47, %s49
    %p53 = scmp.eq.s32.totalorder %s13, 0
    %p54 = por %p52, %p53
    %p55 = scmp.ne.s32.totalorder %s47, %s49
    %p56 = scmp.eq.s32.totalorder %s18, 1
    %p57 = por %p55, %p56
    %p58 = scmp.ne.s32.totalorder %s49, %s50
    %p59 = scmp.eq.s32.totalorder %s18, 0
    %p60 = por %p58, %p59
    %p61 = scmp.ne.s32.totalorder %s49, %s50
    %p62 = scmp.eq.s32.totalorder %s19, 1
    %p63 = por %p61, %p62
    %p65 = scmp.ne.s32.totalorder %s50, %s64
    %p66 = scmp.eq.s32.totalorder %s19, 0
    %p67 = por %p65, %p66
    %s69 = sadd.s32 %s68, 1
    %p72 = scmp.eq.s32.totalorder %s13, 1
    %p73 = scmp.ne.s32.totalorder %s68, %s70
    %p74 = scmp.eq.s32.totalorder %s13, 0
    %p75 = por %p73, %p74
    %p76 = scmp.ne.s32.totalorder %s68, %s70
    %p77 = scmp.eq.s32.totalorder %s18, 1
    %p78 = por %p76, %p77
    %p79 = scmp.ne.s32.totalorder %s70, %s71
    %p80 = scmp.eq.s32.totalorder %s18, 0
    %p81 = por %p79, %p80
    %p82 = scmp.ne.s32.totalorder %s70, %s71
    %p83 = scmp.eq.s32.totalorder %s19, 1
    %p84 = por %p82, %p83
    %p86 = scmp.ne.s32.totalorder %s71, %s85
    %p87 = scmp.eq.s32.totalorder %s19, 0
    %p88 = por %p86, %p87
    %s90 = sadd.s32 %s89, 1
    %p93 = scmp.eq.s32.totalorder %s13, 1
    %p94 = scmp.ne.s32.totalorder %s89, %s91
    %p95 = scmp.eq.s32.totalorder %s13, 0
    %p96 = por %p94, %p95
    %p97 = scmp.ne.s32.totalorder %s89, %s91
    %p98 = scmp.eq.s32.totalorder %s18, 1
    %p99 = por %p97, %p98
    %p100 = scmp.ne.s32.totalorder %s91, %s92
    %p101 = scmp.eq.s32.totalorder %s18, 0
    %p102 = por %p100, %p101
    %p103 = scmp.ne.s32.totalorder %s91, %s92
    %p104 = scmp.eq.s32.totalorder %s19, 1
    %p105 = por %p103, %p104
    %p107 = scmp.ne.s32.totalorder %s92, %s106
    %p108 = scmp.eq.s32.totalorder %s19, 0
    %p109 = por %p107, %p108
    %s111 = sadd.s32 %s110, 1
    %p114 = scmp.eq.s32.totalorder %s13, 1
    %p115 = scmp.ne.s32.totalorder %s110, %s112
    %p116 = scmp.eq.s32.totalorder %s13, 0
    %p117 = por %p115, %p116
    %p118 = scmp.ne.s32.totalorder %s110, %s112
    %p119 = scmp.eq.s32.totalorder %s18, 1
    %p120 = por %p118, %p119
    %p121 = scmp.ne.s32.totalorder %s112, %s113
    %p122 = scmp.eq.s32.totalorder %s18, 0
    %p123 = por %p121, %p122
    %p124 = scmp.ne.s32.totalorder %s112, %s113
    %p125 = scmp.eq.s32.totalorder %s19, 1
    %p126 = por %p124, %p125
    %p128 = scmp.ne.s32.totalorder %s113, %s127
    %p129 = scmp.eq.s32.totalorder %s19, 0
    %p130 = por %p128, %p129
    %s132 = sadd.s32 %s131, 1
    %p135 = scmp.eq.s32.totalorder %s13, 1
    %p136 = scmp.ne.s32.totalorder %s131, %s133
    %p137 = scmp.eq.s32.totalorder %s13, 0
    %p138 = por %p136, %p137
    %p139 = scmp.ne.s32.totalorder %s131, %s133
    %p140 = scmp.eq.s32.totalorder %s18, 1
    %p141 = por %p139, %p140
    %p142 = scmp.ne.s32.totalorder %s133, %s134
    %p143 = scmp.eq.s32.totalorder %s18, 0
    %p144 = por %p142, %p143
    %p145 = scmp.ne.s32.totalorder %s133, %s134
    %p146 = scmp.eq.s32.totalorder %s19, 1
    %p147 = por %p145, %p146
    %p149 = scmp.ne.s32.totalorder %s134, %s148
    %p150 = scmp.eq.s32.totalorder %s19, 0
    %p151 = por %p149, %p150
    %s153 = sadd.s32 %s152, 1
    %p156 = scmp.eq.s32.totalorder %s13, 1
    %p157 = scmp.ne.s32.totalorder %s152, %s154
    %p158 = scmp.eq.s32.totalorder %s13, 0
    %p159 = por %p157, %p158
    %p160 = scmp.ne.s32.totalorder %s152, %s154
    %p161 = scmp.eq.s32.totalorder %s18, 1
    %p162 = por %p160, %p161
    %p163 = scmp.ne.s32.totalorder %s154, %s155
    %p164 = scmp.eq.s32.totalorder %s18, 0
    %p165 = por %p163, %p164
    %p166 = scmp.ne.s32.totalorder %s154, %s155
    %p167 = scmp.eq.s32.totalorder %s19, 1
    %p168 = por %p166, %p167
    %p170 = scmp.ne.s32.totalorder %s155, %s169
    %p171 = scmp.eq.s32.totalorder %s19, 0
    %p172 = por %p170, %p171
    %s173 = ssub.s32 %s13, %s20
    %p174 = scmp.eq.s32.totalorder %s173, 0
    %s176 = sadd.s32 %s175, 1
    %s177 = scalar_select %p174, %s175, %s176
    %p180 = pneg %p174
    %p181 = scmp.eq.s32.totalorder %s13, 1
    %p182 = por %p180, %p181
    %p183 = scmp.ne.s32.totalorder %s175, %s178
    %p184 = scmp.eq.s32.totalorder %s13, 0
    %p185 = por %p183, %p184
    %p186 = scmp.ne.s32.totalorder %s175, %s178
    %p187 = scmp.eq.s32.totalorder %s18, 1
    %p188 = por %p186, %p187
    %p189 = scmp.ne.s32.totalorder %s178, %s179
    %p190 = scmp.eq.s32.totalorder %s18, 0
    %p191 = por %p189, %p190
    %p192 = scmp.ne.s32.totalorder %s178, %s179
    %p193 = scmp.eq.s32.totalorder %s19, 1
    %p194 = por %p192, %p193
    %p196 = scmp.ne.s32.totalorder %s179, %s195
    %p197 = scmp.eq.s32.totalorder %s19, 0
    %p198 = por %p196, %p197
    %p199 = scmp.le.s32.totalorder 1, %s13
    %p200 = scmp.lt.s32.totalorder %s13, 3
    %p201 = pnand %p199, %p200
    %p202 = pneg %p201
    // Predicated region
    $region9: #{tpu_custom_call.1} parent=5 // pred_check
      _
    $region10: #{tpu_custom_call.1} parent=5 // pred_check_branch
      %204 = sbr.rel (%p201) target = $region12
    $region11: #{tpu_custom_call.1} parent=5 // pred_region
      %s205 = ssub.s32 %s13, 1
      // Predicated region
      $region13: #{tpu_custom_call.1} parent=11 // pred_check
        %p206 = pneg %p60
      $region14: #{tpu_custom_call.1} parent=11 // pred_check_branch
        %208 = sbr.rel (%p206) target = $region16
      $region15: #{tpu_custom_call.1} parent=11 // pred_region
        _
      $region16: #{tpu_custom_call.1} parent=11 // pred_fallthru
        _
      // Predicated region
      $region17: #{tpu_custom_call.1} parent=11 // pred_check
        %p209 = pneg %p81
      $region18: #{tpu_custom_call.1} parent=11 // pred_check_branch
        %211 = sbr.rel (%p209) target = $region20
      $region19: #{tpu_custom_call.1} parent=11 // pred_region
        _
      $region20: #{tpu_custom_call.1} parent=11 // pred_fallthru
        _
      // Predicated region
      $region21: #{tpu_custom_call.1} parent=11 // pred_check
        %p212 = pneg %p102
      $region22: #{tpu_custom_call.1} parent=11 // pred_check_branch
        %214 = sbr.rel (%p212) target = $region24
      $region23: #{tpu_custom_call.1} parent=11 // pred_region
        _
      $region24: #{tpu_custom_call.1} parent=11 // pred_fallthru
        _
      // Predicated region
      $region25: #{tpu_custom_call.1} parent=11 // pred_check
        %p215 = pneg %p123
      $region26: #{tpu_custom_call.1} parent=11 // pred_check_branch
        %217 = sbr.rel (%p215) target = $region28
      $region27: #{tpu_custom_call.1} parent=11 // pred_region
        _
      $region28: #{tpu_custom_call.1} parent=11 // pred_fallthru
        _
      // Predicated region
      $region29: #{tpu_custom_call.1} parent=11 // pred_check
        %p218 = pneg %p144
      $region30: #{tpu_custom_call.1} parent=11 // pred_check_branch
        %220 = sbr.rel (%p218) target = $region32
      $region31: #{tpu_custom_call.1} parent=11 // pred_region
        _
      $region32: #{tpu_custom_call.1} parent=11 // pred_fallthru
        _
      // Predicated region
      $region33: #{tpu_custom_call.1} parent=11 // pred_check
        %p221 = pneg %p165
      $region34: #{tpu_custom_call.1} parent=11 // pred_check_branch
        %223 = sbr.rel (%p221) target = $region36
      $region35: #{tpu_custom_call.1} parent=11 // pred_region
        _
      $region36: #{tpu_custom_call.1} parent=11 // pred_fallthru
        _
    $region12: #{tpu_custom_call.1} parent=5 // pred_fallthru
      _
    %p224 = scmp.lt.s32.totalorder %s13, 2
    // Predicated region
    $region37: #{tpu_custom_call.1} parent=5 // pred_check
      %p225 = pneg %p224
    $region38: #{tpu_custom_call.1} parent=5 // pred_check_branch
      %227 = sbr.rel (%p225) target = $region40
    $region39: #{tpu_custom_call.1} parent=5 // pred_region
      // Predicated region
      $region41: #{tpu_custom_call.1} parent=39 // pred_check
        %p228 = pneg %p33
      $region42: #{tpu_custom_call.1} parent=39 // pred_check_branch
        %230 = sbr.rel (%p228) target = $region44
      $region43: #{tpu_custom_call.1} parent=39 // pred_region
        %s231 = smul.u32 64, %s13
        %p232 = scmp.lt.s32.totalorder %s231, 127
        %s233 = scalar_select %p232, %s231, 127
        %s234 = smul.addr %s233, 8
        %s235 = scalar_lea.vmem %s0, %s234
        %s236 = smul.u32 64, %s13
      $region44: #{tpu_custom_call.1} parent=39 // pred_fallthru
        _
    $region40: #{tpu_custom_call.1} parent=5 // pred_fallthru
      _
    %p237 = scmp.le.s32.totalorder 1, %s13
    %p238 = scmp.lt.s32.totalorder %s13, 3
    %p239 = pnand %p237, %p238
    %p240 = pneg %p239
    // Predicated region
    $region45: #{tpu_custom_call.1} parent=5 // pred_check
      _
    $region46: #{tpu_custom_call.1} parent=5 // pred_check_branch
      %242 = sbr.rel (%p239) target = $region48
    $region47: #{tpu_custom_call.1} parent=5 // pred_region
      %s243 = ssub.s32 %s13, 1
      %s244 = smul.u32 64, %s18
      %p245 = scmp.lt.s32.totalorder %s244, 127
      %s246 = scalar_select %p245, %s244, 127
      %s247 = smul.addr %s246, 8
      %s248 = scalar_lea.vmem %s0, %s247
      %p249 = pneg %p39
      %p250 = pneg %p36
      %p251 = pneg %p60
      %p252 = pneg %p57
      %p253 = pneg %p81
      %p254 = pneg %p78
      %p255 = pneg %p102
      %p256 = pneg %p99
      %p257 = pneg %p123
      %p258 = pneg %p120
      %p259 = pneg %p144
      %p260 = pneg %p141
      %p261 = pneg %p165
      %p262 = pneg %p162
      %p263 = pneg %p191
      %p264 = pneg %p188
      %s265 = smul.u32 64, %s18
      %p266 = scmp.lt.s32.totalorder %s265, 127
      %s267 = scalar_select %p266, %s265, 127
      %s268 = smul.addr %s267, 8
      %s269 = scalar_lea.vmem %s7, %s268
      %s270 = smul.u32 64, %s18
      %p271 = scmp.lt.s32.totalorder %s270, 127
      %s272 = scalar_select %p271, %s270, 127
      %s273 = smul.addr %s272, 8
      %s274 = scalar_lea.vmem %s0, %s273
      %s275 = smul.u32 64, %s18
      %s276 = smul.u32 64, %s18
      %p277 = scmp.lt.s32.totalorder %s276, 127
      %s278 = scalar_select %p277, %s276, 127
      %s279 = smul.addr %s278, 8
      %s280 = scalar_lea.vmem %s7, %s279
      %s281 = smul.u32 64, %s18
      %v284 = vld [vmem:[%s274] sm:$0xff]
      %v285 = vld [vmem:[%s274 + $0x8] sm:$0xff]
      %v286 = vld [vmem:[%s274 + $0x10] sm:$0xff]
      %v287 = vld [vmem:[%s274 + $0x18] sm:$0xff]
      %v288 = vld [vmem:[%s274 + $0x20] sm:$0xff]
      %v289 = vld [vmem:[%s274 + $0x28] sm:$0xff]
      %v290 = vld [vmem:[%s274 + $0x30] sm:$0xff]
      %v291 = vld [vmem:[%s274 + $0x38] sm:$0xff]
      %v292 = vld [vmem:[%s274 + $0x40] sm:$0xff]
      %v293 = vld [vmem:[%s274 + $0x48] sm:$0xff]
      %v294 = vld [vmem:[%s274 + $0x50] sm:$0xff]
      %v295 = vld [vmem:[%s274 + $0x58] sm:$0xff]
      %v296 = vld [vmem:[%s274 + $0x60] sm:$0xff]
      %v297 = vld [vmem:[%s274 + $0x68] sm:$0xff]
      %v298 = vld [vmem:[%s274 + $0x70] sm:$0xff]
      %v299 = vld [vmem:[%s274 + $0x78] sm:$0xff]
      %v300 = vld [vmem:[%s274 + $0x80] sm:$0xff]
      %v301 = vld [vmem:[%s274 + $0x88] sm:$0xff]
      %v302 = vld [vmem:[%s274 + $0x90] sm:$0xff]
      %v303 = vld [vmem:[%s274 + $0x98] sm:$0xff]
      %v304 = vld [vmem:[%s274 + $0xa0] sm:$0xff]
      %v305 = vld [vmem:[%s274 + $0xa8] sm:$0xff]
      %v306 = vld [vmem:[%s274 + $0xb0] sm:$0xff]
      %v307 = vld [vmem:[%s274 + $0xb8] sm:$0xff]
      %v308 = vld [vmem:[%s274 + $0xc0] sm:$0xff]
      %v309 = vld [vmem:[%s274 + $0xc8] sm:$0xff]
      %v310 = vld [vmem:[%s274 + $0xd0] sm:$0xff]
      %v311 = vld [vmem:[%s274 + $0xd8] sm:$0xff]
      %v312 = vld [vmem:[%s274 + $0xe0] sm:$0xff]
      %v313 = vld [vmem:[%s274 + $0xe8] sm:$0xff]
      %v314 = vld [vmem:[%s274 + $0xf0] sm:$0xff]
      %v315 = vld [vmem:[%s274 + $0xf8] sm:$0xff]
      %v316 = vld [vmem:[%s1] sm:$0xff]
      %v317 = vld [vmem:[%s1 + $0x8] sm:$0xff]
      %v318 = vld [vmem:[%s1 + $0x10] sm:$0xff]
      %v319 = vld [vmem:[%s1 + $0x18] sm:$0xff]
      %v320 = vld [vmem:[%s1 + $0x20] sm:$0xff]
      %v321 = vld [vmem:[%s1 + $0x28] sm:$0xff]
      %v322 = vld [vmem:[%s1 + $0x30] sm:$0xff]
      %v323 = vld [vmem:[%s1 + $0x38] sm:$0xff]
      %v324 = vld [vmem:[%s1 + $0x40] sm:$0x77]
      %v325 = vld [vmem:[%s2] sm:$0x3]
      %v326 = vpack.c.bf16 %v285, %v284
      %v327 = vpack.c.bf16 %v287, %v286
      %v328 = vpack.c.bf16 %v289, %v288
      %v329 = vpack.c.bf16 %v291, %v290
      %v330 = vpack.c.bf16 %v293, %v292
      %v331 = vpack.c.bf16 %v295, %v294
      %v332 = vpack.c.bf16 %v297, %v296
      %v333 = vpack.c.bf16 %v299, %v298
      %v334 = vpack.c.bf16 %v301, %v300
      %v335 = vpack.c.bf16 %v303, %v302
      %v336 = vpack.c.bf16 %v305, %v304
      %v337 = vpack.c.bf16 %v307, %v306
      %v338 = vpack.c.bf16 %v309, %v308
      %v339 = vpack.c.bf16 %v311, %v310
      %v340 = vpack.c.bf16 %v313, %v312
      %v341 = vpack.c.bf16 %v315, %v314
      %v351 = vunpack.c.l.b16 %v316
      %v352 = vunpack.c.h.b16 %v316
      %v353 = vunpack.c.l.b16 %v317
      %v354 = vunpack.c.h.b16 %v317
      %v355 = vunpack.c.l.b16 %v318
      %v356 = vunpack.c.h.b16 %v318
      %v357 = vunpack.c.l.b16 %v319
      %v358 = vunpack.c.h.b16 %v319
      %v359 = vunpack.c.l.b16 %v320
      %v360 = vunpack.c.h.b16 %v320
      %v361 = vunpack.c.l.b16 %v321
      %v362 = vunpack.c.h.b16 %v321
      %v363 = vunpack.c.l.b16 %v322
      %v364 = vunpack.c.h.b16 %v322
      %v365 = vunpack.c.l.b16 %v323
      %v366 = vunpack.c.h.b16 %v323
      %v367 = vunpack.c.l.b16 %v324
      %v368 = vunpack.c.h.b16 %v324
      %v369 = vpack.c.b16 %v353, %v351
      %v370 = vpack.c.b16 %v354, %v352
      %v371 = vpack.c.b16 %v357, %v355
      %v372 = vpack.c.b16 %v358, %v356
      %v373 = vpack.c.b16 %v361, %v359
      %v374 = vpack.c.b16 %v362, %v360
      %v375 = vpack.c.b16 %v365, %v363
      %v376 = vpack.c.b16 %v366, %v364
      %v377 = vpack.c.b16 %v367, %v367
      %v378 = vpack.c.b16 %v368, %v368
      %vm387 = vcmask 564224
      %v389 = vsel %vm387, %v326, 0
      %v392 = vsel %vm387, %v327, 0
      %v395 = vsel %vm387, %v328, 0
      %v398 = vsel %vm387, %v329, 0
      %v401 = vsel %vm387, %v330, 0
      %v404 = vsel %vm387, %v331, 0
      %v407 = vsel %vm387, %v332, 0
      %v410 = vsel %vm387, %v333, 0
      %v413 = vsel %vm387, %v334, 0
      %v416 = vsel %vm387, %v335, 0
      %v419 = vsel %vm387, %v336, 0
      %v422 = vsel %vm387, %v337, 0
      %v425 = vsel %vm387, %v338, 0
      %v428 = vsel %vm387, %v339, 0
      %v431 = vsel %vm387, %v340, 0
      %v434 = vsel %vm387, %v341, 0
      %vm436 = vcmask 1041408
      %vm437 = vcmask 1042432
      %v438 = vsel %vm436, 4294967295, 65535
      %v439 = vsel %vm437, %v438, 0
      %v441 = vand.u32 %v377, %v439
      %v444 = vand.u32 %v378, %v439
      %446 = vmatprep.subr.bf16.mxu0 %v370
      %447 = vmatpush1.bf16.msra.mxu0 %v369
      %448 = vmatprep.subr.bf16.mxu0 %v372
      %449 = vmatpush1.bf16.msra.mxu0 %v371
      %450 = vmatprep.subr.bf16.mxu0 %v374
      %451 = vmatpush1.bf16.msra.mxu0 %v373
      %452 = vmatprep.subr.bf16.mxu0 %v376
      %453 = vmatpush1.bf16.msra.mxu0 %v375
      %454 = vmatprep.subr.bf16.mxu0 %v444
      %455 = vmatpush1.bf16.msra.mxu0 %v441
      %456 = vmatprep.subr.bf16.mxu0 0
      %457 = vmatpush1.bf16.msra.mxu0 0
      %458 = vmatprep.subr.bf16.mxu0 0
      %459 = vmatpush1.bf16.msra.mxu0 0
      %460 = vmatprep.subr.bf16.mxu0 0
      %461 = vmatpush1.bf16.msra.mxu0 0
      %462 = vmatprep.subr.bf16.mxu0 0
      %463 = vmatpush1.bf16.msra.mxu0 0
      %464 = vmatprep.subr.bf16.mxu0 0
      %465 = vmatpush1.bf16.msra.mxu0 0
      %466 = vmatprep.subr.bf16.mxu0 0
      %467 = vmatpush1.bf16.msra.mxu0 0
      %468 = vmatprep.subr.bf16.mxu0 0
      %469 = vmatpush1.bf16.msra.mxu0 0
      %470 = vmatprep.subr.bf16.mxu0 0
      %471 = vmatpush1.bf16.msra.mxu0 0
      %472 = vmatprep.subr.bf16.mxu0 0
      %473 = vmatpush1.bf16.msra.mxu0 0
      %474 = vmatprep.subr.bf16.mxu0 0
      %475 = vmatpush1.bf16.msra.mxu0 0
      %476 = vmatprep.subr.bf16.mxu0 0
      %477 = vmatpush1.bf16.msra.mxu0 0
      %478 = vmatprep.mubr.bf16.mxu0 0
      %479 = vmatmul.mubr.bf16.gmra.mrb[0].mxu0 %v389
      %v480 = vpop.f32.mrb[0].mxu0
      %v481 = vadd.f32 0.0, %v480
      %v482 = vpop.f32.mrb[0].mxu0
      %v483 = vadd.f32 0.0, %v482
      %v484 = vpop.f32.mrb[0].mxu0
      %v485 = vadd.f32 0.0, %v484
      %v486 = vpop.f32.mrb[0].mxu0
      %v487 = vadd.f32 0.0, %v486
      %488 = vmatprep.mubr.bf16.mxu0 0
      %489 = vmatmul.mubr.bf16.gmra.mrb[0].mxu0 %v392
      %v490 = vpop.f32.mrb[0].mxu0
      %v491 = vadd.f32 0.0, %v490
      %v492 = vpop.f32.mrb[0].mxu0
      %v493 = vadd.f32 0.0, %v492
      %v494 = vpop.f32.mrb[0].mxu0
      %v495 = vadd.f32 0.0, %v494
      %v496 = vpop.f32.mrb[0].mxu0
      %v497 = vadd.f32 0.0, %v496
      %498 = vmatprep.mubr.bf16.mxu0 0
      %499 = vmatmul.mubr.bf16.gmra.mrb[0].mxu0 %v395
      %v500 = vpop.f32.mrb[0].mxu0
      %v501 = vadd.f32 0.0, %v500
      %v502 = vpop.f32.mrb[0].mxu0
      %v503 = vadd.f32 0.0, %v502
      %v504 = vpop.f32.mrb[0].mxu0
      %v505 = vadd.f32 0.0, %v504
      %v506 = vpop.f32.mrb[0].mxu0
      %v507 = vadd.f32 0.0, %v506
      %508 = vmatprep.mubr.bf16.mxu0 0
      %509 = vmatmul.mubr.bf16.gmra.mrb[0].mxu0 %v398
      %v510 = vpop.f32.mrb[0].mxu0
      %v511 = vadd.f32 0.0, %v510
      %v512 = vpop.f32.mrb[0].mxu0
      %v513 = vadd.f32 0.0, %v512
      %v514 = vpop.f32.mrb[0].mxu0
      %v515 = vadd.f32 0.0, %v514
      %v516 = vpop.f32.mrb[0].mxu0
      %v517 = vadd.f32 0.0, %v516
      %518 = vmatprep.mubr.bf16.mxu0 0
      %519 = vmatmul.mubr.bf16.gmra.mrb[0].mxu0 %v401
      %v520 = vpop.f32.mrb[0].mxu0
      %v521 = vadd.f32 0.0, %v520
      %v522 = vpop.f32.mrb[0].mxu0
      %v523 = vadd.f32 0.0, %v522
      %v524 = vpop.f32.mrb[0].mxu0
      %v525 = vadd.f32 0.0, %v524
      %v526 = vpop.f32.mrb[0].mxu0
      %v527 = vadd.f32 0.0, %v526
      %528 = vmatprep.mubr.bf16.mxu0 0
      %529 = vmatmul.mubr.bf16.gmra.mrb[0].mxu0 %v404
      %v530 = vpop.f32.mrb[0].mxu0
      %v531 = vadd.f32 0.0, %v530
      %v532 = vpop.f32.mrb[0].mxu0
      %v533 = vadd.f32 0.0, %v532
      %v534 = vpop.f32.mrb[0].mxu0
      %v535 = vadd.f32 0.0, %v534
      %v536 = vpop.f32.mrb[0].mxu0
      %v537 = vadd.f32 0.0, %v536
      %538 = vmatprep.mubr.bf16.mxu0 0
      %539 = vmatmul.mubr.bf16.gmra.mrb[0].mxu0 %v407
      %v540 = vpop.f32.mrb[0].mxu0
      %v541 = vadd.f32 0.0, %v540
      %v542 = vpop.f32.mrb[0].mxu0
      %v543 = vadd.f32 0.0, %v542
      %v544 = vpop.f32.mrb[0].mxu0
      %v545 = vadd.f32 0.0, %v544
      %v546 = vpop.f32.mrb[0].mxu0
      %v547 = vadd.f32 0.0, %v546
      %548 = vmatprep.mubr.bf16.mxu0 0
      %549 = vmatmul.mubr.bf16.gmra.mrb[0].mxu0 %v410
      %v550 = vpop.f32.mrb[0].mxu0
      %v551 = vadd.f32 0.0, %v550
      %v552 = vpop.f32.mrb[0].mxu0
      %v553 = vadd.f32 0.0, %v552
      %v554 = vpop.f32.mrb[0].mxu0
      %v555 = vadd.f32 0.0, %v554
      %v556 = vpop.f32.mrb[0].mxu0
      %v557 = vadd.f32 0.0, %v556
      %558 = vmatprep.mubr.bf16.mxu0 0
      %559 = vmatmul.mubr.bf16.gmra.mrb[0].mxu0 %v413
      %v560 = vpop.f32.mrb[0].mxu0
      %v561 = vadd.f32 0.0, %v560
      %v562 = vpop.f32.mrb[0].mxu0
      %v563 = vadd.f32 0.0, %v562
      %v564 = vpop.f32.mrb[0].mxu0
      %v565 = vadd.f32 0.0, %v564
      %v566 = vpop.f32.mrb[0].mxu0
      %v567 = vadd.f32 0.0, %v566
      %568 = vmatprep.mubr.bf16.mxu0 0
      %569 = vmatmul.mubr.bf16.gmra.mrb[0].mxu0 %v416
      %v570 = vpop.f32.mrb[0].mxu0
      %v571 = vadd.f32 0.0, %v570
      %v572 = vpop.f32.mrb[0].mxu0
      %v573 = vadd.f32 0.0, %v572
      %v574 = vpop.f32.mrb[0].mxu0
      %v575 = vadd.f32 0.0, %v574
      %v576 = vpop.f32.mrb[0].mxu0
      %v577 = vadd.f32 0.0, %v576
      %578 = vmatprep.mubr.bf16.mxu0 0
      %579 = vmatmul.mubr.bf16.gmra.mrb[0].mxu0 %v419
      %v580 = vpop.f32.mrb[0].mxu0
      %v581 = vadd.f32 0.0, %v580
      %v582 = vpop.f32.mrb[0].mxu0
      %v583 = vadd.f32 0.0, %v582
      %v584 = vpop.f32.mrb[0].mxu0
      %v585 = vadd.f32 0.0, %v584
      %v586 = vpop.f32.mrb[0].mxu0
      %v587 = vadd.f32 0.0, %v586
      %588 = vmatprep.mubr.bf16.mxu0 0
      %589 = vmatmul.mubr.bf16.gmra.mrb[0].mxu0 %v422
      %v590 = vpop.f32.mrb[0].mxu0
      %v591 = vadd.f32 0.0, %v590
      %v592 = vpop.f32.mrb[0].mxu0
      %v593 = vadd.f32 0.0, %v592
      %v594 = vpop.f32.mrb[0].mxu0
      %v595 = vadd.f32 0.0, %v594
      %v596 = vpop.f32.mrb[0].mxu0
      %v597 = vadd.f32 0.0, %v596
      %598 = vmatprep.mubr.bf16.mxu0 0
      %599 = vmatmul.mubr.bf16.gmra.mrb[0].mxu0 %v425
      %v600 = vpop.f32.mrb[0].mxu0
      %v601 = vadd.f32 0.0, %v600
      %v602 = vpop.f32.mrb[0].mxu0
      %v603 = vadd.f32 0.0, %v602
      %v604 = vpop.f32.mrb[0].mxu0
      %v605 = vadd.f32 0.0, %v604
      %v606 = vpop.f32.mrb[0].mxu0
      %v607 = vadd.f32 0.0, %v606
      %608 = vmatprep.mubr.bf16.mxu0 0
      %609 = vmatmul.mubr.bf16.gmra.mrb[0].mxu0 %v428
      %v610 = vpop.f32.mrb[0].mxu0
      %v611 = vadd.f32 0.0, %v610
      %v612 = vpop.f32.mrb[0].mxu0
      %v613 = vadd.f32 0.0, %v612
      %v614 = vpop.f32.mrb[0].mxu0
      %v615 = vadd.f32 0.0, %v614
      %v616 = vpop.f32.mrb[0].mxu0
      %v617 = vadd.f32 0.0, %v616
      %618 = vmatprep.mubr.bf16.mxu0 0
      %619 = vmatmul.mubr.bf16.gmra.mrb[0].mxu0 %v431
      %v620 = vpop.f32.mrb[0].mxu0
      %v621 = vadd.f32 0.0, %v620
      %v622 = vpop.f32.mrb[0].mxu0
      %v623 = vadd.f32 0.0, %v622
      %v624 = vpop.f32.mrb[0].mxu0
      %v625 = vadd.f32 0.0, %v624
      %v626 = vpop.f32.mrb[0].mxu0
      %v627 = vadd.f32 0.0, %v626
      %628 = vmatprep.mubr.bf16.mxu0 0
      %629 = vmatmul.mubr.bf16.gmra.mrb[0].mxu0 %v434
      %v630 = vpop.f32.mrb[0].mxu0
      %v631 = vadd.f32 0.0, %v630
      %v632 = vpop.f32.mrb[0].mxu0
      %v633 = vadd.f32 0.0, %v632
      %v634 = vpop.f32.mrb[0].mxu0
      %v635 = vadd.f32 0.0, %v634
      %v636 = vpop.f32.mrb[0].mxu0
      %v637 = vadd.f32 0.0, %v636
      %638 = vdwg.mxu0
      %v639 = vpack.c.bf16 %v485, %v481
      %v640 = vpack.c.bf16 %v487, %v483
      %v641 = vpack.c.bf16 %v495, %v491
      %v642 = vpack.c.bf16 %v497, %v493
      %v643 = vpack.c.bf16 %v505, %v501
      %v644 = vpack.c.bf16 %v507, %v503
      %v645 = vpack.c.bf16 %v515, %v511
      %v646 = vpack.c.bf16 %v517, %v513
      %v647 = vpack.c.bf16 %v525, %v521
      %v648 = vpack.c.bf16 %v527, %v523
      %v649 = vpack.c.bf16 %v535, %v531
      %v650 = vpack.c.bf16 %v537, %v533
      %v651 = vpack.c.bf16 %v545, %v541
      %v652 = vpack.c.bf16 %v547, %v543
      %v653 = vpack.c.bf16 %v555, %v551
      %v654 = vpack.c.bf16 %v557, %v553
      %v655 = vpack.c.bf16 %v565, %v561
      %v656 = vpack.c.bf16 %v567, %v563
      %v657 = vpack.c.bf16 %v575, %v571
      %v658 = vpack.c.bf16 %v577, %v573
      %v659 = vpack.c.bf16 %v585, %v581
      %v660 = vpack.c.bf16 %v587, %v583
      %v661 = vpack.c.bf16 %v595, %v591
      %v662 = vpack.c.bf16 %v597, %v593
      %v663 = vpack.c.bf16 %v605, %v601
      %v664 = vpack.c.bf16 %v607, %v603
      %v665 = vpack.c.bf16 %v615, %v611
      %v666 = vpack.c.bf16 %v617, %v613
      %v667 = vpack.c.bf16 %v625, %v621
      %v668 = vpack.c.bf16 %v627, %v623
      %v669 = vpack.c.bf16 %v635, %v631
      %v670 = vpack.c.bf16 %v637, %v633
      %v673 = vunpack.c.l.s4 1966171168
      %v674 = vunpack.c.0.s8 %v673
      %v675 = vlaneseq
      %v676 = vshrl.u32 %v675, 7
      %v677 = vsub.s32 %v674, %v676
      %v678 = vrot.slane %v325, %v677
      %v679 = vcombine.high %v678, %v678
      %v681 = vunpack.c.l.s4 1966171168
      %v682 = vunpack.c.0.s8 %v681
      %v683 = vlaneseq
      %v684 = vshrl.u32 %v683, 7
      %v685 = vsub.s32 %v682, %v684
      %v686 = vrot.slane %v678, %v685
      %v688 = vunpack.c.l.s4 1966171168
      %v689 = vunpack.c.0.s8 %v688
      %v690 = vlaneseq
      %v691 = vshrl.u32 %v690, 7
      %v692 = vsub.s32 %v689, %v691
      %v693 = vrot.slane %v679, %v692
      %v695 = vpack.i.b16 %v686, %v686
      %v697 = vlaneseq
      %v698 = vshrl.u32 %v697, 7
      %v699 = vsub.s32 0, %v698
      %v700 = vrot.slane %v695, %v699
      %v702 = vpack.i.b16 %v693, %v693
      %v704 = vlaneseq
      %v705 = vshrl.u32 %v704, 7
      %v706 = vsub.s32 0, %v705
      %v707 = vrot.slane %v702, %v706
      %v708 = vadd.bf16 %v639, %v700
      %v709 = vadd.bf16 %v640, %v707
      %v710 = vadd.bf16 %v641, %v700
      %v711 = vadd.bf16 %v642, %v707
      %v712 = vadd.bf16 %v643, %v700
      %v713 = vadd.bf16 %v644, %v707
      %v714 = vadd.bf16 %v645, %v700
      %v715 = vadd.bf16 %v646, %v707
      %v716 = vadd.bf16 %v647, %v700
      %v717 = vadd.bf16 %v648, %v707
      %v718 = vadd.bf16 %v649, %v700
      %v719 = vadd.bf16 %v650, %v707
      %v720 = vadd.bf16 %v651, %v700
      %v721 = vadd.bf16 %v652, %v707
      %v722 = vadd.bf16 %v653, %v700
      %v723 = vadd.bf16 %v654, %v707
      %v724 = vadd.bf16 %v655, %v700
      %v725 = vadd.bf16 %v656, %v707
      %v726 = vadd.bf16 %v657, %v700
      %v727 = vadd.bf16 %v658, %v707
      %v728 = vadd.bf16 %v659, %v700
      %v729 = vadd.bf16 %v660, %v707
      %v730 = vadd.bf16 %v661, %v700
      %v731 = vadd.bf16 %v662, %v707
      %v732 = vadd.bf16 %v663, %v700
      %v733 = vadd.bf16 %v664, %v707
      %v734 = vadd.bf16 %v665, %v700
      %v735 = vadd.bf16 %v666, %v707
      %v736 = vadd.bf16 %v667, %v700
      %v737 = vadd.bf16 %v668, %v707
      %v738 = vadd.bf16 %v669, %v700
      %v739 = vadd.bf16 %v670, %v707
      %v740 = vmul.bf16 %v708, 1045249613
      %v741 = vmul.bf16 %v709, 1045249613
      %v742 = vmul.bf16 %v710, 1045249613
      %v743 = vmul.bf16 %v711, 1045249613
      %v744 = vmul.bf16 %v712, 1045249613
      %v745 = vmul.bf16 %v713, 1045249613
      %v746 = vmul.bf16 %v714, 1045249613
      %v747 = vmul.bf16 %v715, 1045249613
      %v748 = vmul.bf16 %v716, 1045249613
      %v749 = vmul.bf16 %v717, 1045249613
      %v750 = vmul.bf16 %v718, 1045249613
      %v751 = vmul.bf16 %v719, 1045249613
      %v752 = vmul.bf16 %v720, 1045249613
      %v753 = vmul.bf16 %v721, 1045249613
      %v754 = vmul.bf16 %v722, 1045249613
      %v755 = vmul.bf16 %v723, 1045249613
      %v756 = vmul.bf16 %v724, 1045249613
      %v757 = vmul.bf16 %v725, 1045249613
      %v758 = vmul.bf16 %v726, 1045249613
      %v759 = vmul.bf16 %v727, 1045249613
      %v760 = vmul.bf16 %v728, 1045249613
      %v761 = vmul.bf16 %v729, 1045249613
      %v762 = vmul.bf16 %v730, 1045249613
      %v763 = vmul.bf16 %v731, 1045249613
      %v764 = vmul.bf16 %v732, 1045249613
      %v765 = vmul.bf16 %v733, 1045249613
      %v766 = vmul.bf16 %v734, 1045249613
      %v767 = vmul.bf16 %v735, 1045249613
      %v768 = vmul.bf16 %v736, 1045249613
      %v769 = vmul.bf16 %v737, 1045249613
      %v770 = vmul.bf16 %v738, 1045249613
      %v771 = vmul.bf16 %v739, 1045249613
      %v772 = vmax.bf16 %v708, %v740
      %v773 = vmax.bf16 %v709, %v741
      %v774 = vmax.bf16 %v710, %v742
      %v775 = vmax.bf16 %v711, %v743
      %v776 = vmax.bf16 %v712, %v744
      %v777 = vmax.bf16 %v713, %v745
      %v778 = vmax.bf16 %v714, %v746
      %v779 = vmax.bf16 %v715, %v747
      %v780 = vmax.bf16 %v716, %v748
      %v781 = vmax.bf16 %v717, %v749
      %v782 = vmax.bf16 %v718, %v750
      %v783 = vmax.bf16 %v719, %v751
      %v784 = vmax.bf16 %v720, %v752
      %v785 = vmax.bf16 %v721, %v753
      %v786 = vmax.bf16 %v722, %v754
      %v787 = vmax.bf16 %v723, %v755
      %v788 = vmax.bf16 %v724, %v756
      %v789 = vmax.bf16 %v725, %v757
      %v790 = vmax.bf16 %v726, %v758
      %v791 = vmax.bf16 %v727, %v759
      %v792 = vmax.bf16 %v728, %v760
      %v793 = vmax.bf16 %v729, %v761
      %v794 = vmax.bf16 %v730, %v762
      %v795 = vmax.bf16 %v731, %v763
      %v796 = vmax.bf16 %v732, %v764
      %v797 = vmax.bf16 %v733, %v765
      %v798 = vmax.bf16 %v734, %v766
      %v799 = vmax.bf16 %v735, %v767
      %v800 = vmax.bf16 %v736, %v768
      %v801 = vmax.bf16 %v737, %v769
      %v802 = vmax.bf16 %v738, %v770
      %v803 = vmax.bf16 %v739, %v771
      %v804 = vld [vmem:[%s3] sm:$0xff]
      %v805 = vld [vmem:[%s3 + $0x8] sm:$0xff]
      %v806 = vld [vmem:[%s3 + $0x10] sm:$0xff]
      %v807 = vld [vmem:[%s3 + $0x18] sm:$0xff]
      %v808 = vld [vmem:[%s3 + $0x20] sm:$0xff]
      %v809 = vld [vmem:[%s3 + $0x28] sm:$0xff]
      %v810 = vld [vmem:[%s3 + $0x30] sm:$0xff]
      %v811 = vld [vmem:[%s3 + $0x38] sm:$0xff]
      %v812 = vld [vmem:[%s3 + $0x40] sm:$0xff]
      %v813 = vld [vmem:[%s3 + $0x48] sm:$0xff]
      %v814 = vld [vmem:[%s3 + $0x50] sm:$0xff]
      %v815 = vld [vmem:[%s3 + $0x58] sm:$0xff]
      %v816 = vld [vmem:[%s3 + $0x60] sm:$0xff]
      %v817 = vld [vmem:[%s3 + $0x68] sm:$0xff]
      %v818 = vld [vmem:[%s3 + $0x70] sm:$0xff]
      %v819 = vld [vmem:[%s3 + $0x78] sm:$0xff]
      %v820 = vld [vmem:[%s3 + $0x80] sm:$0xff]
      %v821 = vld [vmem:[%s3 + $0x88] sm:$0xff]
      %v822 = vld [vmem:[%s3 + $0x90] sm:$0xff]
      %v823 = vld [vmem:[%s3 + $0x98] sm:$0xff]
      %v824 = vld [vmem:[%s3 + $0xa0] sm:$0xff]
      %v825 = vld [vmem:[%s3 + $0xa8] sm:$0xff]
      %v826 = vld [vmem:[%s3 + $0xb0] sm:$0xff]
      %v827 = vld [vmem:[%s3 + $0xb8] sm:$0xff]
      %v828 = vld [vmem:[%s3 + $0xc0] sm:$0xff]
      %v829 = vld [vmem:[%s3 + $0xc8] sm:$0xff]
      %v830 = vld [vmem:[%s3 + $0xd0] sm:$0xff]
      %v831 = vld [vmem:[%s3 + $0xd8] sm:$0xff]
      %v832 = vld [vmem:[%s3 + $0xe0] sm:$0xff]
      %v833 = vld [vmem:[%s3 + $0xe8] sm:$0xff]
      %v834 = vld [vmem:[%s3 + $0xf0] sm:$0xff]
      %v835 = vld [vmem:[%s3 + $0xf8] sm:$0xff]
      %v836 = vld [vmem:[%s4] sm:$0x3]
      %v869 = vunpack.c.l.b16 %v804
      %v870 = vunpack.c.h.b16 %v804
      %v871 = vunpack.c.l.b16 %v805
      %v872 = vunpack.c.h.b16 %v805
      %v873 = vunpack.c.l.b16 %v806
      %v874 = vunpack.c.h.b16 %v806
      %v875 = vunpack.c.l.b16 %v807
      %v876 = vunpack.c.h.b16 %v807
      %v877 = vunpack.c.l.b16 %v808
      %v878 = vunpack.c.h.b16 %v808
      %v879 = vunpack.c.l.b16 %v809
      %v880 = vunpack.c.h.b16 %v809
      %v881 = vunpack.c.l.b16 %v810
      %v882 = vunpack.c.h.b16 %v810
      %v883 = vunpack.c.l.b16 %v811
      %v884 = vunpack.c.h.b16 %v811
      %v885 = vunpack.c.l.b16 %v812
      %v886 = vunpack.c.h.b16 %v812
      %v887 = vunpack.c.l.b16 %v813
      %v888 = vunpack.c.h.b16 %v813
      %v889 = vunpack.c.l.b16 %v814
      %v890 = vunpack.c.h.b16 %v814
      %v891 = vunpack.c.l.b16 %v815
      %v892 = vunpack.c.h.b16 %v815
      %v893 = vunpack.c.l.b16 %v816
      %v894 = vunpack.c.h.b16 %v816
      %v895 = vunpack.c.l.b16 %v817
      %v896 = vunpack.c.h.b16 %v817
      %v897 = vunpack.c.l.b16 %v818
      %v898 = vunpack.c.h.b16 %v818
      %v899 = vunpack.c.l.b16 %v819
      %v900 = vunpack.c.h.b16 %v819
      %v901 = vunpack.c.l.b16 %v820
      %v902 = vunpack.c.h.b16 %v820
      %v903 = vunpack.c.l.b16 %v821
      %v904 = vunpack.c.h.b16 %v821
      %v905 = vunpack.c.l.b16 %v822
      %v906 = vunpack.c.h.b16 %v822
      %v907 = vunpack.c.l.b16 %v823
      %v908 = vunpack.c.h.b16 %v823
      %v909 = vunpack.c.l.b16 %v824
      %v910 = vunpack.c.h.b16 %v824
      %v911 = vunpack.c.l.b16 %v825
      %v912 = vunpack.c.h.b16 %v825
      %v913 = vunpack.c.l.b16 %v826
      %v914 = vunpack.c.h.b16 %v826
      %v915 = vunpack.c.l.b16 %v827
      %v916 = vunpack.c.h.b16 %v827
      %v917 = vunpack.c.l.b16 %v828
      %v918 = vunpack.c.h.b16 %v828
      %v919 = vunpack.c.l.b16 %v829
      %v920 = vunpack.c.h.b16 %v829
      %v921 = vunpack.c.l.b16 %v830
      %v922 = vunpack.c.h.b16 %v830
      %v923 = vunpack.c.l.b16 %v831
      %v924 = vunpack.c.h.b16 %v831
      %v925 = vunpack.c.l.b16 %v832
      %v926 = vunpack.c.h.b16 %v832
      %v927 = vunpack.c.l.b16 %v833
      %v928 = vunpack.c.h.b16 %v833
      %v929 = vunpack.c.l.b16 %v834
      %v930 = vunpack.c.h.b16 %v834
      %v931 = vunpack.c.l.b16 %v835
      %v932 = vunpack.c.h.b16 %v835
      %v933 = vpack.c.b16 %v871, %v869
      %v934 = vpack.c.b16 %v872, %v870
      %v935 = vpack.c.b16 %v875, %v873
      %v936 = vpack.c.b16 %v876, %v874
      %v937 = vpack.c.b16 %v879, %v877
      %v938 = vpack.c.b16 %v880, %v878
      %v939 = vpack.c.b16 %v883, %v881
      %v940 = vpack.c.b16 %v884, %v882
      %v941 = vpack.c.b16 %v887, %v885
      %v942 = vpack.c.b16 %v888, %v886
      %v943 = vpack.c.b16 %v891, %v889
      %v944 = vpack.c.b16 %v892, %v890
      %v945 = vpack.c.b16 %v895, %v893
      %v946 = vpack.c.b16 %v896, %v894
      %v947 = vpack.c.b16 %v899, %v897
      %v948 = vpack.c.b16 %v900, %v898
      %v949 = vpack.c.b16 %v903, %v901
      %v950 = vpack.c.b16 %v904, %v902
      %v951 = vpack.c.b16 %v907, %v905
      %v952 = vpack.c.b16 %v908, %v906
      %v953 = vpack.c.b16 %v911, %v909
      %v954 = vpack.c.b16 %v912, %v910
      %v955 = vpack.c.b16 %v915, %v913
      %v956 = vpack.c.b16 %v916, %v914
      %v957 = vpack.c.b16 %v919, %v917
      %v958 = vpack.c.b16 %v920, %v918
      %v959 = vpack.c.b16 %v923, %v921
      %v960 = vpack.c.b16 %v924, %v922
      %v961 = vpack.c.b16 %v927, %v925
      %v962 = vpack.c.b16 %v928, %v926
      %v963 = vpack.c.b16 %v931, %v929
      %v964 = vpack.c.b16 %v932, %v930
      %997 = vmatprep.subr.bf16.mxu0 %v934
      %998 = vmatpush1.bf16.msra.mxu0 %v933
      %999 = vmatprep.subr.bf16.mxu0 %v936
      %1000 = vmatpush1.bf16.msra.mxu0 %v935
      %1001 = vmatprep.subr.bf16.mxu0 %v938
      %1002 = vmatpush1.bf16.msra.mxu0 %v937
      %1003 = vmatprep.subr.bf16.mxu0 %v940
      %1004 = vmatpush1.bf16.msra.mxu0 %v939
      %1005 = vmatprep.subr.bf16.mxu0 %v942
      %1006 = vmatpush1.bf16.msra.mxu0 %v941
      %1007 = vmatprep.subr.bf16.mxu0 %v944
      %1008 = vmatpush1.bf16.msra.mxu0 %v943
      %1009 = vmatprep.subr.bf16.mxu0 %v946
      %1010 = vmatpush1.bf16.msra.mxu0 %v945
      %1011 = vmatprep.subr.bf16.mxu0 %v948
      %1012 = vmatpush1.bf16.msra.mxu0 %v947
      %1013 = vmatprep.subr.bf16.mxu0 %v950
      %1014 = vmatpush1.bf16.msra.mxu0 %v949
      %1015 = vmatprep.subr.bf16.mxu0 %v952
      %1016 = vmatpush1.bf16.msra.mxu0 %v951
      %1017 = vmatprep.subr.bf16.mxu0 %v954
      %1018 = vmatpush1.bf16.msra.mxu0 %v953
      %1019 = vmatprep.subr.bf16.mxu0 %v956
      %1020 = vmatpush1.bf16.msra.mxu0 %v955
      %1021 = vmatprep.subr.bf16.mxu0 %v958
      %1022 = vmatpush1.bf16.msra.mxu0 %v957
      %1023 = vmatprep.subr.bf16.mxu0 %v960
      %1024 = vmatpush1.bf16.msra.mxu0 %v959
      %1025 = vmatprep.subr.bf16.mxu0 %v962
      %1026 = vmatpush1.bf16.msra.mxu0 %v961
      %1027 = vmatprep.subr.bf16.mxu0 %v964
      %1028 = vmatpush1.bf16.msra.mxu0 %v963
      %1029 = vmatprep.mubr.bf16.mxu0 %v773
      %1030 = vmatmul.mubr.bf16.gmra.mrb[0].mxu0 %v772
      %v1031 = vpop.f32.mrb[0].mxu0
      %v1032 = vadd.f32 0.0, %v1031
      %v1033 = vpop.f32.mrb[0].mxu0
      %v1034 = vadd.f32 0.0, %v1033
      %v1035 = vpop.f32.mrb[0].mxu0
      %v1036 = vadd.f32 0.0, %v1035
      %v1037 = vpop.f32.mrb[0].mxu0
      %v1038 = vadd.f32 0.0, %v1037
      %1039 = vmatprep.mubr.bf16.mxu0 %v775
      %1040 = vmatmul.mubr.bf16.gmra.mrb[0].mxu0 %v774
      %v1041 = vpop.f32.mrb[0].mxu0
      %v1042 = vadd.f32 0.0, %v1041
      %v1043 = vpop.f32.mrb[0].mxu0
      %v1044 = vadd.f32 0.0, %v1043
      %v1045 = vpop.f32.mrb[0].mxu0
      %v1046 = vadd.f32 0.0, %v1045
      %v1047 = vpop.f32.mrb[0].mxu0
      %v1048 = vadd.f32 0.0, %v1047
      %1049 = vmatprep.mubr.bf16.mxu0 %v777
      %1050 = vmatmul.mubr.bf16.gmra.mrb[0].mxu0 %v776
      %v1051 = vpop.f32.mrb[0].mxu0
      %v1052 = vadd.f32 0.0, %v1051
      %v1053 = vpop.f32.mrb[0].mxu0
      %v1054 = vadd.f32 0.0, %v1053
      %v1055 = vpop.f32.mrb[0].mxu0
      %v1056 = vadd.f32 0.0, %v1055
      %v1057 = vpop.f32.mrb[0].mxu0
      %v1058 = vadd.f32 0.0, %v1057
      %1059 = vmatprep.mubr.bf16.mxu0 %v779
      %1060 = vmatmul.mubr.bf16.gmra.mrb[0].mxu0 %v778
      %v1061 = vpop.f32.mrb[0].mxu0
      %v1062 = vadd.f32 0.0, %v1061
      %v1063 = vpop.f32.mrb[0].mxu0
      %v1064 = vadd.f32 0.0, %v1063
      %v1065 = vpop.f32.mrb[0].mxu0
      %v1066 = vadd.f32 0.0, %v1065
      %v1067 = vpop.f32.mrb[0].mxu0
      %v1068 = vadd.f32 0.0, %v1067
      %1069 = vmatprep.mubr.bf16.mxu0 %v781
      %1070 = vmatmul.mubr.bf16.gmra.mrb[0].mxu0 %v780
      %v1071 = vpop.f32.mrb[0].mxu0
      %v1072 = vadd.f32 0.0, %v1071
      %v1073 = vpop.f32.mrb[0].mxu0
      %v1074 = vadd.f32 0.0, %v1073
      %v1075 = vpop.f32.mrb[0].mxu0
      %v1076 = vadd.f32 0.0, %v1075
      %v1077 = vpop.f32.mrb[0].mxu0
      %v1078 = vadd.f32 0.0, %v1077
      %1079 = vmatprep.mubr.bf16.mxu0 %v783
      %1080 = vmatmul.mubr.bf16.gmra.mrb[0].mxu0 %v782
      %v1081 = vpop.f32.mrb[0].mxu0
      %v1082 = vadd.f32 0.0, %v1081
      %v1083 = vpop.f32.mrb[0].mxu0
      %v1084 = vadd.f32 0.0, %v1083
      %v1085 = vpop.f32.mrb[0].mxu0
      %v1086 = vadd.f32 0.0, %v1085
      %v1087 = vpop.f32.mrb[0].mxu0
      %v1088 = vadd.f32 0.0, %v1087
      %1089 = vmatprep.mubr.bf16.mxu0 %v785
      %1090 = vmatmul.mubr.bf16.gmra.mrb[0].mxu0 %v784
      %v1091 = vpop.f32.mrb[0].mxu0
      %v1092 = vadd.f32 0.0, %v1091
      %v1093 = vpop.f32.mrb[0].mxu0
      %v1094 = vadd.f32 0.0, %v1093
      %v1095 = vpop.f32.mrb[0].mxu0
      %v1096 = vadd.f32 0.0, %v1095
      %v1097 = vpop.f32.mrb[0].mxu0
      %v1098 = vadd.f32 0.0, %v1097
      %1099 = vmatprep.mubr.bf16.mxu0 %v787
      %1100 = vmatmul.mubr.bf16.gmra.mrb[0].mxu0 %v786
      %v1101 = vpop.f32.mrb[0].mxu0
      %v1102 = vadd.f32 0.0, %v1101
      %v1103 = vpop.f32.mrb[0].mxu0
      %v1104 = vadd.f32 0.0, %v1103
      %v1105 = vpop.f32.mrb[0].mxu0
      %v1106 = vadd.f32 0.0, %v1105
      %v1107 = vpop.f32.mrb[0].mxu0
      %v1108 = vadd.f32 0.0, %v1107
      %1109 = vmatprep.mubr.bf16.mxu0 %v789
      %1110 = vmatmul.mubr.bf16.gmra.mrb[0].mxu0 %v788
      %v1111 = vpop.f32.mrb[0].mxu0
      %v1112 = vadd.f32 0.0, %v1111
      %v1113 = vpop.f32.mrb[0].mxu0
      %v1114 = vadd.f32 0.0, %v1113
      %v1115 = vpop.f32.mrb[0].mxu0
      %v1116 = vadd.f32 0.0, %v1115
      %v1117 = vpop.f32.mrb[0].mxu0
      %v1118 = vadd.f32 0.0, %v1117
      %1119 = vmatprep.mubr.bf16.mxu0 %v791
      %1120 = vmatmul.mubr.bf16.gmra.mrb[0].mxu0 %v790
      %v1121 = vpop.f32.mrb[0].mxu0
      %v1122 = vadd.f32 0.0, %v1121
      %v1123 = vpop.f32.mrb[0].mxu0
      %v1124 = vadd.f32 0.0, %v1123
      %v1125 = vpop.f32.mrb[0].mxu0
      %v1126 = vadd.f32 0.0, %v1125
      %v1127 = vpop.f32.mrb[0].mxu0
      %v1128 = vadd.f32 0.0, %v1127
      %1129 = vmatprep.mubr.bf16.mxu0 %v793
      %1130 = vmatmul.mubr.bf16.gmra.mrb[0].mxu0 %v792
      %v1131 = vpop.f32.mrb[0].mxu0
      %v1132 = vadd.f32 0.0, %v1131
      %v1133 = vpop.f32.mrb[0].mxu0
      %v1134 = vadd.f32 0.0, %v1133
      %v1135 = vpop.f32.mrb[0].mxu0
      %v1136 = vadd.f32 0.0, %v1135
      %v1137 = vpop.f32.mrb[0].mxu0
      %v1138 = vadd.f32 0.0, %v1137
      %1139 = vmatprep.mubr.bf16.mxu0 %v795
      %1140 = vmatmul.mubr.bf16.gmra.mrb[0].mxu0 %v794
      %v1141 = vpop.f32.mrb[0].mxu0
      %v1142 = vadd.f32 0.0, %v1141
      %v1143 = vpop.f32.mrb[0].mxu0
      %v1144 = vadd.f32 0.0, %v1143
      %v1145 = vpop.f32.mrb[0].mxu0
      %v1146 = vadd.f32 0.0, %v1145
      %v1147 = vpop.f32.mrb[0].mxu0
      %v1148 = vadd.f32 0.0, %v1147
      %1149 = vmatprep.mubr.bf16.mxu0 %v797
      %1150 = vmatmul.mubr.bf16.gmra.mrb[0].mxu0 %v796
      %v1151 = vpop.f32.mrb[0].mxu0
      %v1152 = vadd.f32 0.0, %v1151
      %v1153 = vpop.f32.mrb[0].mxu0
      %v1154 = vadd.f32 0.0, %v1153
      %v1155 = vpop.f32.mrb[0].mxu0
      %v1156 = vadd.f32 0.0, %v1155
      %v1157 = vpop.f32.mrb[0].mxu0
      %v1158 = vadd.f32 0.0, %v1157
      %1159 = vmatprep.mubr.bf16.mxu0 %v799
      %1160 = vmatmul.mubr.bf16.gmra.mrb[0].mxu0 %v798
      %v1161 = vpop.f32.mrb[0].mxu0
      %v1162 = vadd.f32 0.0, %v1161
      %v1163 = vpop.f32.mrb[0].mxu0
      %v1164 = vadd.f32 0.0, %v1163
      %v1165 = vpop.f32.mrb[0].mxu0
      %v1166 = vadd.f32 0.0, %v1165
      %v1167 = vpop.f32.mrb[0].mxu0
      %v1168 = vadd.f32 0.0, %v1167
      %1169 = vmatprep.mubr.bf16.mxu0 %v801
      %1170 = vmatmul.mubr.bf16.gmra.mrb[0].mxu0 %v800
      %v1171 = vpop.f32.mrb[0].mxu0
      %v1172 = vadd.f32 0.0, %v1171
      %v1173 = vpop.f32.mrb[0].mxu0
      %v1174 = vadd.f32 0.0, %v1173
      %v1175 = vpop.f32.mrb[0].mxu0
      %v1176 = vadd.f32 0.0, %v1175
      %v1177 = vpop.f32.mrb[0].mxu0
      %v1178 = vadd.f32 0.0, %v1177
      %1179 = vmatprep.mubr.bf16.mxu0 %v803
      %1180 = vmatmul.mubr.bf16.gmra.mrb[0].mxu0 %v802
      %v1181 = vpop.f32.mrb[0].mxu0
      %v1182 = vadd.f32 0.0, %v1181
      %v1183 = vpop.f32.mrb[0].mxu0
      %v1184 = vadd.f32 0.0, %v1183
      %v1185 = vpop.f32.mrb[0].mxu0
      %v1186 = vadd.f32 0.0, %v1185
      %v1187 = vpop.f32.mrb[0].mxu0
      %v1188 = vadd.f32 0.0, %v1187
      %1189 = vdwg.mxu0
      %v1190 = vpack.c.bf16 %v1036, %v1032
      %v1191 = vpack.c.bf16 %v1038, %v1034
      %v1192 = vpack.c.bf16 %v1046, %v1042
      %v1193 = vpack.c.bf16 %v1048, %v1044
      %v1194 = vpack.c.bf16 %v1056, %v1052
      %v1195 = vpack.c.bf16 %v1058, %v1054
      %v1196 = vpack.c.bf16 %v1066, %v1062
      %v1197 = vpack.c.bf16 %v1068, %v1064
      %v1198 = vpack.c.bf16 %v1076, %v1072
      %v1199 = vpack.c.bf16 %v1078, %v1074
      %v1200 = vpack.c.bf16 %v1086, %v1082
      %v1201 = vpack.c.bf16 %v1088, %v1084
      %v1202 = vpack.c.bf16 %v1096, %v1092
      %v1203 = vpack.c.bf16 %v1098, %v1094
      %v1204 = vpack.c.bf16 %v1106, %v1102
      %v1205 = vpack.c.bf16 %v1108, %v1104
      %v1206 = vpack.c.bf16 %v1116, %v1112
      %v1207 = vpack.c.bf16 %v1118, %v1114
      %v1208 = vpack.c.bf16 %v1126, %v1122
      %v1209 = vpack.c.bf16 %v1128, %v1124
      %v1210 = vpack.c.bf16 %v1136, %v1132
      %v1211 = vpack.c.bf16 %v1138, %v1134
      %v1212 = vpack.c.bf16 %v1146, %v1142
      %v1213 = vpack.c.bf16 %v1148, %v1144
      %v1214 = vpack.c.bf16 %v1156, %v1152
      %v1215 = vpack.c.bf16 %v1158, %v1154
      %v1216 = vpack.c.bf16 %v1166, %v1162
      %v1217 = vpack.c.bf16 %v1168, %v1164
      %v1218 = vpack.c.bf16 %v1176, %v1172
      %v1219 = vpack.c.bf16 %v1178, %v1174
      %v1220 = vpack.c.bf16 %v1186, %v1182
      %v1221 = vpack.c.bf16 %v1188, %v1184
      %v1224 = vunpack.c.l.s4 1966171168
      %v1225 = vunpack.c.0.s8 %v1224
      %v1226 = vlaneseq
      %v1227 = vshrl.u32 %v1226, 7
      %v1228 = vsub.s32 %v1225, %v1227
      %v1229 = vrot.slane %v836, %v1228
      %v1230 = vcombine.high %v1229, %v1229
      %v1232 = vunpack.c.l.s4 1966171168
      %v1233 = vunpack.c.0.s8 %v1232
      %v1234 = vlaneseq
      %v1235 = vshrl.u32 %v1234, 7
      %v1236 = vsub.s32 %v1233, %v1235
      %v1237 = vrot.slane %v1229, %v1236
      %v1239 = vunpack.c.l.s4 1966171168
      %v1240 = vunpack.c.0.s8 %v1239
      %v1241 = vlaneseq
      %v1242 = vshrl.u32 %v1241, 7
      %v1243 = vsub.s32 %v1240, %v1242
      %v1244 = vrot.slane %v1230, %v1243
      %v1246 = vpack.i.b16 %v1237, %v1237
      %v1248 = vlaneseq
      %v1249 = vshrl.u32 %v1248, 7
      %v1250 = vsub.s32 0, %v1249
      %v1251 = vrot.slane %v1246, %v1250
      %v1253 = vpack.i.b16 %v1244, %v1244
      %v1255 = vlaneseq
      %v1256 = vshrl.u32 %v1255, 7
      %v1257 = vsub.s32 0, %v1256
      %v1258 = vrot.slane %v1253, %v1257
      %v1259 = vadd.bf16 %v1190, %v1251
      %v1260 = vadd.bf16 %v1191, %v1258
      %v1261 = vadd.bf16 %v1192, %v1251
      %v1262 = vadd.bf16 %v1193, %v1258
      %v1263 = vadd.bf16 %v1194, %v1251
      %v1264 = vadd.bf16 %v1195, %v1258
      %v1265 = vadd.bf16 %v1196, %v1251
      %v1266 = vadd.bf16 %v1197, %v1258
      %v1267 = vadd.bf16 %v1198, %v1251
      %v1268 = vadd.bf16 %v1199, %v1258
      %v1269 = vadd.bf16 %v1200, %v1251
      %v1270 = vadd.bf16 %v1201, %v1258
      %v1271 = vadd.bf16 %v1202, %v1251
      %v1272 = vadd.bf16 %v1203, %v1258
      %v1273 = vadd.bf16 %v1204, %v1251
      %v1274 = vadd.bf16 %v1205, %v1258
      %v1275 = vadd.bf16 %v1206, %v1251
      %v1276 = vadd.bf16 %v1207, %v1258
      %v1277 = vadd.bf16 %v1208, %v1251
      %v1278 = vadd.bf16 %v1209, %v1258
      %v1279 = vadd.bf16 %v1210, %v1251
      %v1280 = vadd.bf16 %v1211, %v1258
      %v1281 = vadd.bf16 %v1212, %v1251
      %v1282 = vadd.bf16 %v1213, %v1258
      %v1283 = vadd.bf16 %v1214, %v1251
      %v1284 = vadd.bf16 %v1215, %v1258
      %v1285 = vadd.bf16 %v1216, %v1251
      %v1286 = vadd.bf16 %v1217, %v1258
      %v1287 = vadd.bf16 %v1218, %v1251
      %v1288 = vadd.bf16 %v1219, %v1258
      %v1289 = vadd.bf16 %v1220, %v1251
      %v1290 = vadd.bf16 %v1221, %v1258
      %v1291 = vmul.bf16 %v1259, 1045249613
      %v1292 = vmul.bf16 %v1260, 1045249613
      %v1293 = vmul.bf16 %v1261, 1045249613
      %v1294 = vmul.bf16 %v1262, 1045249613
      %v1295 = vmul.bf16 %v1263, 1045249613
      %v1296 = vmul.bf16 %v1264, 1045249613
      %v1297 = vmul.bf16 %v1265, 1045249613
      %v1298 = vmul.bf16 %v1266, 1045249613
      %v1299 = vmul.bf16 %v1267, 1045249613
      %v1300 = vmul.bf16 %v1268, 1045249613
      %v1301 = vmul.bf16 %v1269, 1045249613
      %v1302 = vmul.bf16 %v1270, 1045249613
      %v1303 = vmul.bf16 %v1271, 1045249613
      %v1304 = vmul.bf16 %v1272, 1045249613
      %v1305 = vmul.bf16 %v1273, 1045249613
      %v1306 = vmul.bf16 %v1274, 1045249613
      %v1307 = vmul.bf16 %v1275, 1045249613
      %v1308 = vmul.bf16 %v1276, 1045249613
      %v1309 = vmul.bf16 %v1277, 1045249613
      %v1310 = vmul.bf16 %v1278, 1045249613
      %v1311 = vmul.bf16 %v1279, 1045249613
      %v1312 = vmul.bf16 %v1280, 1045249613
      %v1313 = vmul.bf16 %v1281, 1045249613
      %v1314 = vmul.bf16 %v1282, 1045249613
      %v1315 = vmul.bf16 %v1283, 1045249613
      %v1316 = vmul.bf16 %v1284, 1045249613
      %v1317 = vmul.bf16 %v1285, 1045249613
      %v1318 = vmul.bf16 %v1286, 1045249613
      %v1319 = vmul.bf16 %v1287, 1045249613
      %v1320 = vmul.bf16 %v1288, 1045249613
      %v1321 = vmul.bf16 %v1289, 1045249613
      %v1322 = vmul.bf16 %v1290, 1045249613
      %v1323 = vmax.bf16 %v1259, %v1291
      %v1324 = vmax.bf16 %v1260, %v1292
      %v1325 = vmax.bf16 %v1261, %v1293
      %v1326 = vmax.bf16 %v1262, %v1294
      %v1327 = vmax.bf16 %v1263, %v1295
      %v1328 = vmax.bf16 %v1264, %v1296
      %v1329 = vmax.bf16 %v1265, %v1297
      %v1330 = vmax.bf16 %v1266, %v1298
      %v1331 = vmax.bf16 %v1267, %v1299
      %v1332 = vmax.bf16 %v1268, %v1300
      %v1333 = vmax.bf16 %v1269, %v1301
      %v1334 = vmax.bf16 %v1270, %v1302
      %v1335 = vmax.bf16 %v1271, %v1303
      %v1336 = vmax.bf16 %v1272, %v1304
      %v1337 = vmax.bf16 %v1273, %v1305
      %v1338 = vmax.bf16 %v1274, %v1306
      %v1339 = vmax.bf16 %v1275, %v1307
      %v1340 = vmax.bf16 %v1276, %v1308
      %v1341 = vmax.bf16 %v1277, %v1309
      %v1342 = vmax.bf16 %v1278, %v1310
      %v1343 = vmax.bf16 %v1279, %v1311
      %v1344 = vmax.bf16 %v1280, %v1312
      %v1345 = vmax.bf16 %v1281, %v1313
      %v1346 = vmax.bf16 %v1282, %v1314
      %v1347 = vmax.bf16 %v1283, %v1315
      %v1348 = vmax.bf16 %v1284, %v1316
      %v1349 = vmax.bf16 %v1285, %v1317
      %v1350 = vmax.bf16 %v1286, %v1318
      %v1351 = vmax.bf16 %v1287, %v1319
      %v1352 = vmax.bf16 %v1288, %v1320
      %v1353 = vmax.bf16 %v1289, %v1321
      %v1354 = vmax.bf16 %v1290, %v1322
      %s1355 = scalar_lea.vmem %s3, 256
      %v1356 = vld [vmem:[%s1355] sm:$0xff]
      %v1357 = vld [vmem:[%s1355 + $0x8] sm:$0xff]
      %v1358 = vld [vmem:[%s1355 + $0x10] sm:$0xff]
      %v1359 = vld [vmem:[%s1355 + $0x18] sm:$0xff]
      %v1360 = vld [vmem:[%s1355 + $0x20] sm:$0xff]
      %v1361 = vld [vmem:[%s1355 + $0x28] sm:$0xff]
      %v1362 = vld [vmem:[%s1355 + $0x30] sm:$0xff]
      %v1363 = vld [vmem:[%s1355 + $0x38] sm:$0xff]
      %v1364 = vld [vmem:[%s1355 + $0x40] sm:$0xff]
      %v1365 = vld [vmem:[%s1355 + $0x48] sm:$0xff]
      %v1366 = vld [vmem:[%s1355 + $0x50] sm:$0xff]
      %v1367 = vld [vmem:[%s1355 + $0x58] sm:$0xff]
      %v1368 = vld [vmem:[%s1355 + $0x60] sm:$0xff]
      %v1369 = vld [vmem:[%s1355 + $0x68] sm:$0xff]
      %v1370 = vld [vmem:[%s1355 + $0x70] sm:$0xff]
      %v1371 = vld [vmem:[%s1355 + $0x78] sm:$0xff]
      %v1372 = vld [vmem:[%s1355 + $0x80] sm:$0xff]
      %v1373 = vld [vmem:[%s1355 + $0x88] sm:$0xff]
      %v1374 = vld [vmem:[%s1355 + $0x90] sm:$0xff]
      %v1375 = vld [vmem:[%s1355 + $0x98] sm:$0xff]
      %v1376 = vld [vmem:[%s1355 + $0xa0] sm:$0xff]
      %v1377 = vld [vmem:[%s1355 + $0xa8] sm:$0xff]
      %v1378 = vld [vmem:[%s1355 + $0xb0] sm:$0xff]
      %v1379 = vld [vmem:[%s1355 + $0xb8] sm:$0xff]
      %v1380 = vld [vmem:[%s1355 + $0xc0] sm:$0xff]
      %v1381 = vld [vmem:[%s1355 + $0xc8] sm:$0xff]
      %v1382 = vld [vmem:[%s1355 + $0xd0] sm:$0xff]
      %v1383 = vld [vmem:[%s1355 + $0xd8] sm:$0xff]
      %v1384 = vld [vmem:[%s1355 + $0xe0] sm:$0xff]
      %v1385 = vld [vmem:[%s1355 + $0xe8] sm:$0xff]
      %v1386 = vld [vmem:[%s1355 + $0xf0] sm:$0xff]
      %v1387 = vld [vmem:[%s1355 + $0xf8] sm:$0xff]
      %s1388 = scalar_lea.vmem %s4, 2
      %v1389 = vld [vmem:[%s1388] sm:$0x3]
      %v1422 = vunpack.c.l.b16 %v1356
      %v1423 = vunpack.c.h.b16 %v1356
      %v1424 = vunpack.c.l.b16 %v1357
      %v1425 = vunpack.c.h.b16 %v1357
      %v1426 = vunpack.c.l.b16 %v1358
      %v1427 = vunpack.c.h.b16 %v1358
      %v1428 = vunpack.c.l.b16 %v1359
      %v1429 = vunpack.c.h.b16 %v1359
      %v1430 = vunpack.c.l.b16 %v1360
      %v1431 = vunpack.c.h.b16 %v1360
      %v1432 = vunpack.c.l.b16 %v1361
      %v1433 = vunpack.c.h.b16 %v1361
      %v1434 = vunpack.c.l.b16 %v1362
      %v1435 = vunpack.c.h.b16 %v1362
      %v1436 = vunpack.c.l.b16 %v1363
      %v1437 = vunpack.c.h.b16 %v1363
      %v1438 = vunpack.c.l.b16 %v1364
      %v1439 = vunpack.c.h.b16 %v1364
      %v1440 = vunpack.c.l.b16 %v1365
      %v1441 = vunpack.c.h.b16 %v1365
      %v1442 = vunpack.c.l.b16 %v1366
      %v1443 = vunpack.c.h.b16 %v1366
      %v1444 = vunpack.c.l.b16 %v1367
      %v1445 = vunpack.c.h.b16 %v1367
      %v1446 = vunpack.c.l.b16 %v1368
      %v1447 = vunpack.c.h.b16 %v1368
      %v1448 = vunpack.c.l.b16 %v1369
      %v1449 = vunpack.c.h.b16 %v1369
      %v1450 = vunpack.c.l.b16 %v1370
      %v1451 = vunpack.c.h.b16 %v1370
      %v1452 = vunpack.c.l.b16 %v1371
      %v1453 = vunpack.c.h.b16 %v1371
      %v1454 = vunpack.c.l.b16 %v1372
      %v1455 = vunpack.c.h.b16 %v1372
      %v1456 = vunpack.c.l.b16 %v1373
      %v1457 = vunpack.c.h.b16 %v1373
      %v1458 = vunpack.c.l.b16 %v1374
      %v1459 = vunpack.c.h.b16 %v1374
      %v1460 = vunpack.c.l.b16 %v1375
      %v1461 = vunpack.c.h.b16 %v1375
      %v1462 = vunpack.c.l.b16 %v1376
      %v1463 = vunpack.c.h.b16 %v1376
      %v1464 = vunpack.c.l.b16 %v1377
      %v1465 = vunpack.c.h.b16 %v1377
      %v1466 = vunpack.c.l.b16 %v1378
      %v1467 = vunpack.c.h.b16 %v1378
      %v1468 = vunpack.c.l.b16 %v1379
      %v1469 = vunpack.c.h.b16 %v1379
      %v1470 = vunpack.c.l.b16 %v1380
      %v1471 = vunpack.c.h.b16 %v1380
      %v1472 = vunpack.c.l.b16 %v1381
      %v1473 = vunpack.c.h.b16 %v1381
      %v1474 = vunpack.c.l.b16 %v1382
      %v1475 = vunpack.c.h.b16 %v1382
      %v1476 = vunpack.c.l.b16 %v1383
      %v1477 = vunpack.c.h.b16 %v1383
      %v1478 = vunpack.c.l.b16 %v1384
      %v1479 = vunpack.c.h.b16 %v1384
      %v1480 = vunpack.c.l.b16 %v1385
      %v1481 = vunpack.c.h.b16 %v1385
      %v1482 = vunpack.c.l.b16 %v1386
      %v1483 = vunpack.c.h.b16 %v1386
      %v1484 = vunpack.c.l.b16 %v1387
      %v1485 = vunpack.c.h.b16 %v1387
      %v1486 = vpack.c.b16 %v1424, %v1422
      %v1487 = vpack.c.b16 %v1425, %v1423
      %v1488 = vpack.c.b16 %v1428, %v1426
      %v1489 = vpack.c.b16 %v1429, %v1427
      %v1490 = vpack.c.b16 %v1432, %v1430
      %v1491 = vpack.c.b16 %v1433, %v1431
      %v1492 = vpack.c.b16 %v1436, %v1434
      %v1493 = vpack.c.b16 %v1437, %v1435
      %v1494 = vpack.c.b16 %v1440, %v1438
      %v1495 = vpack.c.b16 %v1441, %v1439
      %v1496 = vpack.c.b16 %v1444, %v1442
      %v1497 = vpack.c.b16 %v1445, %v1443
      %v1498 = vpack.c.b16 %v1448, %v1446
      %v1499 = vpack.c.b16 %v1449, %v1447
      %v1500 = vpack.c.b16 %v1452, %v1450
      %v1501 = vpack.c.b16 %v1453, %v1451
      %v1502 = vpack.c.b16 %v1456, %v1454
      %v1503 = vpack.c.b16 %v1457, %v1455
      %v1504 = vpack.c.b16 %v1460, %v1458
      %v1505 = vpack.c.b16 %v1461, %v1459
      %v1506 = vpack.c.b16 %v1464, %v1462
      %v1507 = vpack.c.b16 %v1465, %v1463
      %v1508 = vpack.c.b16 %v1468, %v1466
      %v1509 = vpack.c.b16 %v1469, %v1467
      %v1510 = vpack.c.b16 %v1472, %v1470
      %v1511 = vpack.c.b16 %v1473, %v1471
      %v1512 = vpack.c.b16 %v1476, %v1474
      %v1513 = vpack.c.b16 %v1477, %v1475
      %v1514 = vpack.c.b16 %v1480, %v1478
      %v1515 = vpack.c.b16 %v1481, %v1479
      %v1516 = vpack.c.b16 %v1484, %v1482
      %v1517 = vpack.c.b16 %v1485, %v1483
      %1550 = vmatprep.subr.bf16.mxu0 %v1487
      %1551 = vmatpush1.bf16.msra.mxu0 %v1486
      %1552 = vmatprep.subr.bf16.mxu0 %v1489
      %1553 = vmatpush1.bf16.msra.mxu0 %v1488
      %1554 = vmatprep.subr.bf16.mxu0 %v1491
      %1555 = vmatpush1.bf16.msra.mxu0 %v1490
      %1556 = vmatprep.subr.bf16.mxu0 %v1493
      %1557 = vmatpush1.bf16.msra.mxu0 %v1492
      %1558 = vmatprep.subr.bf16.mxu0 %v1495
      %1559 = vmatpush1.bf16.msra.mxu0 %v1494
      %1560 = vmatprep.subr.bf16.mxu0 %v1497
      %1561 = vmatpush1.bf16.msra.mxu0 %v1496
      %1562 = vmatprep.subr.bf16.mxu0 %v1499
      %1563 = vmatpush1.bf16.msra.mxu0 %v1498
      %1564 = vmatprep.subr.bf16.mxu0 %v1501
      %1565 = vmatpush1.bf16.msra.mxu0 %v1500
      %1566 = vmatprep.subr.bf16.mxu0 %v1503
      %1567 = vmatpush1.bf16.msra.mxu0 %v1502
      %1568 = vmatprep.subr.bf16.mxu0 %v1505
      %1569 = vmatpush1.bf16.msra.mxu0 %v1504
      %1570 = vmatprep.subr.bf16.mxu0 %v1507
      %1571 = vmatpush1.bf16.msra.mxu0 %v1506
      %1572 = vmatprep.subr.bf16.mxu0 %v1509
      %1573 = vmatpush1.bf16.msra.mxu0 %v1508
      %1574 = vmatprep.subr.bf16.mxu0 %v1511
      %1575 = vmatpush1.bf16.msra.mxu0 %v1510
      %1576 = vmatprep.subr.bf16.mxu0 %v1513
      %1577 = vmatpush1.bf16.msra.mxu0 %v1512
      %1578 = vmatprep.subr.bf16.mxu0 %v1515
      %1579 = vmatpush1.bf16.msra.mxu0 %v1514
      %1580 = vmatprep.subr.bf16.mxu0 %v1517
      %1581 = vmatpush1.bf16.msra.mxu0 %v1516
      %1582 = vmatprep.mubr.bf16.mxu0 %v1324
      %1583 = vmatmul.mubr.bf16.gmra.mrb[0].mxu0 %v1323
      %v1584 = vpop.f32.mrb[0].mxu0
      %v1585 = vadd.f32 0.0, %v1584
      %v1586 = vpop.f32.mrb[0].mxu0
      %v1587 = vadd.f32 0.0, %v1586
      %v1588 = vpop.f32.mrb[0].mxu0
      %v1589 = vadd.f32 0.0, %v1588
      %v1590 = vpop.f32.mrb[0].mxu0
      %v1591 = vadd.f32 0.0, %v1590
      %1592 = vmatprep.mubr.bf16.mxu0 %v1326
      %1593 = vmatmul.mubr.bf16.gmra.mrb[0].mxu0 %v1325
      %v1594 = vpop.f32.mrb[0].mxu0
      %v1595 = vadd.f32 0.0, %v1594
      %v1596 = vpop.f32.mrb[0].mxu0
      %v1597 = vadd.f32 0.0, %v1596
      %v1598 = vpop.f32.mrb[0].mxu0
      %v1599 = vadd.f32 0.0, %v1598
      %v1600 = vpop.f32.mrb[0].mxu0
      %v1601 = vadd.f32 0.0, %v1600
      %1602 = vmatprep.mubr.bf16.mxu0 %v1328
      %1603 = vmatmul.mubr.bf16.gmra.mrb[0].mxu0 %v1327
      %v1604 = vpop.f32.mrb[0].mxu0
      %v1605 = vadd.f32 0.0, %v1604
      %v1606 = vpop.f32.mrb[0].mxu0
      %v1607 = vadd.f32 0.0, %v1606
      %v1608 = vpop.f32.mrb[0].mxu0
      %v1609 = vadd.f32 0.0, %v1608
      %v1610 = vpop.f32.mrb[0].mxu0
      %v1611 = vadd.f32 0.0, %v1610
      %1612 = vmatprep.mubr.bf16.mxu0 %v1330
      %1613 = vmatmul.mubr.bf16.gmra.mrb[0].mxu0 %v1329
      %v1614 = vpop.f32.mrb[0].mxu0
      %v1615 = vadd.f32 0.0, %v1614
      %v1616 = vpop.f32.mrb[0].mxu0
      %v1617 = vadd.f32 0.0, %v1616
      %v1618 = vpop.f32.mrb[0].mxu0
      %v1619 = vadd.f32 0.0, %v1618
      %v1620 = vpop.f32.mrb[0].mxu0
      %v1621 = vadd.f32 0.0, %v1620
      %1622 = vmatprep.mubr.bf16.mxu0 %v1332
      %1623 = vmatmul.mubr.bf16.gmra.mrb[0].mxu0 %v1331
      %v1624 = vpop.f32.mrb[0].mxu0
      %v1625 = vadd.f32 0.0, %v1624
      %v1626 = vpop.f32.mrb[0].mxu0
      %v1627 = vadd.f32 0.0, %v1626
      %v1628 = vpop.f32.mrb[0].mxu0
      %v1629 = vadd.f32 0.0, %v1628
      %v1630 = vpop.f32.mrb[0].mxu0
      %v1631 = vadd.f32 0.0, %v1630
      %1632 = vmatprep.mubr.bf16.mxu0 %v1334
      %1633 = vmatmul.mubr.bf16.gmra.mrb[0].mxu0 %v1333
      %v1634 = vpop.f32.mrb[0].mxu0
      %v1635 = vadd.f32 0.0, %v1634
      %v1636 = vpop.f32.mrb[0].mxu0
      %v1637 = vadd.f32 0.0, %v1636
      %v1638 = vpop.f32.mrb[0].mxu0
      %v1639 = vadd.f32 0.0, %v1638
      %v1640 = vpop.f32.mrb[0].mxu0
      %v1641 = vadd.f32 0.0, %v1640
      %1642 = vmatprep.mubr.bf16.mxu0 %v1336
      %1643 = vmatmul.mubr.bf16.gmra.mrb[0].mxu0 %v1335
      %v1644 = vpop.f32.mrb[0].mxu0
      %v1645 = vadd.f32 0.0, %v1644
      %v1646 = vpop.f32.mrb[0].mxu0
      %v1647 = vadd.f32 0.0, %v1646
      %v1648 = vpop.f32.mrb[0].mxu0
      %v1649 = vadd.f32 0.0, %v1648
      %v1650 = vpop.f32.mrb[0].mxu0
      %v1651 = vadd.f32 0.0, %v1650
      %1652 = vmatprep.mubr.bf16.mxu0 %v1338
      %1653 = vmatmul.mubr.bf16.gmra.mrb[0].mxu0 %v1337
      %v1654 = vpop.f32.mrb[0].mxu0
      %v1655 = vadd.f32 0.0, %v1654
      %v1656 = vpop.f32.mrb[0].mxu0
      %v1657 = vadd.f32 0.0, %v1656
      %v1658 = vpop.f32.mrb[0].mxu0
      %v1659 = vadd.f32 0.0, %v1658
      %v1660 = vpop.f32.mrb[0].mxu0
      %v1661 = vadd.f32 0.0, %v1660
      %1662 = vmatprep.mubr.bf16.mxu0 %v1340
      %1663 = vmatmul.mubr.bf16.gmra.mrb[0].mxu0 %v1339
      %v1664 = vpop.f32.mrb[0].mxu0
      %v1665 = vadd.f32 0.0, %v1664
      %v1666 = vpop.f32.mrb[0].mxu0
      %v1667 = vadd.f32 0.0, %v1666
      %v1668 = vpop.f32.mrb[0].mxu0
      %v1669 = vadd.f32 0.0, %v1668
      %v1670 = vpop.f32.mrb[0].mxu0
      %v1671 = vadd.f32 0.0, %v1670
      %1672 = vmatprep.mubr.bf16.mxu0 %v1342
      %1673 = vmatmul.mubr.bf16.gmra.mrb[0].mxu0 %v1341
      %v1674 = vpop.f32.mrb[0].mxu0
      %v1675 = vadd.f32 0.0, %v1674
      %v1676 = vpop.f32.mrb[0].mxu0
      %v1677 = vadd.f32 0.0, %v1676
      %v1678 = vpop.f32.mrb[0].mxu0
      %v1679 = vadd.f32 0.0, %v1678
      %v1680 = vpop.f32.mrb[0].mxu0
      %v1681 = vadd.f32 0.0, %v1680
      %1682 = vmatprep.mubr.bf16.mxu0 %v1344
      %1683 = vmatmul.mubr.bf16.gmra.mrb[0].mxu0 %v1343
      %v1684 = vpop.f32.mrb[0].mxu0
      %v1685 = vadd.f32 0.0, %v1684
      %v1686 = vpop.f32.mrb[0].mxu0
      %v1687 = vadd.f32 0.0, %v1686
      %v1688 = vpop.f32.mrb[0].mxu0
      %v1689 = vadd.f32 0.0, %v1688
      %v1690 = vpop.f32.mrb[0].mxu0
      %v1691 = vadd.f32 0.0, %v1690
      %1692 = vmatprep.mubr.bf16.mxu0 %v1346
      %1693 = vmatmul.mubr.bf16.gmra.mrb[0].mxu0 %v1345
      %v1694 = vpop.f32.mrb[0].mxu0
      %v1695 = vadd.f32 0.0, %v1694
      %v1696 = vpop.f32.mrb[0].mxu0
      %v1697 = vadd.f32 0.0, %v1696
      %v1698 = vpop.f32.mrb[0].mxu0
      %v1699 = vadd.f32 0.0, %v1698
      %v1700 = vpop.f32.mrb[0].mxu0
      %v1701 = vadd.f32 0.0, %v1700
      %1702 = vmatprep.mubr.bf16.mxu0 %v1348
      %1703 = vmatmul.mubr.bf16.gmra.mrb[0].mxu0 %v1347
      %v1704 = vpop.f32.mrb[0].mxu0
      %v1705 = vadd.f32 0.0, %v1704
      %v1706 = vpop.f32.mrb[0].mxu0
      %v1707 = vadd.f32 0.0, %v1706
      %v1708 = vpop.f32.mrb[0].mxu0
      %v1709 = vadd.f32 0.0, %v1708
      %v1710 = vpop.f32.mrb[0].mxu0
      %v1711 = vadd.f32 0.0, %v1710
      %1712 = vmatprep.mubr.bf16.mxu0 %v1350
      %1713 = vmatmul.mubr.bf16.gmra.mrb[0].mxu0 %v1349
      %v1714 = vpop.f32.mrb[0].mxu0
      %v1715 = vadd.f32 0.0, %v1714
      %v1716 = vpop.f32.mrb[0].mxu0
      %v1717 = vadd.f32 0.0, %v1716
      %v1718 = vpop.f32.mrb[0].mxu0
      %v1719 = vadd.f32 0.0, %v1718
      %v1720 = vpop.f32.mrb[0].mxu0
      %v1721 = vadd.f32 0.0, %v1720
      %1722 = vmatprep.mubr.bf16.mxu0 %v1352
      %1723 = vmatmul.mubr.bf16.gmra.mrb[0].mxu0 %v1351
      %v1724 = vpop.f32.mrb[0].mxu0
      %v1725 = vadd.f32 0.0, %v1724
      %v1726 = vpop.f32.mrb[0].mxu0
      %v1727 = vadd.f32 0.0, %v1726
      %v1728 = vpop.f32.mrb[0].mxu0
      %v1729 = vadd.f32 0.0, %v1728
      %v1730 = vpop.f32.mrb[0].mxu0
      %v1731 = vadd.f32 0.0, %v1730
      %1732 = vmatprep.mubr.bf16.mxu0 %v1354
      %1733 = vmatmul.mubr.bf16.gmra.mrb[0].mxu0 %v1353
      %v1734 = vpop.f32.mrb[0].mxu0
      %v1735 = vadd.f32 0.0, %v1734
      %v1736 = vpop.f32.mrb[0].mxu0
      %v1737 = vadd.f32 0.0, %v1736
      %v1738 = vpop.f32.mrb[0].mxu0
      %v1739 = vadd.f32 0.0, %v1738
      %v1740 = vpop.f32.mrb[0].mxu0
      %v1741 = vadd.f32 0.0, %v1740
      %1742 = vdwg.mxu0
      %v1743 = vpack.c.bf16 %v1589, %v1585
      %v1744 = vpack.c.bf16 %v1591, %v1587
      %v1745 = vpack.c.bf16 %v1599, %v1595
      %v1746 = vpack.c.bf16 %v1601, %v1597
      %v1747 = vpack.c.bf16 %v1609, %v1605
      %v1748 = vpack.c.bf16 %v1611, %v1607
      %v1749 = vpack.c.bf16 %v1619, %v1615
      %v1750 = vpack.c.bf16 %v1621, %v1617
      %v1751 = vpack.c.bf16 %v1629, %v1625
      %v1752 = vpack.c.bf16 %v1631, %v1627
      %v1753 = vpack.c.bf16 %v1639, %v1635
      %v1754 = vpack.c.bf16 %v1641, %v1637
      %v1755 = vpack.c.bf16 %v1649, %v1645
      %v1756 = vpack.c.bf16 %v1651, %v1647
      %v1757 = vpack.c.bf16 %v1659, %v1655
      %v1758 = vpack.c.bf16 %v1661, %v1657
      %v1759 = vpack.c.bf16 %v1669, %v1665
      %v1760 = vpack.c.bf16 %v1671, %v1667
      %v1761 = vpack.c.bf16 %v1679, %v1675
      %v1762 = vpack.c.bf16 %v1681, %v1677
      %v1763 = vpack.c.bf16 %v1689, %v1685
      %v1764 = vpack.c.bf16 %v1691, %v1687
      %v1765 = vpack.c.bf16 %v1699, %v1695
      %v1766 = vpack.c.bf16 %v1701, %v1697
      %v1767 = vpack.c.bf16 %v1709, %v1705
      %v1768 = vpack.c.bf16 %v1711, %v1707
      %v1769 = vpack.c.bf16 %v1719, %v1715
      %v1770 = vpack.c.bf16 %v1721, %v1717
      %v1771 = vpack.c.bf16 %v1729, %v1725
      %v1772 = vpack.c.bf16 %v1731, %v1727
      %v1773 = vpack.c.bf16 %v1739, %v1735
      %v1774 = vpack.c.bf16 %v1741, %v1737
      %v1777 = vunpack.c.l.s4 1966171168
      %v1778 = vunpack.c.0.s8 %v1777
      %v1779 = vlaneseq
      %v1780 = vshrl.u32 %v1779, 7
      %v1781 = vsub.s32 %v1778, %v1780
      %v1782 = vrot.slane %v1389, %v1781
      %v1783 = vcombine.high %v1782, %v1782
      %v1785 = vunpack.c.l.s4 1966171168
      %v1786 = vunpack.c.0.s8 %v1785
      %v1787 = vlaneseq
      %v1788 = vshrl.u32 %v1787, 7
      %v1789 = vsub.s32 %v1786, %v1788
      %v1790 = vrot.slane %v1782, %v1789
      %v1792 = vunpack.c.l.s4 1966171168
      %v1793 = vunpack.c.0.s8 %v1792
      %v1794 = vlaneseq
      %v1795 = vshrl.u32 %v1794, 7
      %v1796 = vsub.s32 %v1793, %v1795
      %v1797 = vrot.slane %v1783, %v1796
      %v1799 = vpack.i.b16 %v1790, %v1790
      %v1801 = vlaneseq
      %v1802 = vshrl.u32 %v1801, 7
      %v1803 = vsub.s32 0, %v1802
      %v1804 = vrot.slane %v1799, %v1803
      %v1806 = vpack.i.b16 %v1797, %v1797
      %v1808 = vlaneseq
      %v1809 = vshrl.u32 %v1808, 7
      %v1810 = vsub.s32 0, %v1809
      %v1811 = vrot.slane %v1806, %v1810
      %v1812 = vadd.bf16 %v1743, %v1804
      %v1813 = vadd.bf16 %v1744, %v1811
      %v1814 = vadd.bf16 %v1745, %v1804
      %v1815 = vadd.bf16 %v1746, %v1811
      %v1816 = vadd.bf16 %v1747, %v1804
      %v1817 = vadd.bf16 %v1748, %v1811
      %v1818 = vadd.bf16 %v1749, %v1804
      %v1819 = vadd.bf16 %v1750, %v1811
      %v1820 = vadd.bf16 %v1751, %v1804
      %v1821 = vadd.bf16 %v1752, %v1811
      %v1822 = vadd.bf16 %v1753, %v1804
      %v1823 = vadd.bf16 %v1754, %v1811
      %v1824 = vadd.bf16 %v1755, %v1804
      %v1825 = vadd.bf16 %v1756, %v1811
      %v1826 = vadd.bf16 %v1757, %v1804
      %v1827 = vadd.bf16 %v1758, %v1811
      %v1828 = vadd.bf16 %v1759, %v1804
      %v1829 = vadd.bf16 %v1760, %v1811
      %v1830 = vadd.bf16 %v1761, %v1804
      %v1831 = vadd.bf16 %v1762, %v1811
      %v1832 = vadd.bf16 %v1763, %v1804
      %v1833 = vadd.bf16 %v1764, %v1811
      %v1834 = vadd.bf16 %v1765, %v1804
      %v1835 = vadd.bf16 %v1766, %v1811
      %v1836 = vadd.bf16 %v1767, %v1804
      %v1837 = vadd.bf16 %v1768, %v1811
      %v1838 = vadd.bf16 %v1769, %v1804
      %v1839 = vadd.bf16 %v1770, %v1811
      %v1840 = vadd.bf16 %v1771, %v1804
      %v1841 = vadd.bf16 %v1772, %v1811
      %v1842 = vadd.bf16 %v1773, %v1804
      %v1843 = vadd.bf16 %v1774, %v1811
      %v1844 = vmul.bf16 %v1812, 1045249613
      %v1845 = vmul.bf16 %v1813, 1045249613
      %v1846 = vmul.bf16 %v1814, 1045249613
      %v1847 = vmul.bf16 %v1815, 1045249613
      %v1848 = vmul.bf16 %v1816, 1045249613
      %v1849 = vmul.bf16 %v1817, 1045249613
      %v1850 = vmul.bf16 %v1818, 1045249613
      %v1851 = vmul.bf16 %v1819, 1045249613
      %v1852 = vmul.bf16 %v1820, 1045249613
      %v1853 = vmul.bf16 %v1821, 1045249613
      %v1854 = vmul.bf16 %v1822, 1045249613
      %v1855 = vmul.bf16 %v1823, 1045249613
      %v1856 = vmul.bf16 %v1824, 1045249613
      %v1857 = vmul.bf16 %v1825, 1045249613
      %v1858 = vmul.bf16 %v1826, 1045249613
      %v1859 = vmul.bf16 %v1827, 1045249613
      %v1860 = vmul.bf16 %v1828, 1045249613
      %v1861 = vmul.bf16 %v1829, 1045249613
      %v1862 = vmul.bf16 %v1830, 1045249613
      %v1863 = vmul.bf16 %v1831, 1045249613
      %v1864 = vmul.bf16 %v1832, 1045249613
      %v1865 = vmul.bf16 %v1833, 1045249613
      %v1866 = vmul.bf16 %v1834, 1045249613
      %v1867 = vmul.bf16 %v1835, 1045249613
      %v1868 = vmul.bf16 %v1836, 1045249613
      %v1869 = vmul.bf16 %v1837, 1045249613
      %v1870 = vmul.bf16 %v1838, 1045249613
      %v1871 = vmul.bf16 %v1839, 1045249613
      %v1872 = vmul.bf16 %v1840, 1045249613
      %v1873 = vmul.bf16 %v1841, 1045249613
      %v1874 = vmul.bf16 %v1842, 1045249613
      %v1875 = vmul.bf16 %v1843, 1045249613
      %v1876 = vmax.bf16 %v1812, %v1844
      %v1877 = vmax.bf16 %v1813, %v1845
      %v1878 = vmax.bf16 %v1814, %v1846
      %v1879 = vmax.bf16 %v1815, %v1847
      %v1880 = vmax.bf16 %v1816, %v1848
      %v1881 = vmax.bf16 %v1817, %v1849
      %v1882 = vmax.bf16 %v1818, %v1850
      %v1883 = vmax.bf16 %v1819, %v1851
      %v1884 = vmax.bf16 %v1820, %v1852
      %v1885 = vmax.bf16 %v1821, %v1853
      %v1886 = vmax.bf16 %v1822, %v1854
      %v1887 = vmax.bf16 %v1823, %v1855
      %v1888 = vmax.bf16 %v1824, %v1856
      %v1889 = vmax.bf16 %v1825, %v1857
      %v1890 = vmax.bf16 %v1826, %v1858
      %v1891 = vmax.bf16 %v1827, %v1859
      %v1892 = vmax.bf16 %v1828, %v1860
      %v1893 = vmax.bf16 %v1829, %v1861
      %v1894 = vmax.bf16 %v1830, %v1862
      %v1895 = vmax.bf16 %v1831, %v1863
      %v1896 = vmax.bf16 %v1832, %v1864
      %v1897 = vmax.bf16 %v1833, %v1865
      %v1898 = vmax.bf16 %v1834, %v1866
      %v1899 = vmax.bf16 %v1835, %v1867
      %v1900 = vmax.bf16 %v1836, %v1868
      %v1901 = vmax.bf16 %v1837, %v1869
      %v1902 = vmax.bf16 %v1838, %v1870
      %v1903 = vmax.bf16 %v1839, %v1871
      %v1904 = vmax.bf16 %v1840, %v1872
      %v1905 = vmax.bf16 %v1841, %v1873
      %v1906 = vmax.bf16 %v1842, %v1874
      %v1907 = vmax.bf16 %v1843, %v1875
      %s1908 = scalar_lea.vmem %s3, 512
      %v1909 = vld [vmem:[%s1908] sm:$0xff]
      %v1910 = vld [vmem:[%s1908 + $0x8] sm:$0xff]
      %v1911 = vld [vmem:[%s1908 + $0x10] sm:$0xff]
      %v1912 = vld [vmem:[%s1908 + $0x18] sm:$0xff]
      %v1913 = vld [vmem:[%s1908 + $0x20] sm:$0xff]
      %v1914 = vld [vmem:[%s1908 + $0x28] sm:$0xff]
      %v1915 = vld [vmem:[%s1908 + $0x30] sm:$0xff]
      %v1916 = vld [vmem:[%s1908 + $0x38] sm:$0xff]
      %v1917 = vld [vmem:[%s1908 + $0x40] sm:$0xff]
      %v1918 = vld [vmem:[%s1908 + $0x48] sm:$0xff]
      %v1919 = vld [vmem:[%s1908 + $0x50] sm:$0xff]
      %v1920 = vld [vmem:[%s1908 + $0x58] sm:$0xff]
      %v1921 = vld [vmem:[%s1908 + $0x60] sm:$0xff]
      %v1922 = vld [vmem:[%s1908 + $0x68] sm:$0xff]
      %v1923 = vld [vmem:[%s1908 + $0x70] sm:$0xff]
      %v1924 = vld [vmem:[%s1908 + $0x78] sm:$0xff]
      %v1925 = vld [vmem:[%s1908 + $0x80] sm:$0xff]
      %v1926 = vld [vmem:[%s1908 + $0x88] sm:$0xff]
      %v1927 = vld [vmem:[%s1908 + $0x90] sm:$0xff]
      %v1928 = vld [vmem:[%s1908 + $0x98] sm:$0xff]
      %v1929 = vld [vmem:[%s1908 + $0xa0] sm:$0xff]
      %v1930 = vld [vmem:[%s1908 + $0xa8] sm:$0xff]
      %v1931 = vld [vmem:[%s1908 + $0xb0] sm:$0xff]
      %v1932 = vld [vmem:[%s1908 + $0xb8] sm:$0xff]
      %v1933 = vld [vmem:[%s1908 + $0xc0] sm:$0xff]
      %v1934 = vld [vmem:[%s1908 + $0xc8] sm:$0xff]
      %v1935 = vld [vmem:[%s1908 + $0xd0] sm:$0xff]
      %v1936 = vld [vmem:[%s1908 + $0xd8] sm:$0xff]
      %v1937 = vld [vmem:[%s1908 + $0xe0] sm:$0xff]
      %v1938 = vld [vmem:[%s1908 + $0xe8] sm:$0xff]
      %v1939 = vld [vmem:[%s1908 + $0xf0] sm:$0xff]
      %v1940 = vld [vmem:[%s1908 + $0xf8] sm:$0xff]
      %s1941 = scalar_lea.vmem %s4, 4
      %v1942 = vld [vmem:[%s1941] sm:$0x3]
      %v1975 = vunpack.c.l.b16 %v1909
      %v1976 = vunpack.c.h.b16 %v1909
      %v1977 = vunpack.c.l.b16 %v1910
      %v1978 = vunpack.c.h.b16 %v1910
      %v1979 = vunpack.c.l.b16 %v1911
      %v1980 = vunpack.c.h.b16 %v1911
      %v1981 = vunpack.c.l.b16 %v1912
      %v1982 = vunpack.c.h.b16 %v1912
      %v1983 = vunpack.c.l.b16 %v1913
      %v1984 = vunpack.c.h.b16 %v1913
      %v1985 = vunpack.c.l.b16 %v1914
      %v1986 = vunpack.c.h.b16 %v1914
      %v1987 = vunpack.c.l.b16 %v1915
      %v1988 = vunpack.c.h.b16 %v1915
      %v1989 = vunpack.c.l.b16 %v1916
      %v1990 = vunpack.c.h.b16 %v1916
      %v1991 = vunpack.c.l.b16 %v1917
      %v1992 = vunpack.c.h.b16 %v1917
      %v1993 = vunpack.c.l.b16 %v1918
      %v1994 = vunpack.c.h.b16 %v1918
      %v1995 = vunpack.c.l.b16 %v1919
      %v1996 = vunpack.c.h.b16 %v1919
      %v1997 = vunpack.c.l.b16 %v1920
      %v1998 = vunpack.c.h.b16 %v1920
      %v1999 = vunpack.c.l.b16 %v1921
      %v2000 = vunpack.c.h.b16 %v1921
      %v2001 = vunpack.c.l.b16 %v1922
      %v2002 = vunpack.c.h.b16 %v1922
      %v2003 = vunpack.c.l.b16 %v1923
      %v2004 = vunpack.c.h.b16 %v1923
      %v2005 = vunpack.c.l.b16 %v1924
      %v2006 = vunpack.c.h.b16 %v1924
      %v2007 = vunpack.c.l.b16 %v1925
      %v2008 = vunpack.c.h.b16 %v1925
      %v2009 = vunpack.c.l.b16 %v1926
      %v2010 = vunpack.c.h.b16 %v1926
      %v2011 = vunpack.c.l.b16 %v1927
      %v2012 = vunpack.c.h.b16 %v1927
      %v2013 = vunpack.c.l.b16 %v1928
      %v2014 = vunpack.c.h.b16 %v1928
      %v2015 = vunpack.c.l.b16 %v1929
      %v2016 = vunpack.c.h.b16 %v1929
      %v2017 = vunpack.c.l.b16 %v1930
      %v2018 = vunpack.c.h.b16 %v1930
      %v2019 = vunpack.c.l.b16 %v1931
      %v2020 = vunpack.c.h.b16 %v1931
      %v2021 = vunpack.c.l.b16 %v1932
      %v2022 = vunpack.c.h.b16 %v1932
      %v2023 = vunpack.c.l.b16 %v1933
      %v2024 = vunpack.c.h.b16 %v1933
      %v2025 = vunpack.c.l.b16 %v1934
      %v2026 = vunpack.c.h.b16 %v1934
      %v2027 = vunpack.c.l.b16 %v1935
      %v2028 = vunpack.c.h.b16 %v1935
      %v2029 = vunpack.c.l.b16 %v1936
      %v2030 = vunpack.c.h.b16 %v1936
      %v2031 = vunpack.c.l.b16 %v1937
      %v2032 = vunpack.c.h.b16 %v1937
      %v2033 = vunpack.c.l.b16 %v1938
      %v2034 = vunpack.c.h.b16 %v1938
      %v2035 = vunpack.c.l.b16 %v1939
      %v2036 = vunpack.c.h.b16 %v1939
      %v2037 = vunpack.c.l.b16 %v1940
      %v2038 = vunpack.c.h.b16 %v1940
      %v2039 = vpack.c.b16 %v1977, %v1975
      %v2040 = vpack.c.b16 %v1978, %v1976
      %v2041 = vpack.c.b16 %v1981, %v1979
      %v2042 = vpack.c.b16 %v1982, %v1980
      %v2043 = vpack.c.b16 %v1985, %v1983
      %v2044 = vpack.c.b16 %v1986, %v1984
      %v2045 = vpack.c.b16 %v1989, %v1987
      %v2046 = vpack.c.b16 %v1990, %v1988
      %v2047 = vpack.c.b16 %v1993, %v1991
      %v2048 = vpack.c.b16 %v1994, %v1992
      %v2049 = vpack.c.b16 %v1997, %v1995
      %v2050 = vpack.c.b16 %v1998, %v1996
      %v2051 = vpack.c.b16 %v2001, %v1999
      %v2052 = vpack.c.b16 %v2002, %v2000
      %v2053 = vpack.c.b16 %v2005, %v2003
      %v2054 = vpack.c.b16 %v2006, %v2004
      %v2055 = vpack.c.b16 %v2009, %v2007
      %v2056 = vpack.c.b16 %v2010, %v2008
      %v2057 = vpack.c.b16 %v2013, %v2011
      %v2058 = vpack.c.b16 %v2014, %v2012
      %v2059 = vpack.c.b16 %v2017, %v2015
      %v2060 = vpack.c.b16 %v2018, %v2016
      %v2061 = vpack.c.b16 %v2021, %v2019
      %v2062 = vpack.c.b16 %v2022, %v2020
      %v2063 = vpack.c.b16 %v2025, %v2023
      %v2064 = vpack.c.b16 %v2026, %v2024
      %v2065 = vpack.c.b16 %v2029, %v2027
      %v2066 = vpack.c.b16 %v2030, %v2028
      %v2067 = vpack.c.b16 %v2033, %v2031
      %v2068 = vpack.c.b16 %v2034, %v2032
      %v2069 = vpack.c.b16 %v2037, %v2035
      %v2070 = vpack.c.b16 %v2038, %v2036
      %2103 = vmatprep.subr.bf16.mxu0 %v2040
      %2104 = vmatpush1.bf16.msra.mxu0 %v2039
      %2105 = vmatprep.subr.bf16.mxu0 %v2042
      %2106 = vmatpush1.bf16.msra.mxu0 %v2041
      %2107 = vmatprep.subr.bf16.mxu0 %v2044
      %2108 = vmatpush1.bf16.msra.mxu0 %v2043
      %2109 = vmatprep.subr.bf16.mxu0 %v2046
      %2110 = vmatpush1.bf16.msra.mxu0 %v2045
      %2111 = vmatprep.subr.bf16.mxu0 %v2048
      %2112 = vmatpush1.bf16.msra.mxu0 %v2047
      %2113 = vmatprep.subr.bf16.mxu0 %v2050
      %2114 = vmatpush1.bf16.msra.mxu0 %v2049
      %2115 = vmatprep.subr.bf16.mxu0 %v2052
      %2116 = vmatpush1.bf16.msra.mxu0 %v2051
      %2117 = vmatprep.subr.bf16.mxu0 %v2054
      %2118 = vmatpush1.bf16.msra.mxu0 %v2053
      %2119 = vmatprep.subr.bf16.mxu0 %v2056
      %2120 = vmatpush1.bf16.msra.mxu0 %v2055
      %2121 = vmatprep.subr.bf16.mxu0 %v2058
      %2122 = vmatpush1.bf16.msra.mxu0 %v2057
      %2123 = vmatprep.subr.bf16.mxu0 %v2060
      %2124 = vmatpush1.bf16.msra.mxu0 %v2059
      %2125 = vmatprep.subr.bf16.mxu0 %v2062
      %2126 = vmatpush1.bf16.msra.mxu0 %v2061
      %2127 = vmatprep.subr.bf16.mxu0 %v2064
      %2128 = vmatpush1.bf16.msra.mxu0 %v2063
      %2129 = vmatprep.subr.bf16.mxu0 %v2066
      %2130 = vmatpush1.bf16.msra.mxu0 %v2065
      %2131 = vmatprep.subr.bf16.mxu0 %v2068
      %2132 = vmatpush1.bf16.msra.mxu0 %v2067
      %2133 = vmatprep.subr.bf16.mxu0 %v2070
      %2134 = vmatpush1.bf16.msra.mxu0 %v2069
      %2135 = vmatprep.mubr.bf16.mxu0 %v1877
      %2136 = vmatmul.mubr.bf16.gmra.mrb[0].mxu0 %v1876
      %v2137 = vpop.f32.mrb[0].mxu0
      %v2138 = vadd.f32 0.0, %v2137
      %v2139 = vpop.f32.mrb[0].mxu0
      %v2140 = vadd.f32 0.0, %v2139
      %v2141 = vpop.f32.mrb[0].mxu0
      %v2142 = vadd.f32 0.0, %v2141
      %v2143 = vpop.f32.mrb[0].mxu0
      %v2144 = vadd.f32 0.0, %v2143
      %2145 = vmatprep.mubr.bf16.mxu0 %v1879
      %2146 = vmatmul.mubr.bf16.gmra.mrb[0].mxu0 %v1878
      %v2147 = vpop.f32.mrb[0].mxu0
      %v2148 = vadd.f32 0.0, %v2147
      %v2149 = vpop.f32.mrb[0].mxu0
      %v2150 = vadd.f32 0.0, %v2149
      %v2151 = vpop.f32.mrb[0].mxu0
      %v2152 = vadd.f32 0.0, %v2151
      %v2153 = vpop.f32.mrb[0].mxu0
      %v2154 = vadd.f32 0.0, %v2153
      %2155 = vmatprep.mubr.bf16.mxu0 %v1881
      %2156 = vmatmul.mubr.bf16.gmra.mrb[0].mxu0 %v1880
      %v2157 = vpop.f32.mrb[0].mxu0
      %v2158 = vadd.f32 0.0, %v2157
      %v2159 = vpop.f32.mrb[0].mxu0
      %v2160 = vadd.f32 0.0, %v2159
      %v2161 = vpop.f32.mrb[0].mxu0
      %v2162 = vadd.f32 0.0, %v2161
      %v2163 = vpop.f32.mrb[0].mxu0
      %v2164 = vadd.f32 0.0, %v2163
      %2165 = vmatprep.mubr.bf16.mxu0 %v1883
      %2166 = vmatmul.mubr.bf16.gmra.mrb[0].mxu0 %v1882
      %v2167 = vpop.f32.mrb[0].mxu0
      %v2168 = vadd.f32 0.0, %v2167
      %v2169 = vpop.f32.mrb[0].mxu0
      %v2170 = vadd.f32 0.0, %v2169
      %v2171 = vpop.f32.mrb[0].mxu0
      %v2172 = vadd.f32 0.0, %v2171
      %v2173 = vpop.f32.mrb[0].mxu0
      %v2174 = vadd.f32 0.0, %v2173
      %2175 = vmatprep.mubr.bf16.mxu0 %v1885
      %2176 = vmatmul.mubr.bf16.gmra.mrb[0].mxu0 %v1884
      %v2177 = vpop.f32.mrb[0].mxu0
      %v2178 = vadd.f32 0.0, %v2177
      %v2179 = vpop.f32.mrb[0].mxu0
      %v2180 = vadd.f32 0.0, %v2179
      %v2181 = vpop.f32.mrb[0].mxu0
      %v2182 = vadd.f32 0.0, %v2181
      %v2183 = vpop.f32.mrb[0].mxu0
      %v2184 = vadd.f32 0.0, %v2183
      %2185 = vmatprep.mubr.bf16.mxu0 %v1887
      %2186 = vmatmul.mubr.bf16.gmra.mrb[0].mxu0 %v1886
      %v2187 = vpop.f32.mrb[0].mxu0
      %v2188 = vadd.f32 0.0, %v2187
      %v2189 = vpop.f32.mrb[0].mxu0
      %v2190 = vadd.f32 0.0, %v2189
      %v2191 = vpop.f32.mrb[0].mxu0
      %v2192 = vadd.f32 0.0, %v2191
      %v2193 = vpop.f32.mrb[0].mxu0
      %v2194 = vadd.f32 0.0, %v2193
      %2195 = vmatprep.mubr.bf16.mxu0 %v1889
      %2196 = vmatmul.mubr.bf16.gmra.mrb[0].mxu0 %v1888
      %v2197 = vpop.f32.mrb[0].mxu0
      %v2198 = vadd.f32 0.0, %v2197
      %v2199 = vpop.f32.mrb[0].mxu0
      %v2200 = vadd.f32 0.0, %v2199
      %v2201 = vpop.f32.mrb[0].mxu0
      %v2202 = vadd.f32 0.0, %v2201
      %v2203 = vpop.f32.mrb[0].mxu0
      %v2204 = vadd.f32 0.0, %v2203
      %2205 = vmatprep.mubr.bf16.mxu0 %v1891
      %2206 = vmatmul.mubr.bf16.gmra.mrb[0].mxu0 %v1890
      %v2207 = vpop.f32.mrb[0].mxu0
      %v2208 = vadd.f32 0.0, %v2207
      %v2209 = vpop.f32.mrb[0].mxu0
      %v2210 = vadd.f32 0.0, %v2209
      %v2211 = vpop.f32.mrb[0].mxu0
      %v2212 = vadd.f32 0.0, %v2211
      %v2213 = vpop.f32.mrb[0].mxu0
      %v2214 = vadd.f32 0.0, %v2213
      %2215 = vmatprep.mubr.bf16.mxu0 %v1893
      %2216 = vmatmul.mubr.bf16.gmra.mrb[0].mxu0 %v1892
      %v2217 = vpop.f32.mrb[0].mxu0
      %v2218 = vadd.f32 0.0, %v2217
      %v2219 = vpop.f32.mrb[0].mxu0
      %v2220 = vadd.f32 0.0, %v2219
      %v2221 = vpop.f32.mrb[0].mxu0
      %v2222 = vadd.f32 0.0, %v2221
      %v2223 = vpop.f32.mrb[0].mxu0
      %v2224 = vadd.f32 0.0, %v2223
      %2225 = vmatprep.mubr.bf16.mxu0 %v1895
      %2226 = vmatmul.mubr.bf16.gmra.mrb[0].mxu0 %v1894
      %v2227 = vpop.f32.mrb[0].mxu0
      %v2228 = vadd.f32 0.0, %v2227
      %v2229 = vpop.f32.mrb[0].mxu0
      %v2230 = vadd.f32 0.0, %v2229
      %v2231 = vpop.f32.mrb[0].mxu0
      %v2232 = vadd.f32 0.0, %v2231
      %v2233 = vpop.f32.mrb[0].mxu0
      %v2234 = vadd.f32 0.0, %v2233
      %2235 = vmatprep.mubr.bf16.mxu0 %v1897
      %2236 = vmatmul.mubr.bf16.gmra.mrb[0].mxu0 %v1896
      %v2237 = vpop.f32.mrb[0].mxu0
      %v2238 = vadd.f32 0.0, %v2237
      %v2239 = vpop.f32.mrb[0].mxu0
      %v2240 = vadd.f32 0.0, %v2239
      %v2241 = vpop.f32.mrb[0].mxu0
      %v2242 = vadd.f32 0.0, %v2241
      %v2243 = vpop.f32.mrb[0].mxu0
      %v2244 = vadd.f32 0.0, %v2243
      %2245 = vmatprep.mubr.bf16.mxu0 %v1899
      %2246 = vmatmul.mubr.bf16.gmra.mrb[0].mxu0 %v1898
      %v2247 = vpop.f32.mrb[0].mxu0
      %v2248 = vadd.f32 0.0, %v2247
      %v2249 = vpop.f32.mrb[0].mxu0
      %v2250 = vadd.f32 0.0, %v2249
      %v2251 = vpop.f32.mrb[0].mxu0
      %v2252 = vadd.f32 0.0, %v2251
      %v2253 = vpop.f32.mrb[0].mxu0
      %v2254 = vadd.f32 0.0, %v2253
      %2255 = vmatprep.mubr.bf16.mxu0 %v1901
      %2256 = vmatmul.mubr.bf16.gmra.mrb[0].mxu0 %v1900
      %v2257 = vpop.f32.mrb[0].mxu0
      %v2258 = vadd.f32 0.0, %v2257
      %v2259 = vpop.f32.mrb[0].mxu0
      %v2260 = vadd.f32 0.0, %v2259
      %v2261 = vpop.f32.mrb[0].mxu0
      %v2262 = vadd.f32 0.0, %v2261
      %v2263 = vpop.f32.mrb[0].mxu0
      %v2264 = vadd.f32 0.0, %v2263
      %2265 = vmatprep.mubr.bf16.mxu0 %v1903
      %2266 = vmatmul.mubr.bf16.gmra.mrb[0].mxu0 %v1902
      %v2267 = vpop.f32.mrb[0].mxu0
      %v2268 = vadd.f32 0.0, %v2267
      %v2269 = vpop.f32.mrb[0].mxu0
      %v2270 = vadd.f32 0.0, %v2269
      %v2271 = vpop.f32.mrb[0].mxu0
      %v2272 = vadd.f32 0.0, %v2271
      %v2273 = vpop.f32.mrb[0].mxu0
      %v2274 = vadd.f32 0.0, %v2273
      %2275 = vmatprep.mubr.bf16.mxu0 %v1905
      %2276 = vmatmul.mubr.bf16.gmra.mrb[0].mxu0 %v1904
      %v2277 = vpop.f32.mrb[0].mxu0
      %v2278 = vadd.f32 0.0, %v2277
      %v2279 = vpop.f32.mrb[0].mxu0
      %v2280 = vadd.f32 0.0, %v2279
      %v2281 = vpop.f32.mrb[0].mxu0
      %v2282 = vadd.f32 0.0, %v2281
      %v2283 = vpop.f32.mrb[0].mxu0
      %v2284 = vadd.f32 0.0, %v2283
      %2285 = vmatprep.mubr.bf16.mxu0 %v1907
      %2286 = vmatmul.mubr.bf16.gmra.mrb[0].mxu0 %v1906
      %v2287 = vpop.f32.mrb[0].mxu0
      %v2288 = vadd.f32 0.0, %v2287
      %v2289 = vpop.f32.mrb[0].mxu0
      %v2290 = vadd.f32 0.0, %v2289
      %v2291 = vpop.f32.mrb[0].mxu0
      %v2292 = vadd.f32 0.0, %v2291
      %v2293 = vpop.f32.mrb[0].mxu0
      %v2294 = vadd.f32 0.0, %v2293
      %2295 = vdwg.mxu0
      %v2296 = vpack.c.bf16 %v2142, %v2138
      %v2297 = vpack.c.bf16 %v2144, %v2140
      %v2298 = vpack.c.bf16 %v2152, %v2148
      %v2299 = vpack.c.bf16 %v2154, %v2150
      %v2300 = vpack.c.bf16 %v2162, %v2158
      %v2301 = vpack.c.bf16 %v2164, %v2160
      %v2302 = vpack.c.bf16 %v2172, %v2168
      %v2303 = vpack.c.bf16 %v2174, %v2170
      %v2304 = vpack.c.bf16 %v2182, %v2178
      %v2305 = vpack.c.bf16 %v2184, %v2180
      %v2306 = vpack.c.bf16 %v2192, %v2188
      %v2307 = vpack.c.bf16 %v2194, %v2190
      %v2308 = vpack.c.bf16 %v2202, %v2198
      %v2309 = vpack.c.bf16 %v2204, %v2200
      %v2310 = vpack.c.bf16 %v2212, %v2208
      %v2311 = vpack.c.bf16 %v2214, %v2210
      %v2312 = vpack.c.bf16 %v2222, %v2218
      %v2313 = vpack.c.bf16 %v2224, %v2220
      %v2314 = vpack.c.bf16 %v2232, %v2228
      %v2315 = vpack.c.bf16 %v2234, %v2230
      %v2316 = vpack.c.bf16 %v2242, %v2238
      %v2317 = vpack.c.bf16 %v2244, %v2240
      %v2318 = vpack.c.bf16 %v2252, %v2248
      %v2319 = vpack.c.bf16 %v2254, %v2250
      %v2320 = vpack.c.bf16 %v2262, %v2258
      %v2321 = vpack.c.bf16 %v2264, %v2260
      %v2322 = vpack.c.bf16 %v2272, %v2268
      %v2323 = vpack.c.bf16 %v2274, %v2270
      %v2324 = vpack.c.bf16 %v2282, %v2278
      %v2325 = vpack.c.bf16 %v2284, %v2280
      %v2326 = vpack.c.bf16 %v2292, %v2288
      %v2327 = vpack.c.bf16 %v2294, %v2290
      %v2330 = vunpack.c.l.s4 1966171168
      %v2331 = vunpack.c.0.s8 %v2330
      %v2332 = vlaneseq
      %v2333 = vshrl.u32 %v2332, 7
      %v2334 = vsub.s32 %v2331, %v2333
      %v2335 = vrot.slane %v1942, %v2334
      %v2336 = vcombine.high %v2335, %v2335
      %v2338 = vunpack.c.l.s4 1966171168
      %v2339 = vunpack.c.0.s8 %v2338
      %v2340 = vlaneseq
      %v2341 = vshrl.u32 %v2340, 7
      %v2342 = vsub.s32 %v2339, %v2341
      %v2343 = vrot.slane %v2335, %v2342
      %v2345 = vunpack.c.l.s4 1966171168
      %v2346 = vunpack.c.0.s8 %v2345
      %v2347 = vlaneseq
      %v2348 = vshrl.u32 %v2347, 7
      %v2349 = vsub.s32 %v2346, %v2348
      %v2350 = vrot.slane %v2336, %v2349
      %v2352 = vpack.i.b16 %v2343, %v2343
      %v2354 = vlaneseq
      %v2355 = vshrl.u32 %v2354, 7
      %v2356 = vsub.s32 0, %v2355
      %v2357 = vrot.slane %v2352, %v2356
      %v2359 = vpack.i.b16 %v2350, %v2350
      %v2361 = vlaneseq
      %v2362 = vshrl.u32 %v2361, 7
      %v2363 = vsub.s32 0, %v2362
      %v2364 = vrot.slane %v2359, %v2363
      %v2365 = vadd.bf16 %v2296, %v2357
      %v2366 = vadd.bf16 %v2297, %v2364
      %v2367 = vadd.bf16 %v2298, %v2357
      %v2368 = vadd.bf16 %v2299, %v2364
      %v2369 = vadd.bf16 %v2300, %v2357
      %v2370 = vadd.bf16 %v2301, %v2364
      %v2371 = vadd.bf16 %v2302, %v2357
      %v2372 = vadd.bf16 %v2303, %v2364
      %v2373 = vadd.bf16 %v2304, %v2357
      %v2374 = vadd.bf16 %v2305, %v2364
      %v2375 = vadd.bf16 %v2306, %v2357
      %v2376 = vadd.bf16 %v2307, %v2364
      %v2377 = vadd.bf16 %v2308, %v2357
      %v2378 = vadd.bf16 %v2309, %v2364
      %v2379 = vadd.bf16 %v2310, %v2357
      %v2380 = vadd.bf16 %v2311, %v2364
      %v2381 = vadd.bf16 %v2312, %v2357
      %v2382 = vadd.bf16 %v2313, %v2364
      %v2383 = vadd.bf16 %v2314, %v2357
      %v2384 = vadd.bf16 %v2315, %v2364
      %v2385 = vadd.bf16 %v2316, %v2357
      %v2386 = vadd.bf16 %v2317, %v2364
      %v2387 = vadd.bf16 %v2318, %v2357
      %v2388 = vadd.bf16 %v2319, %v2364
      %v2389 = vadd.bf16 %v2320, %v2357
      %v2390 = vadd.bf16 %v2321, %v2364
      %v2391 = vadd.bf16 %v2322, %v2357
      %v2392 = vadd.bf16 %v2323, %v2364
      %v2393 = vadd.bf16 %v2324, %v2357
      %v2394 = vadd.bf16 %v2325, %v2364
      %v2395 = vadd.bf16 %v2326, %v2357
      %v2396 = vadd.bf16 %v2327, %v2364
      %v2397 = vmul.bf16 %v2365, 1045249613
      %v2398 = vmul.bf16 %v2366, 1045249613
      %v2399 = vmul.bf16 %v2367, 1045249613
      %v2400 = vmul.bf16 %v2368, 1045249613
      %v2401 = vmul.bf16 %v2369, 1045249613
      %v2402 = vmul.bf16 %v2370, 1045249613
      %v2403 = vmul.bf16 %v2371, 1045249613
      %v2404 = vmul.bf16 %v2372, 1045249613
      %v2405 = vmul.bf16 %v2373, 1045249613
      %v2406 = vmul.bf16 %v2374, 1045249613
      %v2407 = vmul.bf16 %v2375, 1045249613
      %v2408 = vmul.bf16 %v2376, 1045249613
      %v2409 = vmul.bf16 %v2377, 1045249613
      %v2410 = vmul.bf16 %v2378, 1045249613
      %v2411 = vmul.bf16 %v2379, 1045249613
      %v2412 = vmul.bf16 %v2380, 1045249613
      %v2413 = vmul.bf16 %v2381, 1045249613
      %v2414 = vmul.bf16 %v2382, 1045249613
      %v2415 = vmul.bf16 %v2383, 1045249613
      %v2416 = vmul.bf16 %v2384, 1045249613
      %v2417 = vmul.bf16 %v2385, 1045249613
      %v2418 = vmul.bf16 %v2386, 1045249613
      %v2419 = vmul.bf16 %v2387, 1045249613
      %v2420 = vmul.bf16 %v2388, 1045249613
      %v2421 = vmul.bf16 %v2389, 1045249613
      %v2422 = vmul.bf16 %v2390, 1045249613
      %v2423 = vmul.bf16 %v2391, 1045249613
      %v2424 = vmul.bf16 %v2392, 1045249613
      %v2425 = vmul.bf16 %v2393, 1045249613
      %v2426 = vmul.bf16 %v2394, 1045249613
      %v2427 = vmul.bf16 %v2395, 1045249613
      %v2428 = vmul.bf16 %v2396, 1045249613
      %v2429 = vmax.bf16 %v2365, %v2397
      %v2430 = vmax.bf16 %v2366, %v2398
      %v2431 = vmax.bf16 %v2367, %v2399
      %v2432 = vmax.bf16 %v2368, %v2400
      %v2433 = vmax.bf16 %v2369, %v2401
      %v2434 = vmax.bf16 %v2370, %v2402
      %v2435 = vmax.bf16 %v2371, %v2403
      %v2436 = vmax.bf16 %v2372, %v2404
      %v2437 = vmax.bf16 %v2373, %v2405
      %v2438 = vmax.bf16 %v2374, %v2406
      %v2439 = vmax.bf16 %v2375, %v2407
      %v2440 = vmax.bf16 %v2376, %v2408
      %v2441 = vmax.bf16 %v2377, %v2409
      %v2442 = vmax.bf16 %v2378, %v2410
      %v2443 = vmax.bf16 %v2379, %v2411
      %v2444 = vmax.bf16 %v2380, %v2412
      %v2445 = vmax.bf16 %v2381, %v2413
      %v2446 = vmax.bf16 %v2382, %v2414
      %v2447 = vmax.bf16 %v2383, %v2415
      %v2448 = vmax.bf16 %v2384, %v2416
      %v2449 = vmax.bf16 %v2385, %v2417
      %v2450 = vmax.bf16 %v2386, %v2418
      %v2451 = vmax.bf16 %v2387, %v2419
      %v2452 = vmax.bf16 %v2388, %v2420
      %v2453 = vmax.bf16 %v2389, %v2421
      %v2454 = vmax.bf16 %v2390, %v2422
      %v2455 = vmax.bf16 %v2391, %v2423
      %v2456 = vmax.bf16 %v2392, %v2424
      %v2457 = vmax.bf16 %v2393, %v2425
      %v2458 = vmax.bf16 %v2394, %v2426
      %v2459 = vmax.bf16 %v2395, %v2427
      %v2460 = vmax.bf16 %v2396, %v2428
      %v2461 = vld [vmem:[%s5] sm:$0xf]
      %v2462 = vld [vmem:[%s5 + $0x4] sm:$0xf]
      %v2463 = vld [vmem:[%s5 + $0x8] sm:$0xf]
      %v2464 = vld [vmem:[%s5 + $0xc] sm:$0xf]
      %v2465 = vld [vmem:[%s5 + $0x10] sm:$0xf]
      %v2466 = vld [vmem:[%s5 + $0x14] sm:$0xf]
      %v2467 = vld [vmem:[%s5 + $0x18] sm:$0xf]
      %v2468 = vld [vmem:[%s5 + $0x1c] sm:$0xf]
      %v2469 = vld [vmem:[%s5 + $0x20] sm:$0xf]
      %v2470 = vld [vmem:[%s5 + $0x24] sm:$0xf]
      %v2471 = vld [vmem:[%s5 + $0x28] sm:$0xf]
      %v2472 = vld [vmem:[%s5 + $0x2c] sm:$0xf]
      %v2473 = vld [vmem:[%s5 + $0x30] sm:$0xf]
      %v2474 = vld [vmem:[%s5 + $0x34] sm:$0xf]
      %v2475 = vld [vmem:[%s5 + $0x38] sm:$0xf]
      %v2476 = vld [vmem:[%s5 + $0x3c] sm:$0xf]
      %v2477 = vld [vmem:[%s5 + $0x40] sm:$0xf]
      %v2478 = vld [vmem:[%s5 + $0x44] sm:$0xf]
      %v2479 = vld [vmem:[%s5 + $0x48] sm:$0xf]
      %v2480 = vld [vmem:[%s5 + $0x4c] sm:$0xf]
      %v2481 = vld [vmem:[%s5 + $0x50] sm:$0xf]
      %v2482 = vld [vmem:[%s5 + $0x54] sm:$0xf]
      %v2483 = vld [vmem:[%s5 + $0x58] sm:$0xf]
      %v2484 = vld [vmem:[%s5 + $0x5c] sm:$0xf]
      %v2485 = vld [vmem:[%s5 + $0x60] sm:$0xf]
      %v2486 = vld [vmem:[%s5 + $0x64] sm:$0xf]
      %v2487 = vld [vmem:[%s5 + $0x68] sm:$0xf]
      %v2488 = vld [vmem:[%s5 + $0x6c] sm:$0xf]
      %v2489 = vld [vmem:[%s5 + $0x70] sm:$0xf]
      %v2490 = vld [vmem:[%s5 + $0x74] sm:$0xf]
      %v2491 = vld [vmem:[%s5 + $0x78] sm:$0xf]
      %v2492 = vld [vmem:[%s5 + $0x7c] sm:$0xf]
      %v2525 = vunpack.c.l.b16 %v2461
      %v2526 = vunpack.c.l.b16 %v2462
      %v2527 = vunpack.c.l.b16 %v2463
      %v2528 = vunpack.c.l.b16 %v2464
      %v2529 = vunpack.c.l.b16 %v2465
      %v2530 = vunpack.c.l.b16 %v2466
      %v2531 = vunpack.c.l.b16 %v2467
      %v2532 = vunpack.c.l.b16 %v2468
      %v2533 = vunpack.c.l.b16 %v2469
      %v2534 = vunpack.c.l.b16 %v2470
      %v2535 = vunpack.c.l.b16 %v2471
      %v2536 = vunpack.c.l.b16 %v2472
      %v2537 = vunpack.c.l.b16 %v2473
      %v2538 = vunpack.c.l.b16 %v2474
      %v2539 = vunpack.c.l.b16 %v2475
      %v2540 = vunpack.c.l.b16 %v2476
      %v2541 = vunpack.c.l.b16 %v2477
      %v2542 = vunpack.c.l.b16 %v2478
      %v2543 = vunpack.c.l.b16 %v2479
      %v2544 = vunpack.c.l.b16 %v2480
      %v2545 = vunpack.c.l.b16 %v2481
      %v2546 = vunpack.c.l.b16 %v2482
      %v2547 = vunpack.c.l.b16 %v2483
      %v2548 = vunpack.c.l.b16 %v2484
      %v2549 = vunpack.c.l.b16 %v2485
      %v2550 = vunpack.c.l.b16 %v2486
      %v2551 = vunpack.c.l.b16 %v2487
      %v2552 = vunpack.c.l.b16 %v2488
      %v2553 = vunpack.c.l.b16 %v2489
      %v2554 = vunpack.c.l.b16 %v2490
      %v2555 = vunpack.c.l.b16 %v2491
      %v2556 = vunpack.c.l.b16 %v2492
      %v2557 = vpack.c.b16 %v2526, %v2525
      %v2558 = vpack.c.b16 %v2528, %v2527
      %v2559 = vpack.c.b16 %v2530, %v2529
      %v2560 = vpack.c.b16 %v2532, %v2531
      %v2561 = vpack.c.b16 %v2534, %v2533
      %v2562 = vpack.c.b16 %v2536, %v2535
      %v2563 = vpack.c.b16 %v2538, %v2537
      %v2564 = vpack.c.b16 %v2540, %v2539
      %v2565 = vpack.c.b16 %v2542, %v2541
      %v2566 = vpack.c.b16 %v2544, %v2543
      %v2567 = vpack.c.b16 %v2546, %v2545
      %v2568 = vpack.c.b16 %v2548, %v2547
      %v2569 = vpack.c.b16 %v2550, %v2549
      %v2570 = vpack.c.b16 %v2552, %v2551
      %v2571 = vpack.c.b16 %v2554, %v2553
      %v2572 = vpack.c.b16 %v2556, %v2555
      %2589 = vmatprep.subr.bf16.mxu0 0
      %2590 = vmatpush1.bf16.msra.mxu0 %v2557
      %2591 = vmatprep.subr.bf16.mxu0 0
      %2592 = vmatpush1.bf16.msra.mxu0 %v2558
      %2593 = vmatprep.subr.bf16.mxu0 0
      %2594 = vmatpush1.bf16.msra.mxu0 %v2559
      %2595 = vmatprep.subr.bf16.mxu0 0
      %2596 = vmatpush1.bf16.msra.mxu0 %v2560
      %2597 = vmatprep.subr.bf16.mxu0 0
      %2598 = vmatpush1.bf16.msra.mxu0 %v2561
      %2599 = vmatprep.subr.bf16.mxu0 0
      %2600 = vmatpush1.bf16.msra.mxu0 %v2562
      %2601 = vmatprep.subr.bf16.mxu0 0
      %2602 = vmatpush1.bf16.msra.mxu0 %v2563
      %2603 = vmatprep.subr.bf16.mxu0 0
      %2604 = vmatpush1.bf16.msra.mxu0 %v2564
      %2605 = vmatprep.subr.bf16.mxu0 0
      %2606 = vmatpush1.bf16.msra.mxu0 %v2565
      %2607 = vmatprep.subr.bf16.mxu0 0
      %2608 = vmatpush1.bf16.msra.mxu0 %v2566
      %2609 = vmatprep.subr.bf16.mxu0 0
      %2610 = vmatpush1.bf16.msra.mxu0 %v2567
      %2611 = vmatprep.subr.bf16.mxu0 0
      %2612 = vmatpush1.bf16.msra.mxu0 %v2568
      %2613 = vmatprep.subr.bf16.mxu0 0
      %2614 = vmatpush1.bf16.msra.mxu0 %v2569
      %2615 = vmatprep.subr.bf16.mxu0 0
      %2616 = vmatpush1.bf16.msra.mxu0 %v2570
      %2617 = vmatprep.subr.bf16.mxu0 0
      %2618 = vmatpush1.bf16.msra.mxu0 %v2571
      %2619 = vmatprep.subr.bf16.mxu0 0
      %2620 = vmatpush1.bf16.msra.mxu0 %v2572
      %2621 = vmatprep.mubr.bf16.mxu0 %v2430
      %2622 = vmatmul.mubr.bf16.gmra.mrb[0].mxu0 %v2429
      %v2623 = vpop.f32.mrb[0].mxu0
      %v2624 = vadd.f32 0.0, %v2623
      %v2625 = vpop.f32.mrb[0].mxu0
      %v2626 = vpop.f32.mrb[0].mxu0
      %v2627 = vadd.f32 0.0, %v2626
      %v2628 = vpop.f32.mrb[0].mxu0
      %2629 = vmatprep.mubr.bf16.mxu0 %v2432
      %2630 = vmatmul.mubr.bf16.gmra.mrb[0].mxu0 %v2431
      %v2631 = vpop.f32.mrb[0].mxu0
      %v2632 = vadd.f32 0.0, %v2631
      %v2633 = vpop.f32.mrb[0].mxu0
      %v2634 = vpop.f32.mrb[0].mxu0
      %v2635 = vadd.f32 0.0, %v2634
      %v2636 = vpop.f32.mrb[0].mxu0
      %2637 = vmatprep.mubr.bf16.mxu0 %v2434
      %2638 = vmatmul.mubr.bf16.gmra.mrb[0].mxu0 %v2433
      %v2639 = vpop.f32.mrb[0].mxu0
      %v2640 = vadd.f32 0.0, %v2639
      %v2641 = vpop.f32.mrb[0].mxu0
      %v2642 = vpop.f32.mrb[0].mxu0
      %v2643 = vadd.f32 0.0, %v2642
      %v2644 = vpop.f32.mrb[0].mxu0
      %2645 = vmatprep.mubr.bf16.mxu0 %v2436
      %2646 = vmatmul.mubr.bf16.gmra.mrb[0].mxu0 %v2435
      %v2647 = vpop.f32.mrb[0].mxu0
      %v2648 = vadd.f32 0.0, %v2647
      %v2649 = vpop.f32.mrb[0].mxu0
      %v2650 = vpop.f32.mrb[0].mxu0
      %v2651 = vadd.f32 0.0, %v2650
      %v2652 = vpop.f32.mrb[0].mxu0
      %2653 = vmatprep.mubr.bf16.mxu0 %v2438
      %2654 = vmatmul.mubr.bf16.gmra.mrb[0].mxu0 %v2437
      %v2655 = vpop.f32.mrb[0].mxu0
      %v2656 = vadd.f32 0.0, %v2655
      %v2657 = vpop.f32.mrb[0].mxu0
      %v2658 = vpop.f32.mrb[0].mxu0
      %v2659 = vadd.f32 0.0, %v2658
      %v2660 = vpop.f32.mrb[0].mxu0
      %2661 = vmatprep.mubr.bf16.mxu0 %v2440
      %2662 = vmatmul.mubr.bf16.gmra.mrb[0].mxu0 %v2439
      %v2663 = vpop.f32.mrb[0].mxu0
      %v2664 = vadd.f32 0.0, %v2663
      %v2665 = vpop.f32.mrb[0].mxu0
      %v2666 = vpop.f32.mrb[0].mxu0
      %v2667 = vadd.f32 0.0, %v2666
      %v2668 = vpop.f32.mrb[0].mxu0
      %2669 = vmatprep.mubr.bf16.mxu0 %v2442
      %2670 = vmatmul.mubr.bf16.gmra.mrb[0].mxu0 %v2441
      %v2671 = vpop.f32.mrb[0].mxu0
      %v2672 = vadd.f32 0.0, %v2671
      %v2673 = vpop.f32.mrb[0].mxu0
      %v2674 = vpop.f32.mrb[0].mxu0
      %v2675 = vadd.f32 0.0, %v2674
      %v2676 = vpop.f32.mrb[0].mxu0
      %2677 = vmatprep.mubr.bf16.mxu0 %v2444
      %2678 = vmatmul.mubr.bf16.gmra.mrb[0].mxu0 %v2443
      %v2679 = vpop.f32.mrb[0].mxu0
      %v2680 = vadd.f32 0.0, %v2679
      %v2681 = vpop.f32.mrb[0].mxu0
      %v2682 = vpop.f32.mrb[0].mxu0
      %v2683 = vadd.f32 0.0, %v2682
      %v2684 = vpop.f32.mrb[0].mxu0
      %2685 = vmatprep.mubr.bf16.mxu0 %v2446
      %2686 = vmatmul.mubr.bf16.gmra.mrb[0].mxu0 %v2445
      %v2687 = vpop.f32.mrb[0].mxu0
      %v2688 = vadd.f32 0.0, %v2687
      %v2689 = vpop.f32.mrb[0].mxu0
      %v2690 = vpop.f32.mrb[0].mxu0
      %v2691 = vadd.f32 0.0, %v2690
      %v2692 = vpop.f32.mrb[0].mxu0
      %2693 = vmatprep.mubr.bf16.mxu0 %v2448
      %2694 = vmatmul.mubr.bf16.gmra.mrb[0].mxu0 %v2447
      %v2695 = vpop.f32.mrb[0].mxu0
      %v2696 = vadd.f32 0.0, %v2695
      %v2697 = vpop.f32.mrb[0].mxu0
      %v2698 = vpop.f32.mrb[0].mxu0
      %v2699 = vadd.f32 0.0, %v2698
      %v2700 = vpop.f32.mrb[0].mxu0
      %2701 = vmatprep.mubr.bf16.mxu0 %v2450
      %2702 = vmatmul.mubr.bf16.gmra.mrb[0].mxu0 %v2449
      %v2703 = vpop.f32.mrb[0].mxu0
      %v2704 = vadd.f32 0.0, %v2703
      %v2705 = vpop.f32.mrb[0].mxu0
      %v2706 = vpop.f32.mrb[0].mxu0
      %v2707 = vadd.f32 0.0, %v2706
      %v2708 = vpop.f32.mrb[0].mxu0
      %2709 = vmatprep.mubr.bf16.mxu0 %v2452
      %2710 = vmatmul.mubr.bf16.gmra.mrb[0].mxu0 %v2451
      %v2711 = vpop.f32.mrb[0].mxu0
      %v2712 = vadd.f32 0.0, %v2711
      %v2713 = vpop.f32.mrb[0].mxu0
      %v2714 = vpop.f32.mrb[0].mxu0
      %v2715 = vadd.f32 0.0, %v2714
      %v2716 = vpop.f32.mrb[0].mxu0
      %2717 = vmatprep.mubr.bf16.mxu0 %v2454
      %2718 = vmatmul.mubr.bf16.gmra.mrb[0].mxu0 %v2453
      %v2719 = vpop.f32.mrb[0].mxu0
      %v2720 = vadd.f32 0.0, %v2719
      %v2721 = vpop.f32.mrb[0].mxu0
      %v2722 = vpop.f32.mrb[0].mxu0
      %v2723 = vadd.f32 0.0, %v2722
      %v2724 = vpop.f32.mrb[0].mxu0
      %2725 = vmatprep.mubr.bf16.mxu0 %v2456
      %2726 = vmatmul.mubr.bf16.gmra.mrb[0].mxu0 %v2455
      %v2727 = vpop.f32.mrb[0].mxu0
      %v2728 = vadd.f32 0.0, %v2727
      %v2729 = vpop.f32.mrb[0].mxu0
      %v2730 = vpop.f32.mrb[0].mxu0
      %v2731 = vadd.f32 0.0, %v2730
      %v2732 = vpop.f32.mrb[0].mxu0
      %2733 = vmatprep.mubr.bf16.mxu0 %v2458
      %2734 = vmatmul.mubr.bf16.gmra.mrb[0].mxu0 %v2457
      %v2735 = vpop.f32.mrb[0].mxu0
      %v2736 = vadd.f32 0.0, %v2735
      %v2737 = vpop.f32.mrb[0].mxu0
      %v2738 = vpop.f32.mrb[0].mxu0
      %v2739 = vadd.f32 0.0, %v2738
      %v2740 = vpop.f32.mrb[0].mxu0
      %2741 = vmatprep.mubr.bf16.mxu0 %v2460
      %2742 = vmatmul.mubr.bf16.gmra.mrb[0].mxu0 %v2459
      %v2743 = vpop.f32.mrb[0].mxu0
      %v2744 = vadd.f32 0.0, %v2743
      %v2745 = vpop.f32.mrb[0].mxu0
      %v2746 = vpop.f32.mrb[0].mxu0
      %v2747 = vadd.f32 0.0, %v2746
      %v2748 = vpop.f32.mrb[0].mxu0
      %2749 = vdwg.mxu0
      %v2750 = vld [vmem:[%s6] sm:$0x1]
      %v2752 = vlaneseq
      %v2753 = vshrl.u32 %v2752, 7
      %v2754 = vsub.s32 0, %v2753
      %v2755 = vrot.slane %v2750, %v2754
      %v2757 = vadd.f32 %v2624, %v2755
      %v2758 = vadd.f32 %v2627, %v2755
      %v2759 = vadd.f32 %v2632, %v2755
      %v2760 = vadd.f32 %v2635, %v2755
      %v2761 = vadd.f32 %v2640, %v2755
      %v2762 = vadd.f32 %v2643, %v2755
      %v2763 = vadd.f32 %v2648, %v2755
      %v2764 = vadd.f32 %v2651, %v2755
      %v2765 = vadd.f32 %v2656, %v2755
      %v2766 = vadd.f32 %v2659, %v2755
      %v2767 = vadd.f32 %v2664, %v2755
      %v2768 = vadd.f32 %v2667, %v2755
      %v2769 = vadd.f32 %v2672, %v2755
      %v2770 = vadd.f32 %v2675, %v2755
      %v2771 = vadd.f32 %v2680, %v2755
      %v2772 = vadd.f32 %v2683, %v2755
      %v2773 = vadd.f32 %v2688, %v2755
      %v2774 = vadd.f32 %v2691, %v2755
      %v2775 = vadd.f32 %v2696, %v2755
      %v2776 = vadd.f32 %v2699, %v2755
      %v2777 = vadd.f32 %v2704, %v2755
      %v2778 = vadd.f32 %v2707, %v2755
      %v2779 = vadd.f32 %v2712, %v2755
      %v2780 = vadd.f32 %v2715, %v2755
      %v2781 = vadd.f32 %v2720, %v2755
      %v2782 = vadd.f32 %v2723, %v2755
      %v2783 = vadd.f32 %v2728, %v2755
      %v2784 = vadd.f32 %v2731, %v2755
      %v2785 = vadd.f32 %v2736, %v2755
      %v2786 = vadd.f32 %v2739, %v2755
      %v2787 = vadd.f32 %v2744, %v2755
      %v2788 = vadd.f32 %v2747, %v2755
      %vm2789 = vcmask 23552
      %2790 = vst.msk [vmem:[%s280] sm:$0xff] %vm2789, %v2757
      %2791 = vst.msk [vmem:[%s280 + $0x8] sm:$0xff] %vm2789, %v2758
      %2792 = vst.msk [vmem:[%s280 + $0x10] sm:$0xff] %vm2789, %v2759
      %2793 = vst.msk [vmem:[%s280 + $0x18] sm:$0xff] %vm2789, %v2760
      %2794 = vst.msk [vmem:[%s280 + $0x20] sm:$0xff] %vm2789, %v2761
      %2795 = vst.msk [vmem:[%s280 + $0x28] sm:$0xff] %vm2789, %v2762
      %2796 = vst.msk [vmem:[%s280 + $0x30] sm:$0xff] %vm2789, %v2763
      %2797 = vst.msk [vmem:[%s280 + $0x38] sm:$0xff] %vm2789, %v2764
      %2798 = vst.msk [vmem:[%s280 + $0x40] sm:$0xff] %vm2789, %v2765
      %2799 = vst.msk [vmem:[%s280 + $0x48] sm:$0xff] %vm2789, %v2766
      %2800 = vst.msk [vmem:[%s280 + $0x50] sm:$0xff] %vm2789, %v2767
      %2801 = vst.msk [vmem:[%s280 + $0x58] sm:$0xff] %vm2789, %v2768
      %2802 = vst.msk [vmem:[%s280 + $0x60] sm:$0xff] %vm2789, %v2769
      %2803 = vst.msk [vmem:[%s280 + $0x68] sm:$0xff] %vm2789, %v2770
      %2804 = vst.msk [vmem:[%s280 + $0x70] sm:$0xff] %vm2789, %v2771
      %2805 = vst.msk [vmem:[%s280 + $0x78] sm:$0xff] %vm2789, %v2772
      %2806 = vst.msk [vmem:[%s280 + $0x80] sm:$0xff] %vm2789, %v2773
      %2807 = vst.msk [vmem:[%s280 + $0x88] sm:$0xff] %vm2789, %v2774
      %2808 = vst.msk [vmem:[%s280 + $0x90] sm:$0xff] %vm2789, %v2775
      %2809 = vst.msk [vmem:[%s280 + $0x98] sm:$0xff] %vm2789, %v2776
      %2810 = vst.msk [vmem:[%s280 + $0xa0] sm:$0xff] %vm2789, %v2777
      %2811 = vst.msk [vmem:[%s280 + $0xa8] sm:$0xff] %vm2789, %v2778
      %2812 = vst.msk [vmem:[%s280 + $0xb0] sm:$0xff] %vm2789, %v2779
      %2813 = vst.msk [vmem:[%s280 + $0xb8] sm:$0xff] %vm2789, %v2780
      %2814 = vst.msk [vmem:[%s280 + $0xc0] sm:$0xff] %vm2789, %v2781
      %2815 = vst.msk [vmem:[%s280 + $0xc8] sm:$0xff] %vm2789, %v2782
      %2816 = vst.msk [vmem:[%s280 + $0xd0] sm:$0xff] %vm2789, %v2783
      %2817 = vst.msk [vmem:[%s280 + $0xd8] sm:$0xff] %vm2789, %v2784
      %2818 = vst.msk [vmem:[%s280 + $0xe0] sm:$0xff] %vm2789, %v2785
      %2819 = vst.msk [vmem:[%s280 + $0xe8] sm:$0xff] %vm2789, %v2786
      %2820 = vst.msk [vmem:[%s280 + $0xf0] sm:$0xff] %vm2789, %v2787
      %2821 = vst.msk [vmem:[%s280 + $0xf8] sm:$0xff] %vm2789, %v2788
      %v2822 = vld [vmem:[%s274 + $0x100] sm:$0xff]
      %v2823 = vld [vmem:[%s274 + $0x108] sm:$0xff]
      %v2824 = vld [vmem:[%s274 + $0x110] sm:$0xff]
      %v2825 = vld [vmem:[%s274 + $0x118] sm:$0xff]
      %v2826 = vld [vmem:[%s274 + $0x120] sm:$0xff]
      %v2827 = vld [vmem:[%s274 + $0x128] sm:$0xff]
      %v2828 = vld [vmem:[%s274 + $0x130] sm:$0xff]
      %v2829 = vld [vmem:[%s274 + $0x138] sm:$0xff]
      %v2830 = vld [vmem:[%s274 + $0x140] sm:$0xff]
      %v2831 = vld [vmem:[%s274 + $0x148] sm:$0xff]
      %v2832 = vld [vmem:[%s274 + $0x150] sm:$0xff]
      %v2833 = vld [vmem:[%s274 + $0x158] sm:$0xff]
      %v2834 = vld [vmem:[%s274 + $0x160] sm:$0xff]
      %v2835 = vld [vmem:[%s274 + $0x168] sm:$0xff]
      %v2836 = vld [vmem:[%s274 + $0x170] sm:$0xff]
      %v2837 = vld [vmem:[%s274 + $0x178] sm:$0xff]
      %v2838 = vld [vmem:[%s274 + $0x180] sm:$0xff]
      %v2839 = vld [vmem:[%s274 + $0x188] sm:$0xff]
      %v2840 = vld [vmem:[%s274 + $0x190] sm:$0xff]
      %v2841 = vld [vmem:[%s274 + $0x198] sm:$0xff]
      %v2842 = vld [vmem:[%s274 + $0x1a0] sm:$0xff]
      %v2843 = vld [vmem:[%s274 + $0x1a8] sm:$0xff]
      %v2844 = vld [vmem:[%s274 + $0x1b0] sm:$0xff]
      %v2845 = vld [vmem:[%s274 + $0x1b8] sm:$0xff]
      %v2846 = vld [vmem:[%s274 + $0x1c0] sm:$0xff]
      %v2847 = vld [vmem:[%s274 + $0x1c8] sm:$0xff]
      %v2848 = vld [vmem:[%s274 + $0x1d0] sm:$0xff]
      %v2849 = vld [vmem:[%s274 + $0x1d8] sm:$0xff]
      %v2850 = vld [vmem:[%s274 + $0x1e0] sm:$0xff]
      %v2851 = vld [vmem:[%s274 + $0x1e8] sm:$0xff]
      %v2852 = vld [vmem:[%s274 + $0x1f0] sm:$0xff]
      %v2853 = vld [vmem:[%s274 + $0x1f8] sm:$0xff]
      %v2854 = vld [vmem:[%s1] sm:$0xff]
      %v2855 = vld [vmem:[%s1 + $0x8] sm:$0xff]
      %v2856 = vld [vmem:[%s1 + $0x10] sm:$0xff]
      %v2857 = vld [vmem:[%s1 + $0x18] sm:$0xff]
      %v2858 = vld [vmem:[%s1 + $0x20] sm:$0xff]
      %v2859 = vld [vmem:[%s1 + $0x28] sm:$0xff]
      %v2860 = vld [vmem:[%s1 + $0x30] sm:$0xff]
      %v2861 = vld [vmem:[%s1 + $0x38] sm:$0xff]
      %v2862 = vld [vmem:[%s1 + $0x40] sm:$0x77]
      %v2863 = vld [vmem:[%s2] sm:$0x3]
      %v2864 = vpack.c.bf16 %v2823, %v2822
      %v2865 = vpack.c.bf16 %v2825, %v2824
      %v2866 = vpack.c.bf16 %v2827, %v2826
      %v2867 = vpack.c.bf16 %v2829, %v2828
      %v2868 = vpack.c.bf16 %v2831, %v2830
      %v2869 = vpack.c.bf16 %v2833, %v2832
      %v2870 = vpack.c.bf16 %v2835, %v2834
      %v2871 = vpack.c.bf16 %v2837, %v2836
      %v2872 = vpack.c.bf16 %v2839, %v2838
      %v2873 = vpack.c.bf16 %v2841, %v2840
      %v2874 = vpack.c.bf16 %v2843, %v2842
      %v2875 = vpack.c.bf16 %v2845, %v2844
      %v2876 = vpack.c.bf16 %v2847, %v2846
      %v2877 = vpack.c.bf16 %v2849, %v2848
      %v2878 = vpack.c.bf16 %v2851, %v2850
      %v2879 = vpack.c.bf16 %v2853, %v2852
      %v2889 = vunpack.c.l.b16 %v2854
      %v2890 = vunpack.c.h.b16 %v2854
      %v2891 = vunpack.c.l.b16 %v2855
      %v2892 = vunpack.c.h.b16 %v2855
      %v2893 = vunpack.c.l.b16 %v2856
      %v2894 = vunpack.c.h.b16 %v2856
      %v2895 = vunpack.c.l.b16 %v2857
      %v2896 = vunpack.c.h.b16 %v2857
      %v2897 = vunpack.c.l.b16 %v2858
      %v2898 = vunpack.c.h.b16 %v2858
      %v2899 = vunpack.c.l.b16 %v2859
      %v2900 = vunpack.c.h.b16 %v2859
      %v2901 = vunpack.c.l.b16 %v2860
      %v2902 = vunpack.c.h.b16 %v2860
      %v2903 = vunpack.c.l.b16 %v2861
      %v2904 = vunpack.c.h.b16 %v2861
      %v2905 = vunpack.c.l.b16 %v2862
      %v2906 = vunpack.c.h.b16 %v2862
      %v2907 = vpack.c.b16 %v2891, %v2889
      %v2908 = vpack.c.b16 %v2892, %v2890
      %v2909 = vpack.c.b16 %v2895, %v2893
      %v2910 = vpack.c.b16 %v2896, %v2894
      %v2911 = vpack.c.b16 %v2899, %v2897
      %v2912 = vpack.c.b16 %v2900, %v2898
      %v2913 = vpack.c.b16 %v2903, %v2901
      %v2914 = vpack.c.b16 %v2904, %v2902
      %v2915 = vpack.c.b16 %v2905, %v2905
      %v2916 = vpack.c.b16 %v2906, %v2906
      %v2926 = vsel %vm387, %v2864, 0
      %v2929 = vsel %vm387, %v2865, 0
      %v2932 = vsel %vm387, %v2866, 0
      %v2935 = vsel %vm387, %v2867, 0
      %v2938 = vsel %vm387, %v2868, 0
      %v2941 = vsel %vm387, %v2869, 0
      %v2944 = vsel %vm387, %v2870, 0
      %v2947 = vsel %vm387, %v2871, 0
      %v2950 = vsel %vm387, %v2872, 0
      %v2953 = vsel %vm387, %v2873, 0
      %v2956 = vsel %vm387, %v2874, 0
      %v2959 = vsel %vm387, %v2875, 0
      %v2962 = vsel %vm387, %v2876, 0
      %v2965 = vsel %vm387, %v2877, 0
      %v2968 = vsel %vm387, %v2878, 0
      %v2971 = vsel %vm387, %v2879, 0
      %v2974 = vand.u32 %v2915, %v439
      %v2977 = vand.u32 %v2916, %v439
      %2979 = vmatprep.subr.bf16.mxu0 %v2908
      %2980 = vmatpush1.bf16.msra.mxu0 %v2907
      %2981 = vmatprep.subr.bf16.mxu0 %v2910
      %2982 = vmatpush1.bf16.msra.mxu0 %v2909
      %2983 = vmatprep.subr.bf16.mxu0 %v2912
      %2984 = vmatpush1.bf16.msra.mxu0 %v2911
      %2985 = vmatprep.subr.bf16.mxu0 %v2914
      %2986 = vmatpush1.bf16.msra.mxu0 %v2913
      %2987 = vmatprep.subr.bf16.mxu0 %v2977
      %2988 = vmatpush1.bf16.msra.mxu0 %v2974
      %2989 = vmatprep.subr.bf16.mxu0 0
      %2990 = vmatpush1.bf16.msra.mxu0 0
      %2991 = vmatprep.subr.bf16.mxu0 0
      %2992 = vmatpush1.bf16.msra.mxu0 0
      %2993 = vmatprep.subr.bf16.mxu0 0
      %2994 = vmatpush1.bf16.msra.mxu0 0
      %2995 = vmatprep.subr.bf16.mxu0 0
      %2996 = vmatpush1.bf16.msra.mxu0 0
      %2997 = vmatprep.subr.bf16.mxu0 0
      %2998 = vmatpush1.bf16.msra.mxu0 0
      %2999 = vmatprep.subr.bf16.mxu0 0
      %3000 = vmatpush1.bf16.msra.mxu0 0
      %3001 = vmatprep.subr.bf16.mxu0 0
      %3002 = vmatpush1.bf16.msra.mxu0 0
      %3003 = vmatprep.subr.bf16.mxu0 0
      %3004 = vmatpush1.bf16.msra.mxu0 0
      %3005 = vmatprep.subr.bf16.mxu0 0
      %3006 = vmatpush1.bf16.msra.mxu0 0
      %3007 = vmatprep.subr.bf16.mxu0 0
      %3008 = vmatpush1.bf16.msra.mxu0 0
      %3009 = vmatprep.subr.bf16.mxu0 0
      %3010 = vmatpush1.bf16.msra.mxu0 0
      %3011 = vmatprep.mubr.bf16.mxu0 0
      %3012 = vmatmul.mubr.bf16.gmra.mrb[0].mxu0 %v2926
      %v3013 = vpop.f32.mrb[0].mxu0
      %v3014 = vadd.f32 0.0, %v3013
      %v3015 = vpop.f32.mrb[0].mxu0
      %v3016 = vadd.f32 0.0, %v3015
      %v3017 = vpop.f32.mrb[0].mxu0
      %v3018 = vadd.f32 0.0, %v3017
      %v3019 = vpop.f32.mrb[0].mxu0
      %v3020 = vadd.f32 0.0, %v3019
      %3021 = vmatprep.mubr.bf16.mxu0 0
      %3022 = vmatmul.mubr.bf16.gmra.mrb[0].mxu0 %v2929
      %v3023 = vpop.f32.mrb[0].mxu0
      %v3024 = vadd.f32 0.0, %v3023
      %v3025 = vpop.f32.mrb[0].mxu0
      %v3026 = vadd.f32 0.0, %v3025
      %v3027 = vpop.f32.mrb[0].mxu0
      %v3028 = vadd.f32 0.0, %v3027
      %v3029 = vpop.f32.mrb[0].mxu0
      %v3030 = vadd.f32 0.0, %v3029
      %3031 = vmatprep.mubr.bf16.mxu0 0
      %3032 = vmatmul.mubr.bf16.gmra.mrb[0].mxu0 %v2932
      %v3033 = vpop.f32.mrb[0].mxu0
      %v3034 = vadd.f32 0.0, %v3033
      %v3035 = vpop.f32.mrb[0].mxu0
      %v3036 = vadd.f32 0.0, %v3035
      %v3037 = vpop.f32.mrb[0].mxu0
      %v3038 = vadd.f32 0.0, %v3037
      %v3039 = vpop.f32.mrb[0].mxu0
      %v3040 = vadd.f32 0.0, %v3039
      %3041 = vmatprep.mubr.bf16.mxu0 0
      %3042 = vmatmul.mubr.bf16.gmra.mrb[0].mxu0 %v2935
      %v3043 = vpop.f32.mrb[0].mxu0
      %v3044 = vadd.f32 0.0, %v3043
      %v3045 = vpop.f32.mrb[0].mxu0
      %v3046 = vadd.f32 0.0, %v3045
      %v3047 = vpop.f32.mrb[0].mxu0
      %v3048 = vadd.f32 0.0, %v3047
      %v3049 = vpop.f32.mrb[0].mxu0
      %v3050 = vadd.f32 0.0, %v3049
      %3051 = vmatprep.mubr.bf16.mxu0 0
      %3052 = vmatmul.mubr.bf16.gmra.mrb[0].mxu0 %v2938
      %v3053 = vpop.f32.mrb[0].mxu0
      %v3054 = vadd.f32 0.0, %v3053
      %v3055 = vpop.f32.mrb[0].mxu0
      %v3056 = vadd.f32 0.0, %v3055
      %v3057 = vpop.f32.mrb[0].mxu0
      %v3058 = vadd.f32 0.0, %v3057
      %v3059 = vpop.f32.mrb[0].mxu0
      %v3060 = vadd.f32 0.0, %v3059
      %3061 = vmatprep.mubr.bf16.mxu0 0
      %3062 = vmatmul.mubr.bf16.gmra.mrb[0].mxu0 %v2941
      %v3063 = vpop.f32.mrb[0].mxu0
      %v3064 = vadd.f32 0.0, %v3063
      %v3065 = vpop.f32.mrb[0].mxu0
      %v3066 = vadd.f32 0.0, %v3065
      %v3067 = vpop.f32.mrb[0].mxu0
      %v3068 = vadd.f32 0.0, %v3067
      %v3069 = vpop.f32.mrb[0].mxu0
      %v3070 = vadd.f32 0.0, %v3069
      %3071 = vmatprep.mubr.bf16.mxu0 0
      %3072 = vmatmul.mubr.bf16.gmra.mrb[0].mxu0 %v2944
      %v3073 = vpop.f32.mrb[0].mxu0
      %v3074 = vadd.f32 0.0, %v3073
      %v3075 = vpop.f32.mrb[0].mxu0
      %v3076 = vadd.f32 0.0, %v3075
      %v3077 = vpop.f32.mrb[0].mxu0
      %v3078 = vadd.f32 0.0, %v3077
      %v3079 = vpop.f32.mrb[0].mxu0
      %v3080 = vadd.f32 0.0, %v3079
      %3081 = vmatprep.mubr.bf16.mxu0 0
      %3082 = vmatmul.mubr.bf16.gmra.mrb[0].mxu0 %v2947
      %v3083 = vpop.f32.mrb[0].mxu0
      %v3084 = vadd.f32 0.0, %v3083
      %v3085 = vpop.f32.mrb[0].mxu0
      %v3086 = vadd.f32 0.0, %v3085
      %v3087 = vpop.f32.mrb[0].mxu0
      %v3088 = vadd.f32 0.0, %v3087
      %v3089 = vpop.f32.mrb[0].mxu0
      %v3090 = vadd.f32 0.0, %v3089
      %3091 = vmatprep.mubr.bf16.mxu0 0
      %3092 = vmatmul.mubr.bf16.gmra.mrb[0].mxu0 %v2950
      %v3093 = vpop.f32.mrb[0].mxu0
      %v3094 = vadd.f32 0.0, %v3093
      %v3095 = vpop.f32.mrb[0].mxu0
      %v3096 = vadd.f32 0.0, %v3095
      %v3097 = vpop.f32.mrb[0].mxu0
      %v3098 = vadd.f32 0.0, %v3097
      %v3099 = vpop.f32.mrb[0].mxu0
      %v3100 = vadd.f32 0.0, %v3099
      %3101 = vmatprep.mubr.bf16.mxu0 0
      %3102 = vmatmul.mubr.bf16.gmra.mrb[0].mxu0 %v2953
      %v3103 = vpop.f32.mrb[0].mxu0
      %v3104 = vadd.f32 0.0, %v3103
      %v3105 = vpop.f32.mrb[0].mxu0
      %v3106 = vadd.f32 0.0, %v3105
      %v3107 = vpop.f32.mrb[0].mxu0
      %v3108 = vadd.f32 0.0, %v3107
      %v3109 = vpop.f32.mrb[0].mxu0
      %v3110 = vadd.f32 0.0, %v3109
      %3111 = vmatprep.mubr.bf16.mxu0 0
      %3112 = vmatmul.mubr.bf16.gmra.mrb[0].mxu0 %v2956
      %v3113 = vpop.f32.mrb[0].mxu0
      %v3114 = vadd.f32 0.0, %v3113
      %v3115 = vpop.f32.mrb[0].mxu0
      %v3116 = vadd.f32 0.0, %v3115
      %v3117 = vpop.f32.mrb[0].mxu0
      %v3118 = vadd.f32 0.0, %v3117
      %v3119 = vpop.f32.mrb[0].mxu0
      %v3120 = vadd.f32 0.0, %v3119
      %3121 = vmatprep.mubr.bf16.mxu0 0
      %3122 = vmatmul.mubr.bf16.gmra.mrb[0].mxu0 %v2959
      %v3123 = vpop.f32.mrb[0].mxu0
      %v3124 = vadd.f32 0.0, %v3123
      %v3125 = vpop.f32.mrb[0].mxu0
      %v3126 = vadd.f32 0.0, %v3125
      %v3127 = vpop.f32.mrb[0].mxu0
      %v3128 = vadd.f32 0.0, %v3127
      %v3129 = vpop.f32.mrb[0].mxu0
      %v3130 = vadd.f32 0.0, %v3129
      %3131 = vmatprep.mubr.bf16.mxu0 0
      %3132 = vmatmul.mubr.bf16.gmra.mrb[0].mxu0 %v2962
      %v3133 = vpop.f32.mrb[0].mxu0
      %v3134 = vadd.f32 0.0, %v3133
      %v3135 = vpop.f32.mrb[0].mxu0
      %v3136 = vadd.f32 0.0, %v3135
      %v3137 = vpop.f32.mrb[0].mxu0
      %v3138 = vadd.f32 0.0, %v3137
      %v3139 = vpop.f32.mrb[0].mxu0
      %v3140 = vadd.f32 0.0, %v3139
      %3141 = vmatprep.mubr.bf16.mxu0 0
      %3142 = vmatmul.mubr.bf16.gmra.mrb[0].mxu0 %v2965
      %v3143 = vpop.f32.mrb[0].mxu0
      %v3144 = vadd.f32 0.0, %v3143
      %v3145 = vpop.f32.mrb[0].mxu0
      %v3146 = vadd.f32 0.0, %v3145
      %v3147 = vpop.f32.mrb[0].mxu0
      %v3148 = vadd.f32 0.0, %v3147
      %v3149 = vpop.f32.mrb[0].mxu0
      %v3150 = vadd.f32 0.0, %v3149
      %3151 = vmatprep.mubr.bf16.mxu0 0
      %3152 = vmatmul.mubr.bf16.gmra.mrb[0].mxu0 %v2968
      %v3153 = vpop.f32.mrb[0].mxu0
      %v3154 = vadd.f32 0.0, %v3153
      %v3155 = vpop.f32.mrb[0].mxu0
      %v3156 = vadd.f32 0.0, %v3155
      %v3157 = vpop.f32.mrb[0].mxu0
      %v3158 = vadd.f32 0.0, %v3157
      %v3159 = vpop.f32.mrb[0].mxu0
      %v3160 = vadd.f32 0.0, %v3159
      %3161 = vmatprep.mubr.bf16.mxu0 0
      %3162 = vmatmul.mubr.bf16.gmra.mrb[0].mxu0 %v2971
      %v3163 = vpop.f32.mrb[0].mxu0
      %v3164 = vadd.f32 0.0, %v3163
      %v3165 = vpop.f32.mrb[0].mxu0
      %v3166 = vadd.f32 0.0, %v3165
      %v3167 = vpop.f32.mrb[0].mxu0
      %v3168 = vadd.f32 0.0, %v3167
      %v3169 = vpop.f32.mrb[0].mxu0
      %v3170 = vadd.f32 0.0, %v3169
      %3171 = vdwg.mxu0
      %v3172 = vpack.c.bf16 %v3018, %v3014
      %v3173 = vpack.c.bf16 %v3020, %v3016
      %v3174 = vpack.c.bf16 %v3028, %v3024
      %v3175 = vpack.c.bf16 %v3030, %v3026
      %v3176 = vpack.c.bf16 %v3038, %v3034
      %v3177 = vpack.c.bf16 %v3040, %v3036
      %v3178 = vpack.c.bf16 %v3048, %v3044
      %v3179 = vpack.c.bf16 %v3050, %v3046
      %v3180 = vpack.c.bf16 %v3058, %v3054
      %v3181 = vpack.c.bf16 %v3060, %v3056
      %v3182 = vpack.c.bf16 %v3068, %v3064
      %v3183 = vpack.c.bf16 %v3070, %v3066
      %v3184 = vpack.c.bf16 %v3078, %v3074
      %v3185 = vpack.c.bf16 %v3080, %v3076
      %v3186 = vpack.c.bf16 %v3088, %v3084
      %v3187 = vpack.c.bf16 %v3090, %v3086
      %v3188 = vpack.c.bf16 %v3098, %v3094
      %v3189 = vpack.c.bf16 %v3100, %v3096
      %v3190 = vpack.c.bf16 %v3108, %v3104
      %v3191 = vpack.c.bf16 %v3110, %v3106
      %v3192 = vpack.c.bf16 %v3118, %v3114
      %v3193 = vpack.c.bf16 %v3120, %v3116
      %v3194 = vpack.c.bf16 %v3128, %v3124
      %v3195 = vpack.c.bf16 %v3130, %v3126
      %v3196 = vpack.c.bf16 %v3138, %v3134
      %v3197 = vpack.c.bf16 %v3140, %v3136
      %v3198 = vpack.c.bf16 %v3148, %v3144
      %v3199 = vpack.c.bf16 %v3150, %v3146
      %v3200 = vpack.c.bf16 %v3158, %v3154
      %v3201 = vpack.c.bf16 %v3160, %v3156
      %v3202 = vpack.c.bf16 %v3168, %v3164
      %v3203 = vpack.c.bf16 %v3170, %v3166
      %v3206 = vunpack.c.l.s4 1966171168
      %v3207 = vunpack.c.0.s8 %v3206
      %v3208 = vlaneseq
      %v3209 = vshrl.u32 %v3208, 7
      %v3210 = vsub.s32 %v3207, %v3209
      %v3211 = vrot.slane %v2863, %v3210
      %v3212 = vcombine.high %v3211, %v3211
      %v3214 = vunpack.c.l.s4 1966171168
      %v3215 = vunpack.c.0.s8 %v3214
      %v3216 = vlaneseq
      %v3217 = vshrl.u32 %v3216, 7
      %v3218 = vsub.s32 %v3215, %v3217
      %v3219 = vrot.slane %v3211, %v3218
      %v3221 = vunpack.c.l.s4 1966171168
      %v3222 = vunpack.c.0.s8 %v3221
      %v3223 = vlaneseq
      %v3224 = vshrl.u32 %v3223, 7
      %v3225 = vsub.s32 %v3222, %v3224
      %v3226 = vrot.slane %v3212, %v3225
      %v3228 = vpack.i.b16 %v3219, %v3219
      %v3230 = vlaneseq
      %v3231 = vshrl.u32 %v3230, 7
      %v3232 = vsub.s32 0, %v3231
      %v3233 = vrot.slane %v3228, %v3232
      %v3235 = vpack.i.b16 %v3226, %v3226
      %v3237 = vlaneseq
      %v3238 = vshrl.u32 %v3237, 7
      %v3239 = vsub.s32 0, %v3238
      %v3240 = vrot.slane %v3235, %v3239
      %v3241 = vadd.bf16 %v3172, %v3233
      %v3242 = vadd.bf16 %v3173, %v3240
      %v3243 = vadd.bf16 %v3174, %v3233
      %v3244 = vadd.bf16 %v3175, %v3240
      %v3245 = vadd.bf16 %v3176, %v3233
      %v3246 = vadd.bf16 %v3177, %v3240
      %v3247 = vadd.bf16 %v3178, %v3233
      %v3248 = vadd.bf16 %v3179, %v3240
      %v3249 = vadd.bf16 %v3180, %v3233
      %v3250 = vadd.bf16 %v3181, %v3240
      %v3251 = vadd.bf16 %v3182, %v3233
      %v3252 = vadd.bf16 %v3183, %v3240
      %v3253 = vadd.bf16 %v3184, %v3233
      %v3254 = vadd.bf16 %v3185, %v3240
      %v3255 = vadd.bf16 %v3186, %v3233
      %v3256 = vadd.bf16 %v3187, %v3240
      %v3257 = vadd.bf16 %v3188, %v3233
      %v3258 = vadd.bf16 %v3189, %v3240
      %v3259 = vadd.bf16 %v3190, %v3233
      %v3260 = vadd.bf16 %v3191, %v3240
      %v3261 = vadd.bf16 %v3192, %v3233
      %v3262 = vadd.bf16 %v3193, %v3240
      %v3263 = vadd.bf16 %v3194, %v3233
      %v3264 = vadd.bf16 %v3195, %v3240
      %v3265 = vadd.bf16 %v3196, %v3233
      %v3266 = vadd.bf16 %v3197, %v3240
      %v3267 = vadd.bf16 %v3198, %v3233
      %v3268 = vadd.bf16 %v3199, %v3240
      %v3269 = vadd.bf16 %v3200, %v3233
      %v3270 = vadd.bf16 %v3201, %v3240
      %v3271 = vadd.bf16 %v3202, %v3233
      %v3272 = vadd.bf16 %v3203, %v3240
      %v3273 = vmul.bf16 %v3241, 1045249613
      %v3274 = vmul.bf16 %v3242, 1045249613
      %v3275 = vmul.bf16 %v3243, 1045249613
      %v3276 = vmul.bf16 %v3244, 1045249613
      %v3277 = vmul.bf16 %v3245, 1045249613
      %v3278 = vmul.bf16 %v3246, 1045249613
      %v3279 = vmul.bf16 %v3247, 1045249613
      %v3280 = vmul.bf16 %v3248, 1045249613
      %v3281 = vmul.bf16 %v3249, 1045249613
      %v3282 = vmul.bf16 %v3250, 1045249613
      %v3283 = vmul.bf16 %v3251, 1045249613
      %v3284 = vmul.bf16 %v3252, 1045249613
      %v3285 = vmul.bf16 %v3253, 1045249613
      %v3286 = vmul.bf16 %v3254, 1045249613
      %v3287 = vmul.bf16 %v3255, 1045249613
      %v3288 = vmul.bf16 %v3256, 1045249613
      %v3289 = vmul.bf16 %v3257, 1045249613
      %v3290 = vmul.bf16 %v3258, 1045249613
      %v3291 = vmul.bf16 %v3259, 1045249613
      %v3292 = vmul.bf16 %v3260, 1045249613
      %v3293 = vmul.bf16 %v3261, 1045249613
      %v3294 = vmul.bf16 %v3262, 1045249613
      %v3295 = vmul.bf16 %v3263, 1045249613
      %v3296 = vmul.bf16 %v3264, 1045249613
      %v3297 = vmul.bf16 %v3265, 1045249613
      %v3298 = vmul.bf16 %v3266, 1045249613
      %v3299 = vmul.bf16 %v3267, 1045249613
      %v3300 = vmul.bf16 %v3268, 1045249613
      %v3301 = vmul.bf16 %v3269, 1045249613
      %v3302 = vmul.bf16 %v3270, 1045249613
      %v3303 = vmul.bf16 %v3271, 1045249613
      %v3304 = vmul.bf16 %v3272, 1045249613
      %v3305 = vmax.bf16 %v3241, %v3273
      %v3306 = vmax.bf16 %v3242, %v3274
      %v3307 = vmax.bf16 %v3243, %v3275
      %v3308 = vmax.bf16 %v3244, %v3276
      %v3309 = vmax.bf16 %v3245, %v3277
      %v3310 = vmax.bf16 %v3246, %v3278
      %v3311 = vmax.bf16 %v3247, %v3279
      %v3312 = vmax.bf16 %v3248, %v3280
      %v3313 = vmax.bf16 %v3249, %v3281
      %v3314 = vmax.bf16 %v3250, %v3282
      %v3315 = vmax.bf16 %v3251, %v3283
      %v3316 = vmax.bf16 %v3252, %v3284
      %v3317 = vmax.bf16 %v3253, %v3285
      %v3318 = vmax.bf16 %v3254, %v3286
      %v3319 = vmax.bf16 %v3255, %v3287
      %v3320 = vmax.bf16 %v3256, %v3288
      %v3321 = vmax.bf16 %v3257, %v3289
      %v3322 = vmax.bf16 %v3258, %v3290
      %v3323 = vmax.bf16 %v3259, %v3291
      %v3324 = vmax.bf16 %v3260, %v3292
      %v3325 = vmax.bf16 %v3261, %v3293
      %v3326 = vmax.bf16 %v3262, %v3294
      %v3327 = vmax.bf16 %v3263, %v3295
      %v3328 = vmax.bf16 %v3264, %v3296
      %v3329 = vmax.bf16 %v3265, %v3297
      %v3330 = vmax.bf16 %v3266, %v3298
      %v3331 = vmax.bf16 %v3267, %v3299
      %v3332 = vmax.bf16 %v3268, %v3300
      %v3333 = vmax.bf16 %v3269, %v3301
      %v3334 = vmax.bf16 %v3270, %v3302
      %v3335 = vmax.bf16 %v3271, %v3303
      %v3336 = vmax.bf16 %v3272, %v3304
      %v3337 = vld [vmem:[%s3] sm:$0xff]
      %v3338 = vld [vmem:[%s3 + $0x8] sm:$0xff]
      %v3339 = vld [vmem:[%s3 + $0x10] sm:$0xff]
      %v3340 = vld [vmem:[%s3 + $0x18] sm:$0xff]
      %v3341 = vld [vmem:[%s3 + $0x20] sm:$0xff]
      %v3342 = vld [vmem:[%s3 + $0x28] sm:$0xff]
      %v3343 = vld [vmem:[%s3 + $0x30] sm:$0xff]
      %v3344 = vld [vmem:[%s3 + $0x38] sm:$0xff]
      %v3345 = vld [vmem:[%s3 + $0x40] sm:$0xff]
      %v3346 = vld [vmem:[%s3 + $0x48] sm:$0xff]
      %v3347 = vld [vmem:[%s3 + $0x50] sm:$0xff]
      %v3348 = vld [vmem:[%s3 + $0x58] sm:$0xff]
      %v3349 = vld [vmem:[%s3 + $0x60] sm:$0xff]
      %v3350 = vld [vmem:[%s3 + $0x68] sm:$0xff]
      %v3351 = vld [vmem:[%s3 + $0x70] sm:$0xff]
      %v3352 = vld [vmem:[%s3 + $0x78] sm:$0xff]
      %v3353 = vld [vmem:[%s3 + $0x80] sm:$0xff]
      %v3354 = vld [vmem:[%s3 + $0x88] sm:$0xff]
      %v3355 = vld [vmem:[%s3 + $0x90] sm:$0xff]
      %v3356 = vld [vmem:[%s3 + $0x98] sm:$0xff]
      %v3357 = vld [vmem:[%s3 + $0xa0] sm:$0xff]
      %v3358 = vld [vmem:[%s3 + $0xa8] sm:$0xff]
      %v3359 = vld [vmem:[%s3 + $0xb0] sm:$0xff]
      %v3360 = vld [vmem:[%s3 + $0xb8] sm:$0xff]
      %v3361 = vld [vmem:[%s3 + $0xc0] sm:$0xff]
      %v3362 = vld [vmem:[%s3 + $0xc8] sm:$0xff]
      %v3363 = vld [vmem:[%s3 + $0xd0] sm:$0xff]
      %v3364 = vld [vmem:[%s3 + $0xd8] sm:$0xff]
      %v3365 = vld [vmem:[%s3 + $0xe0] sm:$0xff]
      %v3366 = vld [vmem:[%s3 + $0xe8] sm:$0xff]
      %v3367 = vld [vmem:[%s3 + $0xf0] sm:$0xff]
      %v3368 = vld [vmem:[%s3 + $0xf8] sm:$0xff]
      %v3369 = vld [vmem:[%s4] sm:$0x3]
      %v3402 = vunpack.c.l.b16 %v3337
      %v3403 = vunpack.c.h.b16 %v3337
      %v3404 = vunpack.c.l.b16 %v3338
      %v3405 = vunpack.c.h.b16 %v3338
      %v3406 = vunpack.c.l.b16 %v3339
      %v3407 = vunpack.c.h.b16 %v3339
      %v3408 = vunpack.c.l.b16 %v3340
      %v3409 = vunpack.c.h.b16 %v3340
      %v3410 = vunpack.c.l.b16 %v3341
      %v3411 = vunpack.c.h.b16 %v3341
      %v3412 = vunpack.c.l.b16 %v3342
      %v3413 = vunpack.c.h.b16 %v3342
      %v3414 = vunpack.c.l.b16 %v3343
      %v3415 = vunpack.c.h.b16 %v3343
      %v3416 = vunpack.c.l.b16 %v3344
      %v3417 = vunpack.c.h.b16 %v3344
      %v3418 = vunpack.c.l.b16 %v3345
      %v3419 = vunpack.c.h.b16 %v3345
      %v3420 = vunpack.c.l.b16 %v3346
      %v3421 = vunpack.c.h.b16 %v3346
      %v3422 = vunpack.c.l.b16 %v3347
      %v3423 = vunpack.c.h.b16 %v3347
      %v3424 = vunpack.c.l.b16 %v3348
      %v3425 = vunpack.c.h.b16 %v3348
      %v3426 = vunpack.c.l.b16 %v3349
      %v3427 = vunpack.c.h.b16 %v3349
      %v3428 = vunpack.c.l.b16 %v3350
      %v3429 = vunpack.c.h.b16 %v3350
      %v3430 = vunpack.c.l.b16 %v3351
      %v3431 = vunpack.c.h.b16 %v3351
      %v3432 = vunpack.c.l.b16 %v3352
      %v3433 = vunpack.c.h.b16 %v3352
      %v3434 = vunpack.c.l.b16 %v3353
      %v3435 = vunpack.c.h.b16 %v3353
      %v3436 = vunpack.c.l.b16 %v3354
      %v3437 = vunpack.c.h.b16 %v3354
      %v3438 = vunpack.c.l.b16 %v3355
      %v3439 = vunpack.c.h.b16 %v3355
      %v3440 = vunpack.c.l.b16 %v3356
      %v3441 = vunpack.c.h.b16 %v3356
      %v3442 = vunpack.c.l.b16 %v3357
      %v3443 = vunpack.c.h.b16 %v3357
      %v3444 = vunpack.c.l.b16 %v3358
      %v3445 = vunpack.c.h.b16 %v3358
      %v3446 = vunpack.c.l.b16 %v3359
      %v3447 = vunpack.c.h.b16 %v3359
      %v3448 = vunpack.c.l.b16 %v3360
      %v3449 = vunpack.c.h.b16 %v3360
      %v3450 = vunpack.c.l.b16 %v3361
      %v3451 = vunpack.c.h.b16 %v3361
      %v3452 = vunpack.c.l.b16 %v3362
      %v3453 = vunpack.c.h.b16 %v3362
      %v3454 = vunpack.c.l.b16 %v3363
      %v3455 = vunpack.c.h.b16 %v3363
      %v3456 = vunpack.c.l.b16 %v3364
      %v3457 = vunpack.c.h.b16 %v3364
      %v3458 = vunpack.c.l.b16 %v3365
      %v3459 = vunpack.c.h.b16 %v3365
      %v3460 = vunpack.c.l.b16 %v3366
      %v3461 = vunpack.c.h.b16 %v3366
      %v3462 = vunpack.c.l.b16 %v3367
      %v3463 = vunpack.c.h.b16 %v3367
      %v3464 = vunpack.c.l.b16 %v3368
      %v3465 = vunpack.c.h.b16 %v3368
      %v3466 = vpack.c.b16 %v3404, %v3402
      %v3467 = vpack.c.b16 %v3405, %v3403
      %v3468 = vpack.c.b16 %v3408, %v3406
      %v3469 = vpack.c.b16 %v3409, %v3407
      %v3470 = vpack.c.b16 %v3412, %v3410
      %v3471 = vpack.c.b16 %v3413, %v3411
      %v3472 = vpack.c.b16 %v3416, %v3414
      %v3473 = vpack.c.b16 %v3417, %v3415
      %v3474 = vpack.c.b16 %v3420, %v3418
      %v3475 = vpack.c.b16 %v3421, %v3419
      %v3476 = vpack.c.b16 %v3424, %v3422
      %v3477 = vpack.c.b16 %v3425, %v3423
      %v3478 = vpack.c.b16 %v3428, %v3426
      %v3479 = vpack.c.b16 %v3429, %v3427
      %v3480 = vpack.c.b16 %v3432, %v3430
      %v3481 = vpack.c.b16 %v3433, %v3431
      %v3482 = vpack.c.b16 %v3436, %v3434
      %v3483 = vpack.c.b16 %v3437, %v3435
      %v3484 = vpack.c.b16 %v3440, %v3438
      %v3485 = vpack.c.b16 %v3441, %v3439
      %v3486 = vpack.c.b16 %v3444, %v3442
      %v3487 = vpack.c.b16 %v3445, %v3443
      %v3488 = vpack.c.b16 %v3448, %v3446
      %v3489 = vpack.c.b16 %v3449, %v3447
      %v3490 = vpack.c.b16 %v3452, %v3450
      %v3491 = vpack.c.b16 %v3453, %v3451
      %v3492 = vpack.c.b16 %v3456, %v3454
      %v3493 = vpack.c.b16 %v3457, %v3455
      %v3494 = vpack.c.b16 %v3460, %v3458
      %v3495 = vpack.c.b16 %v3461, %v3459
      %v3496 = vpack.c.b16 %v3464, %v3462
      %v3497 = vpack.c.b16 %v3465, %v3463
      %3530 = vmatprep.subr.bf16.mxu0 %v3467
      %3531 = vmatpush1.bf16.msra.mxu0 %v3466
      %3532 = vmatprep.subr.bf16.mxu0 %v3469
      %3533 = vmatpush1.bf16.msra.mxu0 %v3468
      %3534 = vmatprep.subr.bf16.mxu0 %v3471
      %3535 = vmatpush1.bf16.msra.mxu0 %v3470
      %3536 = vmatprep.subr.bf16.mxu0 %v3473
      %3537 = vmatpush1.bf16.msra.mxu0 %v3472
      %3538 = vmatprep.subr.bf16.mxu0 %v3475
      %3539 = vmatpush1.bf16.msra.mxu0 %v3474
      %3540 = vmatprep.subr.bf16.mxu0 %v3477
      %3541 = vmatpush1.bf16.msra.mxu0 %v3476
      %3542 = vmatprep.subr.bf16.mxu0 %v3479
      %3543 = vmatpush1.bf16.msra.mxu0 %v3478
      %3544 = vmatprep.subr.bf16.mxu0 %v3481
      %3545 = vmatpush1.bf16.msra.mxu0 %v3480
      %3546 = vmatprep.subr.bf16.mxu0 %v3483
      %3547 = vmatpush1.bf16.msra.mxu0 %v3482
      %3548 = vmatprep.subr.bf16.mxu0 %v3485
      %3549 = vmatpush1.bf16.msra.mxu0 %v3484
      %3550 = vmatprep.subr.bf16.mxu0 %v3487
      %3551 = vmatpush1.bf16.msra.mxu0 %v3486
      %3552 = vmatprep.subr.bf16.mxu0 %v3489
      %3553 = vmatpush1.bf16.msra.mxu0 %v3488
      %3554 = vmatprep.subr.bf16.mxu0 %v3491
      %3555 = vmatpush1.bf16.msra.mxu0 %v3490
      %3556 = vmatprep.subr.bf16.mxu0 %v3493
      %3557 = vmatpush1.bf16.msra.mxu0 %v3492
      %3558 = vmatprep.subr.bf16.mxu0 %v3495
      %3559 = vmatpush1.bf16.msra.mxu0 %v3494
      %3560 = vmatprep.subr.bf16.mxu0 %v3497
      %3561 = vmatpush1.bf16.msra.mxu0 %v3496
      %3562 = vmatprep.mubr.bf16.mxu0 %v3306
      %3563 = vmatmul.mubr.bf16.gmra.mrb[0].mxu0 %v3305
      %v3564 = vpop.f32.mrb[0].mxu0
      %v3565 = vadd.f32 0.0, %v3564
      %v3566 = vpop.f32.mrb[0].mxu0
      %v3567 = vadd.f32 0.0, %v3566
      %v3568 = vpop.f32.mrb[0].mxu0
      %v3569 = vadd.f32 0.0, %v3568
      %v3570 = vpop.f32.mrb[0].mxu0
      %v3571 = vadd.f32 0.0, %v3570
      %3572 = vmatprep.mubr.bf16.mxu0 %v3308
      %3573 = vmatmul.mubr.bf16.gmra.mrb[0].mxu0 %v3307
      %v3574 = vpop.f32.mrb[0].mxu0
      %v3575 = vadd.f32 0.0, %v3574
      %v3576 = vpop.f32.mrb[0].mxu0
      %v3577 = vadd.f32 0.0, %v3576
      %v3578 = vpop.f32.mrb[0].mxu0
      %v3579 = vadd.f32 0.0, %v3578
      %v3580 = vpop.f32.mrb[0].mxu0
      %v3581 = vadd.f32 0.0, %v3580
      %3582 = vmatprep.mubr.bf16.mxu0 %v3310
      %3583 = vmatmul.mubr.bf16.gmra.mrb[0].mxu0 %v3309
      %v3584 = vpop.f32.mrb[0].mxu0
      %v3585 = vadd.f32 0.0, %v3584
      %v3586 = vpop.f32.mrb[0].mxu0
      %v3587 = vadd.f32 0.0, %v3586
      %v3588 = vpop.f32.mrb[0].mxu0
      %v3589 = vadd.f32 0.0, %v3588
      %v3590 = vpop.f32.mrb[0].mxu0
      %v3591 = vadd.f32 0.0, %v3590
      %3592 = vmatprep.mubr.bf16.mxu0 %v3312
      %3593 = vmatmul.mubr.bf16.gmra.mrb[0].mxu0 %v3311
      %v3594 = vpop.f32.mrb[0].mxu0
      %v3595 = vadd.f32 0.0, %v3594
      %v3596 = vpop.f32.mrb[0].mxu0
      %v3597 = vadd.f32 0.0, %v3596
      %v3598 = vpop.f32.mrb[0].mxu0
      %v3599 = vadd.f32 0.0, %v3598
      %v3600 = vpop.f32.mrb[0].mxu0
      %v3601 = vadd.f32 0.0, %v3600
      %3602 = vmatprep.mubr.bf16.mxu0 %v3314
      %3603 = vmatmul.mubr.bf16.gmra.mrb[0].mxu0 %v3313
      %v3604 = vpop.f32.mrb[0].mxu0
      %v3605 = vadd.f32 0.0, %v3604
      %v3606 = vpop.f32.mrb[0].mxu0
      %v3607 = vadd.f32 0.0, %v3606
      %v3608 = vpop.f32.mrb[0].mxu0
      %v3609 = vadd.f32 0.0, %v3608
      %v3610 = vpop.f32.mrb[0].mxu0
      %v3611 = vadd.f32 0.0, %v3610
      %3612 = vmatprep.mubr.bf16.mxu0 %v3316
      %3613 = vmatmul.mubr.bf16.gmra.mrb[0].mxu0 %v3315
      %v3614 = vpop.f32.mrb[0].mxu0
      %v3615 = vadd.f32 0.0, %v3614
      %v3616 = vpop.f32.mrb[0].mxu0
      %v3617 = vadd.f32 0.0, %v3616
      %v3618 = vpop.f32.mrb[0].mxu0
      %v3619 = vadd.f32 0.0, %v3618
      %v3620 = vpop.f32.mrb[0].mxu0
      %v3621 = vadd.f32 0.0, %v3620
      %3622 = vmatprep.mubr.bf16.mxu0 %v3318
      %3623 = vmatmul.mubr.bf16.gmra.mrb[0].mxu0 %v3317
      %v3624 = vpop.f32.mrb[0].mxu0
      %v3625 = vadd.f32 0.0, %v3624
      %v3626 = vpop.f32.mrb[0].mxu0
      %v3627 = vadd.f32 0.0, %v3626
      %v3628 = vpop.f32.mrb[0].mxu0
      %v3629 = vadd.f32 0.0, %v3628
      %v3630 = vpop.f32.mrb[0].mxu0
      %v3631 = vadd.f32 0.0, %v3630
      %3632 = vmatprep.mubr.bf16.mxu0 %v3320
      %3633 = vmatmul.mubr.bf16.gmra.mrb[0].mxu0 %v3319
      %v3634 = vpop.f32.mrb[0].mxu0
      %v3635 = vadd.f32 0.0, %v3634
      %v3636 = vpop.f32.mrb[0].mxu0
      %v3637 = vadd.f32 0.0, %v3636
      %v3638 = vpop.f32.mrb[0].mxu0
      %v3639 = vadd.f32 0.0, %v3638
      %v3640 = vpop.f32.mrb[0].mxu0
      %v3641 = vadd.f32 0.0, %v3640
      %3642 = vmatprep.mubr.bf16.mxu0 %v3322
      %3643 = vmatmul.mubr.bf16.gmra.mrb[0].mxu0 %v3321
      %v3644 = vpop.f32.mrb[0].mxu0
      %v3645 = vadd.f32 0.0, %v3644
      %v3646 = vpop.f32.mrb[0].mxu0
      %v3647 = vadd.f32 0.0, %v3646
      %v3648 = vpop.f32.mrb[0].mxu0
      %v3649 = vadd.f32 0.0, %v3648
      %v3650 = vpop.f32.mrb[0].mxu0
      %v3651 = vadd.f32 0.0, %v3650
      %3652 = vmatprep.mubr.bf16.mxu0 %v3324
      %3653 = vmatmul.mubr.bf16.gmra.mrb[0].mxu0 %v3323
      %v3654 = vpop.f32.mrb[0].mxu0
      %v3655 = vadd.f32 0.0, %v3654
      %v3656 = vpop.f32.mrb[0].mxu0
      %v3657 = vadd.f32 0.0, %v3656
      %v3658 = vpop.f32.mrb[0].mxu0
      %v3659 = vadd.f32 0.0, %v3658
      %v3660 = vpop.f32.mrb[0].mxu0
      %v3661 = vadd.f32 0.0, %v3660
      %3662 = vmatprep.mubr.bf16.mxu0 %v3326
      %3663 = vmatmul.mubr.bf16.gmra.mrb[0].mxu0 %v3325
      %v3664 = vpop.f32.mrb[0].mxu0
      %v3665 = vadd.f32 0.0, %v3664
      %v3666 = vpop.f32.mrb[0].mxu0
      %v3667 = vadd.f32 0.0, %v3666
      %v3668 = vpop.f32.mrb[0].mxu0
      %v3669 = vadd.f32 0.0, %v3668
      %v3670 = vpop.f32.mrb[0].mxu0
      %v3671 = vadd.f32 0.0, %v3670
      %3672 = vmatprep.mubr.bf16.mxu0 %v3328
      %3673 = vmatmul.mubr.bf16.gmra.mrb[0].mxu0 %v3327
      %v3674 = vpop.f32.mrb[0].mxu0
      %v3675 = vadd.f32 0.0, %v3674
      %v3676 = vpop.f32.mrb[0].mxu0
      %v3677 = vadd.f32 0.0, %v3676
      %v3678 = vpop.f32.mrb[0].mxu0
      %v3679 = vadd.f32 0.0, %v3678
      %v3680 = vpop.f32.mrb[0].mxu0
      %v3681 = vadd.f32 0.0, %v3680
      %3682 = vmatprep.mubr.bf16.mxu0 %v3330
      %3683 = vmatmul.mubr.bf16.gmra.mrb[0].mxu0 %v3329
      %v3684 = vpop.f32.mrb[0].mxu0
      %v3685 = vadd.f32 0.0, %v3684
      %v3686 = vpop.f32.mrb[0].mxu0
      %v3687 = vadd.f32 0.0, %v3686
      %v3688 = vpop.f32.mrb[0].mxu0
      %v3689 = vadd.f32 0.0, %v3688
      %v3690 = vpop.f32.mrb[0].mxu0
      %v3691 = vadd.f32 0.0, %v3690
      %3692 = vmatprep.mubr.bf16.mxu0 %v3332
      %3693 = vmatmul.mubr.bf16.gmra.mrb[0].mxu0 %v3331
      %v3694 = vpop.f32.mrb[0].mxu0
      %v3695 = vadd.f32 0.0, %v3694
      %v3696 = vpop.f32.mrb[0].mxu0
      %v3697 = vadd.f32 0.0, %v3696
      %v3698 = vpop.f32.mrb[0].mxu0
      %v3699 = vadd.f32 0.0, %v3698
      %v3700 = vpop.f32.mrb[0].mxu0
      %v3701 = vadd.f32 0.0, %v3700
      %3702 = vmatprep.mubr.bf16.mxu0 %v3334
      %3703 = vmatmul.mubr.bf16.gmra.mrb[0].mxu0 %v3333
      %v3704 = vpop.f32.mrb[0].mxu0
      %v3705 = vadd.f32 0.0, %v3704
      %v3706 = vpop.f32.mrb[0].mxu0
      %v3707 = vadd.f32 0.0, %v3706
      %v3708 = vpop.f32.mrb[0].mxu0
      %v3709 = vadd.f32 0.0, %v3708
      %v3710 = vpop.f32.mrb[0].mxu0
      %v3711 = vadd.f32 0.0, %v3710
      %3712 = vmatprep.mubr.bf16.mxu0 %v3336
      %3713 = vmatmul.mubr.bf16.gmra.mrb[0].mxu0 %v3335
      %v3714 = vpop.f32.mrb[0].mxu0
      %v3715 = vadd.f32 0.0, %v3714
      %v3716 = vpop.f32.mrb[0].mxu0
      %v3717 = vadd.f32 0.0, %v3716
      %v3718 = vpop.f32.mrb[0].mxu0
      %v3719 = vadd.f32 0.0, %v3718
      %v3720 = vpop.f32.mrb[0].mxu0
      %v3721 = vadd.f32 0.0, %v3720
      %3722 = vdwg.mxu0
      %v3723 = vpack.c.bf16 %v3569, %v3565
      %v3724 = vpack.c.bf16 %v3571, %v3567
      %v3725 = vpack.c.bf16 %v3579, %v3575
      %v3726 = vpack.c.bf16 %v3581, %v3577
      %v3727 = vpack.c.bf16 %v3589, %v3585
      %v3728 = vpack.c.bf16 %v3591, %v3587
      %v3729 = vpack.c.bf16 %v3599, %v3595
      %v3730 = vpack.c.bf16 %v3601, %v3597
      %v3731 = vpack.c.bf16 %v3609, %v3605
      %v3732 = vpack.c.bf16 %v3611, %v3607
      %v3733 = vpack.c.bf16 %v3619, %v3615
      %v3734 = vpack.c.bf16 %v3621, %v3617
      %v3735 = vpack.c.bf16 %v3629, %v3625
      %v3736 = vpack.c.bf16 %v3631, %v3627
      %v3737 = vpack.c.bf16 %v3639, %v3635
      %v3738 = vpack.c.bf16 %v3641, %v3637
      %v3739 = vpack.c.bf16 %v3649, %v3645
      %v3740 = vpack.c.bf16 %v3651, %v3647
      %v3741 = vpack.c.bf16 %v3659, %v3655
      %v3742 = vpack.c.bf16 %v3661, %v3657
      %v3743 = vpack.c.bf16 %v3669, %v3665
      %v3744 = vpack.c.bf16 %v3671, %v3667
      %v3745 = vpack.c.bf16 %v3679, %v3675
      %v3746 = vpack.c.bf16 %v3681, %v3677
      %v3747 = vpack.c.bf16 %v3689, %v3685
      %v3748 = vpack.c.bf16 %v3691, %v3687
      %v3749 = vpack.c.bf16 %v3699, %v3695
      %v3750 = vpack.c.bf16 %v3701, %v3697
      %v3751 = vpack.c.bf16 %v3709, %v3705
      %v3752 = vpack.c.bf16 %v3711, %v3707
      %v3753 = vpack.c.bf16 %v3719, %v3715
      %v3754 = vpack.c.bf16 %v3721, %v3717
      %v3757 = vunpack.c.l.s4 1966171168
      %v3758 = vunpack.c.0.s8 %v3757
      %v3759 = vlaneseq
      %v3760 = vshrl.u32 %v3759, 7
      %v3761 = vsub.s32 %v3758, %v3760
      %v3762 = vrot.slane %v3369, %v3761
      %v3763 = vcombine.high %v3762, %v3762
      %v3765 = vunpack.c.l.s4 1966171168
      %v3766 = vunpack.c.0.s8 %v3765
      %v3767 = vlaneseq
      %v3768 = vshrl.u32 %v3767, 7
      %v3769 = vsub.s32 %v3766, %v3768
      %v3770 = vrot.slane %v3762, %v3769
      %v3772 = vunpack.c.l.s4 1966171168
      %v3773 = vunpack.c.0.s8 %v3772
      %v3774 = vlaneseq
      %v3775 = vshrl.u32 %v3774, 7
      %v3776 = vsub.s32 %v3773, %v3775
      %v3777 = vrot.slane %v3763, %v3776
      %v3779 = vpack.i.b16 %v3770, %v3770
      %v3781 = vlaneseq
      %v3782 = vshrl.u32 %v3781, 7
      %v3783 = vsub.s32 0, %v3782
      %v3784 = vrot.slane %v3779, %v3783
      %v3786 = vpack.i.b16 %v3777, %v3777
      %v3788 = vlaneseq
      %v3789 = vshrl.u32 %v3788, 7
      %v3790 = vsub.s32 0, %v3789
      %v3791 = vrot.slane %v3786, %v3790
      %v3792 = vadd.bf16 %v3723, %v3784
      %v3793 = vadd.bf16 %v3724, %v3791
      %v3794 = vadd.bf16 %v3725, %v3784
      %v3795 = vadd.bf16 %v3726, %v3791
      %v3796 = vadd.bf16 %v3727, %v3784
      %v3797 = vadd.bf16 %v3728, %v3791
      %v3798 = vadd.bf16 %v3729, %v3784
      %v3799 = vadd.bf16 %v3730, %v3791
      %v3800 = vadd.bf16 %v3731, %v3784
      %v3801 = vadd.bf16 %v3732, %v3791
      %v3802 = vadd.bf16 %v3733, %v3784
      %v3803 = vadd.bf16 %v3734, %v3791
      %v3804 = vadd.bf16 %v3735, %v3784
      %v3805 = vadd.bf16 %v3736, %v3791
      %v3806 = vadd.bf16 %v3737, %v3784
      %v3807 = vadd.bf16 %v3738, %v3791
      %v3808 = vadd.bf16 %v3739, %v3784
      %v3809 = vadd.bf16 %v3740, %v3791
      %v3810 = vadd.bf16 %v3741, %v3784
      %v3811 = vadd.bf16 %v3742, %v3791
      %v3812 = vadd.bf16 %v3743, %v3784
      %v3813 = vadd.bf16 %v3744, %v3791
      %v3814 = vadd.bf16 %v3745, %v3784
      %v3815 = vadd.bf16 %v3746, %v3791
      %v3816 = vadd.bf16 %v3747, %v3784
      %v3817 = vadd.bf16 %v3748, %v3791
      %v3818 = vadd.bf16 %v3749, %v3784
      %v3819 = vadd.bf16 %v3750, %v3791
      %v3820 = vadd.bf16 %v3751, %v3784
      %v3821 = vadd.bf16 %v3752, %v3791
      %v3822 = vadd.bf16 %v3753, %v3784
      %v3823 = vadd.bf16 %v3754, %v3791
      %v3824 = vmul.bf16 %v3792, 1045249613
      %v3825 = vmul.bf16 %v3793, 1045249613
      %v3826 = vmul.bf16 %v3794, 1045249613
      %v3827 = vmul.bf16 %v3795, 1045249613
      %v3828 = vmul.bf16 %v3796, 1045249613
      %v3829 = vmul.bf16 %v3797, 1045249613
      %v3830 = vmul.bf16 %v3798, 1045249613
      %v3831 = vmul.bf16 %v3799, 1045249613
      %v3832 = vmul.bf16 %v3800, 1045249613
      %v3833 = vmul.bf16 %v3801, 1045249613
      %v3834 = vmul.bf16 %v3802, 1045249613
      %v3835 = vmul.bf16 %v3803, 1045249613
      %v3836 = vmul.bf16 %v3804, 1045249613
      %v3837 = vmul.bf16 %v3805, 1045249613
      %v3838 = vmul.bf16 %v3806, 1045249613
      %v3839 = vmul.bf16 %v3807, 1045249613
      %v3840 = vmul.bf16 %v3808, 1045249613
      %v3841 = vmul.bf16 %v3809, 1045249613
      %v3842 = vmul.bf16 %v3810, 1045249613
      %v3843 = vmul.bf16 %v3811, 1045249613
      %v3844 = vmul.bf16 %v3812, 1045249613
      %v3845 = vmul.bf16 %v3813, 1045249613
      %v3846 = vmul.bf16 %v3814, 1045249613
      %v3847 = vmul.bf16 %v3815, 1045249613
      %v3848 = vmul.bf16 %v3816, 1045249613
      %v3849 = vmul.bf16 %v3817, 1045249613
      %v3850 = vmul.bf16 %v3818, 1045249613
      %v3851 = vmul.bf16 %v3819, 1045249613
      %v3852 = vmul.bf16 %v3820, 1045249613
      %v3853 = vmul.bf16 %v3821, 1045249613
      %v3854 = vmul.bf16 %v3822, 1045249613
      %v3855 = vmul.bf16 %v3823, 1045249613
      %v3856 = vmax.bf16 %v3792, %v3824
      %v3857 = vmax.bf16 %v3793, %v3825
      %v3858 = vmax.bf16 %v3794, %v3826
      %v3859 = vmax.bf16 %v3795, %v3827
      %v3860 = vmax.bf16 %v3796, %v3828
      %v3861 = vmax.bf16 %v3797, %v3829
      %v3862 = vmax.bf16 %v3798, %v3830
      %v3863 = vmax.bf16 %v3799, %v3831
      %v3864 = vmax.bf16 %v3800, %v3832
      %v3865 = vmax.bf16 %v3801, %v3833
      %v3866 = vmax.bf16 %v3802, %v3834
      %v3867 = vmax.bf16 %v3803, %v3835
      %v3868 = vmax.bf16 %v3804, %v3836
      %v3869 = vmax.bf16 %v3805, %v3837
      %v3870 = vmax.bf16 %v3806, %v3838
      %v3871 = vmax.bf16 %v3807, %v3839
      %v3872 = vmax.bf16 %v3808, %v3840
      %v3873 = vmax.bf16 %v3809, %v3841
      %v3874 = vmax.bf16 %v3810, %v3842
      %v3875 = vmax.bf16 %v3811, %v3843
      %v3876 = vmax.bf16 %v3812, %v3844
      %v3877 = vmax.bf16 %v3813, %v3845
      %v3878 = vmax.bf16 %v3814, %v3846
      %v3879 = vmax.bf16 %v3815, %v3847
      %v3880 = vmax.bf16 %v3816, %v3848
      %v3881 = vmax.bf16 %v3817, %v3849
      %v3882 = vmax.bf16 %v3818, %v3850
      %v3883 = vmax.bf16 %v3819, %v3851
      %v3884 = vmax.bf16 %v3820, %v3852
      %v3885 = vmax.bf16 %v3821, %v3853
      %v3886 = vmax.bf16 %v3822, %v3854
      %v3887 = vmax.bf16 %v3823, %v3855
      %v3888 = vld [vmem:[%s1355] sm:$0xff]
      %v3889 = vld [vmem:[%s1355 + $0x8] sm:$0xff]
      %v3890 = vld [vmem:[%s1355 + $0x10] sm:$0xff]
      %v3891 = vld [vmem:[%s1355 + $0x18] sm:$0xff]
      %v3892 = vld [vmem:[%s1355 + $0x20] sm:$0xff]
      %v3893 = vld [vmem:[%s1355 + $0x28] sm:$0xff]
      %v3894 = vld [vmem:[%s1355 + $0x30] sm:$0xff]
      %v3895 = vld [vmem:[%s1355 + $0x38] sm:$0xff]
      %v3896 = vld [vmem:[%s1355 + $0x40] sm:$0xff]
      %v3897 = vld [vmem:[%s1355 + $0x48] sm:$0xff]
      %v3898 = vld [vmem:[%s1355 + $0x50] sm:$0xff]
      %v3899 = vld [vmem:[%s1355 + $0x58] sm:$0xff]
      %v3900 = vld [vmem:[%s1355 + $0x60] sm:$0xff]
      %v3901 = vld [vmem:[%s1355 + $0x68] sm:$0xff]
      %v3902 = vld [vmem:[%s1355 + $0x70] sm:$0xff]
      %v3903 = vld [vmem:[%s1355 + $0x78] sm:$0xff]
      %v3904 = vld [vmem:[%s1355 + $0x80] sm:$0xff]
      %v3905 = vld [vmem:[%s1355 + $0x88] sm:$0xff]
      %v3906 = vld [vmem:[%s1355 + $0x90] sm:$0xff]
      %v3907 = vld [vmem:[%s1355 + $0x98] sm:$0xff]
      %v3908 = vld [vmem:[%s1355 + $0xa0] sm:$0xff]
      %v3909 = vld [vmem:[%s1355 + $0xa8] sm:$0xff]
      %v3910 = vld [vmem:[%s1355 + $0xb0] sm:$0xff]
      %v3911 = vld [vmem:[%s1355 + $0xb8] sm:$0xff]
      %v3912 = vld [vmem:[%s1355 + $0xc0] sm:$0xff]
      %v3913 = vld [vmem:[%s1355 + $0xc8] sm:$0xff]
      %v3914 = vld [vmem:[%s1355 + $0xd0] sm:$0xff]
      %v3915 = vld [vmem:[%s1355 + $0xd8] sm:$0xff]
      %v3916 = vld [vmem:[%s1355 + $0xe0] sm:$0xff]
      %v3917 = vld [vmem:[%s1355 + $0xe8] sm:$0xff]
      %v3918 = vld [vmem:[%s1355 + $0xf0] sm:$0xff]
      %v3919 = vld [vmem:[%s1355 + $0xf8] sm:$0xff]
      %v3920 = vld [vmem:[%s1388] sm:$0x3]
      %v3953 = vunpack.c.l.b16 %v3888
      %v3954 = vunpack.c.h.b16 %v3888
      %v3955 = vunpack.c.l.b16 %v3889
      %v3956 = vunpack.c.h.b16 %v3889
      %v3957 = vunpack.c.l.b16 %v3890
      %v3958 = vunpack.c.h.b16 %v3890
      %v3959 = vunpack.c.l.b16 %v3891
      %v3960 = vunpack.c.h.b16 %v3891
      %v3961 = vunpack.c.l.b16 %v3892
      %v3962 = vunpack.c.h.b16 %v3892
      %v3963 = vunpack.c.l.b16 %v3893
      %v3964 = vunpack.c.h.b16 %v3893
      %v3965 = vunpack.c.l.b16 %v3894
      %v3966 = vunpack.c.h.b16 %v3894
      %v3967 = vunpack.c.l.b16 %v3895
      %v3968 = vunpack.c.h.b16 %v3895
      %v3969 = vunpack.c.l.b16 %v3896
      %v3970 = vunpack.c.h.b16 %v3896
      %v3971 = vunpack.c.l.b16 %v3897
      %v3972 = vunpack.c.h.b16 %v3897
      %v3973 = vunpack.c.l.b16 %v3898
      %v3974 = vunpack.c.h.b16 %v3898
      %v3975 = vunpack.c.l.b16 %v3899
      %v3976 = vunpack.c.h.b16 %v3899
      %v3977 = vunpack.c.l.b16 %v3900
      %v3978 = vunpack.c.h.b16 %v3900
      %v3979 = vunpack.c.l.b16 %v3901
      %v3980 = vunpack.c.h.b16 %v3901
      %v3981 = vunpack.c.l.b16 %v3902
      %v3982 = vunpack.c.h.b16 %v3902
      %v3983 = vunpack.c.l.b16 %v3903
      %v3984 = vunpack.c.h.b16 %v3903
      %v3985 = vunpack.c.l.b16 %v3904
      %v3986 = vunpack.c.h.b16 %v3904
      %v3987 = vunpack.c.l.b16 %v3905
      %v3988 = vunpack.c.h.b16 %v3905
      %v3989 = vunpack.c.l.b16 %v3906
      %v3990 = vunpack.c.h.b16 %v3906
      %v3991 = vunpack.c.l.b16 %v3907
      %v3992 = vunpack.c.h.b16 %v3907
      %v3993 = vunpack.c.l.b16 %v3908
      %v3994 = vunpack.c.h.b16 %v3908
      %v3995 = vunpack.c.l.b16 %v3909
      %v3996 = vunpack.c.h.b16 %v3909
      %v3997 = vunpack.c.l.b16 %v3910
      %v3998 = vunpack.c.h.b16 %v3910
      %v3999 = vunpack.c.l.b16 %v3911
      %v4000 = vunpack.c.h.b16 %v3911
      %v4001 = vunpack.c.l.b16 %v3912
      %v4002 = vunpack.c.h.b16 %v3912
      %v4003 = vunpack.c.l.b16 %v3913
      %v4004 = vunpack.c.h.b16 %v3913
      %v4005 = vunpack.c.l.b16 %v3914
      %v4006 = vunpack.c.h.b16 %v3914
      %v4007 = vunpack.c.l.b16 %v3915
      %v4008 = vunpack.c.h.b16 %v3915
      %v4009 = vunpack.c.l.b16 %v3916
      %v4010 = vunpack.c.h.b16 %v3916
      %v4011 = vunpack.c.l.b16 %v3917
      %v4012 = vunpack.c.h.b16 %v3917
      %v4013 = vunpack.c.l.b16 %v3918
      %v4014 = vunpack.c.h.b16 %v3918
      %v4015 = vunpack.c.l.b16 %v3919
      %v4016 = vunpack.c.h.b16 %v3919
      %v4017 = vpack.c.b16 %v3955, %v3953
      %v4018 = vpack.c.b16 %v3956, %v3954
      %v4019 = vpack.c.b16 %v3959, %v3957
      %v4020 = vpack.c.b16 %v3960, %v3958
      %v4021 = vpack.c.b16 %v3963, %v3961
      %v4022 = vpack.c.b16 %v3964, %v3962
      %v4023 = vpack.c.b16 %v3967, %v3965
      %v4024 = vpack.c.b16 %v3968, %v3966
      %v4025 = vpack.c.b16 %v3971, %v3969
      %v4026 = vpack.c.b16 %v3972, %v3970
      %v4027 = vpack.c.b16 %v3975, %v3973
      %v4028 = vpack.c.b16 %v3976, %v3974
      %v4029 = vpack.c.b16 %v3979, %v3977
      %v4030 = vpack.c.b16 %v3980, %v3978
      %v4031 = vpack.c.b16 %v3983, %v3981
      %v4032 = vpack.c.b16 %v3984, %v3982
      %v4033 = vpack.c.b16 %v3987, %v3985
      %v4034 = vpack.c.b16 %v3988, %v3986
      %v4035 = vpack.c.b16 %v3991, %v3989
      %v4036 = vpack.c.b16 %v3992, %v3990
      %v4037 = vpack.c.b16 %v3995, %v3993
      %v4038 = vpack.c.b16 %v3996, %v3994
      %v4039 = vpack.c.b16 %v3999, %v3997
      %v4040 = vpack.c.b16 %v4000, %v3998
      %v4041 = vpack.c.b16 %v4003, %v4001
      %v4042 = vpack.c.b16 %v4004, %v4002
      %v4043 = vpack.c.b16 %v4007, %v4005
      %v4044 = vpack.c.b16 %v4008, %v4006
      %v4045 = vpack.c.b16 %v4011, %v4009
      %v4046 = vpack.c.b16 %v4012, %v4010
      %v4047 = vpack.c.b16 %v4015, %v4013
      %v4048 = vpack.c.b16 %v4016, %v4014
      %4081 = vmatprep.subr.bf16.mxu0 %v4018
      %4082 = vmatpush1.bf16.msra.mxu0 %v4017
      %4083 = vmatprep.subr.bf16.mxu0 %v4020
      %4084 = vmatpush1.bf16.msra.mxu0 %v4019
      %4085 = vmatprep.subr.bf16.mxu0 %v4022
      %4086 = vmatpush1.bf16.msra.mxu0 %v4021
      %4087 = vmatprep.subr.bf16.mxu0 %v4024
      %4088 = vmatpush1.bf16.msra.mxu0 %v4023
      %4089 = vmatprep.subr.bf16.mxu0 %v4026
      %4090 = vmatpush1.bf16.msra.mxu0 %v4025
      %4091 = vmatprep.subr.bf16.mxu0 %v4028
      %4092 = vmatpush1.bf16.msra.mxu0 %v4027
      %4093 = vmatprep.subr.bf16.mxu0 %v4030
      %4094 = vmatpush1.bf16.msra.mxu0 %v4029
      %4095 = vmatprep.subr.bf16.mxu0 %v4032
      %4096 = vmatpush1.bf16.msra.mxu0 %v4031
      %4097 = vmatprep.subr.bf16.mxu0 %v4034
      %4098 = vmatpush1.bf16.msra.mxu0 %v4033
      %4099 = vmatprep.subr.bf16.mxu0 %v4036
      %4100 = vmatpush1.bf16.msra.mxu0 %v4035
      %4101 = vmatprep.subr.bf16.mxu0 %v4038
      %4102 = vmatpush1.bf16.msra.mxu0 %v4037
      %4103 = vmatprep.subr.bf16.mxu0 %v4040
      %4104 = vmatpush1.bf16.msra.mxu0 %v4039
      %4105 = vmatprep.subr.bf16.mxu0 %v4042
      %4106 = vmatpush1.bf16.msra.mxu0 %v4041
      %4107 = vmatprep.subr.bf16.mxu0 %v4044
      %4108 = vmatpush1.bf16.msra.mxu0 %v4043
      %4109 = vmatprep.subr.bf16.mxu0 %v4046
      %4110 = vmatpush1.bf16.msra.mxu0 %v4045
      %4111 = vmatprep.subr.bf16.mxu0 %v4048
      %4112 = vmatpush1.bf16.msra.mxu0 %v4047
      %4113 = vmatprep.mubr.bf16.mxu0 %v3857
      %4114 = vmatmul.mubr.bf16.gmra.mrb[0].mxu0 %v3856
      %v4115 = vpop.f32.mrb[0].mxu0
      %v4116 = vadd.f32 0.0, %v4115
      %v4117 = vpop.f32.mrb[0].mxu0
      %v4118 = vadd.f32 0.0, %v4117
      %v4119 = vpop.f32.mrb[0].mxu0
      %v4120 = vadd.f32 0.0, %v4119
      %v4121 = vpop.f32.mrb[0].mxu0
      %v4122 = vadd.f32 0.0, %v4121
      %4123 = vmatprep.mubr.bf16.mxu0 %v3859
      %4124 = vmatmul.mubr.bf16.gmra.mrb[0].mxu0 %v3858
      %v4125 = vpop.f32.mrb[0].mxu0
      %v4126 = vadd.f32 0.0, %v4125
      %v4127 = vpop.f32.mrb[0].mxu0
      %v4128 = vadd.f32 0.0, %v4127
      %v4129 = vpop.f32.mrb[0].mxu0
      %v4130 = vadd.f32 0.0, %v4129
      %v4131 = vpop.f32.mrb[0].mxu0
      %v4132 = vadd.f32 0.0, %v4131
      %4133 = vmatprep.mubr.bf16.mxu0 %v3861
      %4134 = vmatmul.mubr.bf16.gmra.mrb[0].mxu0 %v3860
      %v4135 = vpop.f32.mrb[0].mxu0
      %v4136 = vadd.f32 0.0, %v4135
      %v4137 = vpop.f32.mrb[0].mxu0
      %v4138 = vadd.f32 0.0, %v4137
      %v4139 = vpop.f32.mrb[0].mxu0
      %v4140 = vadd.f32 0.0, %v4139
      %v4141 = vpop.f32.mrb[0].mxu0
      %v4142 = vadd.f32 0.0, %v4141
      %4143 = vmatprep.mubr.bf16.mxu0 %v3863
      %4144 = vmatmul.mubr.bf16.gmra.mrb[0].mxu0 %v3862
      %v4145 = vpop.f32.mrb[0].mxu0
      %v4146 = vadd.f32 0.0, %v4145
      %v4147 = vpop.f32.mrb[0].mxu0
      %v4148 = vadd.f32 0.0, %v4147
      %v4149 = vpop.f32.mrb[0].mxu0
      %v4150 = vadd.f32 0.0, %v4149
      %v4151 = vpop.f32.mrb[0].mxu0
      %v4152 = vadd.f32 0.0, %v4151
      %4153 = vmatprep.mubr.bf16.mxu0 %v3865
      %4154 = vmatmul.mubr.bf16.gmra.mrb[0].mxu0 %v3864
      %v4155 = vpop.f32.mrb[0].mxu0
      %v4156 = vadd.f32 0.0, %v4155
      %v4157 = vpop.f32.mrb[0].mxu0
      %v4158 = vadd.f32 0.0, %v4157
      %v4159 = vpop.f32.mrb[0].mxu0
      %v4160 = vadd.f32 0.0, %v4159
      %v4161 = vpop.f32.mrb[0].mxu0
      %v4162 = vadd.f32 0.0, %v4161
      %4163 = vmatprep.mubr.bf16.mxu0 %v3867
      %4164 = vmatmul.mubr.bf16.gmra.mrb[0].mxu0 %v3866
      %v4165 = vpop.f32.mrb[0].mxu0
      %v4166 = vadd.f32 0.0, %v4165
      %v4167 = vpop.f32.mrb[0].mxu0
      %v4168 = vadd.f32 0.0, %v4167
      %v4169 = vpop.f32.mrb[0].mxu0
      %v4170 = vadd.f32 0.0, %v4169
      %v4171 = vpop.f32.mrb[0].mxu0
      %v4172 = vadd.f32 0.0, %v4171
      %4173 = vmatprep.mubr.bf16.mxu0 %v3869
      %4174 = vmatmul.mubr.bf16.gmra.mrb[0].mxu0 %v3868
      %v4175 = vpop.f32.mrb[0].mxu0
      %v4176 = vadd.f32 0.0, %v4175
      %v4177 = vpop.f32.mrb[0].mxu0
      %v4178 = vadd.f32 0.0, %v4177
      %v4179 = vpop.f32.mrb[0].mxu0
      %v4180 = vadd.f32 0.0, %v4179
      %v4181 = vpop.f32.mrb[0].mxu0
      %v4182 = vadd.f32 0.0, %v4181
      %4183 = vmatprep.mubr.bf16.mxu0 %v3871
      %4184 = vmatmul.mubr.bf16.gmra.mrb[0].mxu0 %v3870
      %v4185 = vpop.f32.mrb[0].mxu0
      %v4186 = vadd.f32 0.0, %v4185
      %v4187 = vpop.f32.mrb[0].mxu0
      %v4188 = vadd.f32 0.0, %v4187
      %v4189 = vpop.f32.mrb[0].mxu0
      %v4190 = vadd.f32 0.0, %v4189
      %v4191 = vpop.f32.mrb[0].mxu0
      %v4192 = vadd.f32 0.0, %v4191
      %4193 = vmatprep.mubr.bf16.mxu0 %v3873
      %4194 = vmatmul.mubr.bf16.gmra.mrb[0].mxu0 %v3872
      %v4195 = vpop.f32.mrb[0].mxu0
      %v4196 = vadd.f32 0.0, %v4195
      %v4197 = vpop.f32.mrb[0].mxu0
      %v4198 = vadd.f32 0.0, %v4197
      %v4199 = vpop.f32.mrb[0].mxu0
      %v4200 = vadd.f32 0.0, %v4199
      %v4201 = vpop.f32.mrb[0].mxu0
      %v4202 = vadd.f32 0.0, %v4201
      %4203 = vmatprep.mubr.bf16.mxu0 %v3875
      %4204 = vmatmul.mubr.bf16.gmra.mrb[0].mxu0 %v3874
      %v4205 = vpop.f32.mrb[0].mxu0
      %v4206 = vadd.f32 0.0, %v4205
      %v4207 = vpop.f32.mrb[0].mxu0
      %v4208 = vadd.f32 0.0, %v4207
      %v4209 = vpop.f32.mrb[0].mxu0
      %v4210 = vadd.f32 0.0, %v4209
      %v4211 = vpop.f32.mrb[0].mxu0
      %v4212 = vadd.f32 0.0, %v4211
      %4213 = vmatprep.mubr.bf16.mxu0 %v3877
      %4214 = vmatmul.mubr.bf16.gmra.mrb[0].mxu0 %v3876
      %v4215 = vpop.f32.mrb[0].mxu0
      %v4216 = vadd.f32 0.0, %v4215
      %v4217 = vpop.f32.mrb[0].mxu0
      %v4218 = vadd.f32 0.0, %v4217
      %v4219 = vpop.f32.mrb[0].mxu0
      %v4220 = vadd.f32 0.0, %v4219
      %v4221 = vpop.f32.mrb[0].mxu0
      %v4222 = vadd.f32 0.0, %v4221
      %4223 = vmatprep.mubr.bf16.mxu0 %v3879
      %4224 = vmatmul.mubr.bf16.gmra.mrb[0].mxu0 %v3878
      %v4225 = vpop.f32.mrb[0].mxu0
      %v4226 = vadd.f32 0.0, %v4225
      %v4227 = vpop.f32.mrb[0].mxu0
      %v4228 = vadd.f32 0.0, %v4227
      %v4229 = vpop.f32.mrb[0].mxu0
      %v4230 = vadd.f32 0.0, %v4229
      %v4231 = vpop.f32.mrb[0].mxu0
      %v4232 = vadd.f32 0.0, %v4231
      %4233 = vmatprep.mubr.bf16.mxu0 %v3881
      %4234 = vmatmul.mubr.bf16.gmra.mrb[0].mxu0 %v3880
      %v4235 = vpop.f32.mrb[0].mxu0
      %v4236 = vadd.f32 0.0, %v4235
      %v4237 = vpop.f32.mrb[0].mxu0
      %v4238 = vadd.f32 0.0, %v4237
      %v4239 = vpop.f32.mrb[0].mxu0
      %v4240 = vadd.f32 0.0, %v4239
      %v4241 = vpop.f32.mrb[0].mxu0
      %v4242 = vadd.f32 0.0, %v4241
      %4243 = vmatprep.mubr.bf16.mxu0 %v3883
      %4244 = vmatmul.mubr.bf16.gmra.mrb[0].mxu0 %v3882
      %v4245 = vpop.f32.mrb[0].mxu0
      %v4246 = vadd.f32 0.0, %v4245
      %v4247 = vpop.f32.mrb[0].mxu0
      %v4248 = vadd.f32 0.0, %v4247
      %v4249 = vpop.f32.mrb[0].mxu0
      %v4250 = vadd.f32 0.0, %v4249
      %v4251 = vpop.f32.mrb[0].mxu0
      %v4252 = vadd.f32 0.0, %v4251
      %4253 = vmatprep.mubr.bf16.mxu0 %v3885
      %4254 = vmatmul.mubr.bf16.gmra.mrb[0].mxu0 %v3884
      %v4255 = vpop.f32.mrb[0].mxu0
      %v4256 = vadd.f32 0.0, %v4255
      %v4257 = vpop.f32.mrb[0].mxu0
      %v4258 = vadd.f32 0.0, %v4257
      %v4259 = vpop.f32.mrb[0].mxu0
      %v4260 = vadd.f32 0.0, %v4259
      %v4261 = vpop.f32.mrb[0].mxu0
      %v4262 = vadd.f32 0.0, %v4261
      %4263 = vmatprep.mubr.bf16.mxu0 %v3887
      %4264 = vmatmul.mubr.bf16.gmra.mrb[0].mxu0 %v3886
      %v4265 = vpop.f32.mrb[0].mxu0
      %v4266 = vadd.f32 0.0, %v4265
      %v4267 = vpop.f32.mrb[0].mxu0
      %v4268 = vadd.f32 0.0, %v4267
      %v4269 = vpop.f32.mrb[0].mxu0
      %v4270 = vadd.f32 0.0, %v4269
      %v4271 = vpop.f32.mrb[0].mxu0
      %v4272 = vadd.f32 0.0, %v4271
      %4273 = vdwg.mxu0
      %v4274 = vpack.c.bf16 %v4120, %v4116
      %v4275 = vpack.c.bf16 %v4122, %v4118
      %v4276 = vpack.c.bf16 %v4130, %v4126
      %v4277 = vpack.c.bf16 %v4132, %v4128
      %v4278 = vpack.c.bf16 %v4140, %v4136
      %v4279 = vpack.c.bf16 %v4142, %v4138
      %v4280 = vpack.c.bf16 %v4150, %v4146
      %v4281 = vpack.c.bf16 %v4152, %v4148
      %v4282 = vpack.c.bf16 %v4160, %v4156
      %v4283 = vpack.c.bf16 %v4162, %v4158
      %v4284 = vpack.c.bf16 %v4170, %v4166
      %v4285 = vpack.c.bf16 %v4172, %v4168
      %v4286 = vpack.c.bf16 %v4180, %v4176
      %v4287 = vpack.c.bf16 %v4182, %v4178
      %v4288 = vpack.c.bf16 %v4190, %v4186
      %v4289 = vpack.c.bf16 %v4192, %v4188
      %v4290 = vpack.c.bf16 %v4200, %v4196
      %v4291 = vpack.c.bf16 %v4202, %v4198
      %v4292 = vpack.c.bf16 %v4210, %v4206
      %v4293 = vpack.c.bf16 %v4212, %v4208
      %v4294 = vpack.c.bf16 %v4220, %v4216
      %v4295 = vpack.c.bf16 %v4222, %v4218
      %v4296 = vpack.c.bf16 %v4230, %v4226
      %v4297 = vpack.c.bf16 %v4232, %v4228
      %v4298 = vpack.c.bf16 %v4240, %v4236
      %v4299 = vpack.c.bf16 %v4242, %v4238
      %v4300 = vpack.c.bf16 %v4250, %v4246
      %v4301 = vpack.c.bf16 %v4252, %v4248
      %v4302 = vpack.c.bf16 %v4260, %v4256
      %v4303 = vpack.c.bf16 %v4262, %v4258
      %v4304 = vpack.c.bf16 %v4270, %v4266
      %v4305 = vpack.c.bf16 %v4272, %v4268
      %v4308 = vunpack.c.l.s4 1966171168
      %v4309 = vunpack.c.0.s8 %v4308
      %v4310 = vlaneseq
      %v4311 = vshrl.u32 %v4310, 7
      %v4312 = vsub.s32 %v4309, %v4311
      %v4313 = vrot.slane %v3920, %v4312
      %v4314 = vcombine.high %v4313, %v4313
      %v4316 = vunpack.c.l.s4 1966171168
      %v4317 = vunpack.c.0.s8 %v4316
      %v4318 = vlaneseq
      %v4319 = vshrl.u32 %v4318, 7
      %v4320 = vsub.s32 %v4317, %v4319
      %v4321 = vrot.slane %v4313, %v4320
      %v4323 = vunpack.c.l.s4 1966171168
      %v4324 = vunpack.c.0.s8 %v4323
      %v4325 = vlaneseq
      %v4326 = vshrl.u32 %v4325, 7
      %v4327 = vsub.s32 %v4324, %v4326
      %v4328 = vrot.slane %v4314, %v4327
      %v4330 = vpack.i.b16 %v4321, %v4321
      %v4332 = vlaneseq
      %v4333 = vshrl.u32 %v4332, 7
      %v4334 = vsub.s32 0, %v4333
      %v4335 = vrot.slane %v4330, %v4334
      %v4337 = vpack.i.b16 %v4328, %v4328
      %v4339 = vlaneseq
      %v4340 = vshrl.u32 %v4339, 7
      %v4341 = vsub.s32 0, %v4340
      %v4342 = vrot.slane %v4337, %v4341
      %v4343 = vadd.bf16 %v4274, %v4335
      %v4344 = vadd.bf16 %v4275, %v4342
      %v4345 = vadd.bf16 %v4276, %v4335
      %v4346 = vadd.bf16 %v4277, %v4342
      %v4347 = vadd.bf16 %v4278, %v4335
      %v4348 = vadd.bf16 %v4279, %v4342
      %v4349 = vadd.bf16 %v4280, %v4335
      %v4350 = vadd.bf16 %v4281, %v4342
      %v4351 = vadd.bf16 %v4282, %v4335
      %v4352 = vadd.bf16 %v4283, %v4342
      %v4353 = vadd.bf16 %v4284, %v4335
      %v4354 = vadd.bf16 %v4285, %v4342
      %v4355 = vadd.bf16 %v4286, %v4335
      %v4356 = vadd.bf16 %v4287, %v4342
      %v4357 = vadd.bf16 %v4288, %v4335
      %v4358 = vadd.bf16 %v4289, %v4342
      %v4359 = vadd.bf16 %v4290, %v4335
      %v4360 = vadd.bf16 %v4291, %v4342
      %v4361 = vadd.bf16 %v4292, %v4335
      %v4362 = vadd.bf16 %v4293, %v4342
      %v4363 = vadd.bf16 %v4294, %v4335
      %v4364 = vadd.bf16 %v4295, %v4342
      %v4365 = vadd.bf16 %v4296, %v4335
      %v4366 = vadd.bf16 %v4297, %v4342
      %v4367 = vadd.bf16 %v4298, %v4335
      %v4368 = vadd.bf16 %v4299, %v4342
      %v4369 = vadd.bf16 %v4300, %v4335
      %v4370 = vadd.bf16 %v4301, %v4342
      %v4371 = vadd.bf16 %v4302, %v4335
      %v4372 = vadd.bf16 %v4303, %v4342
      %v4373 = vadd.bf16 %v4304, %v4335
      %v4374 = vadd.bf16 %v4305, %v4342
      %v4375 = vmul.bf16 %v4343, 1045249613
      %v4376 = vmul.bf16 %v4344, 1045249613
      %v4377 = vmul.bf16 %v4345, 1045249613
      %v4378 = vmul.bf16 %v4346, 1045249613
      %v4379 = vmul.bf16 %v4347, 1045249613
      %v4380 = vmul.bf16 %v4348, 1045249613
      %v4381 = vmul.bf16 %v4349, 1045249613
      %v4382 = vmul.bf16 %v4350, 1045249613
      %v4383 = vmul.bf16 %v4351, 1045249613
      %v4384 = vmul.bf16 %v4352, 1045249613
      %v4385 = vmul.bf16 %v4353, 1045249613
      %v4386 = vmul.bf16 %v4354, 1045249613
      %v4387 = vmul.bf16 %v4355, 1045249613
      %v4388 = vmul.bf16 %v4356, 1045249613
      %v4389 = vmul.bf16 %v4357, 1045249613
      %v4390 = vmul.bf16 %v4358, 1045249613
      %v4391 = vmul.bf16 %v4359, 1045249613
      %v4392 = vmul.bf16 %v4360, 1045249613
      %v4393 = vmul.bf16 %v4361, 1045249613
      %v4394 = vmul.bf16 %v4362, 1045249613
      %v4395 = vmul.bf16 %v4363, 1045249613
      %v4396 = vmul.bf16 %v4364, 1045249613
      %v4397 = vmul.bf16 %v4365, 1045249613
      %v4398 = vmul.bf16 %v4366, 1045249613
      %v4399 = vmul.bf16 %v4367, 1045249613
      %v4400 = vmul.bf16 %v4368, 1045249613
      %v4401 = vmul.bf16 %v4369, 1045249613
      %v4402 = vmul.bf16 %v4370, 1045249613
      %v4403 = vmul.bf16 %v4371, 1045249613
      %v4404 = vmul.bf16 %v4372, 1045249613
      %v4405 = vmul.bf16 %v4373, 1045249613
      %v4406 = vmul.bf16 %v4374, 1045249613
      %v4407 = vmax.bf16 %v4343, %v4375
      %v4408 = vmax.bf16 %v4344, %v4376
      %v4409 = vmax.bf16 %v4345, %v4377
      %v4410 = vmax.bf16 %v4346, %v4378
      %v4411 = vmax.bf16 %v4347, %v4379
      %v4412 = vmax.bf16 %v4348, %v4380
      %v4413 = vmax.bf16 %v4349, %v4381
      %v4414 = vmax.bf16 %v4350, %v4382
      %v4415 = vmax.bf16 %v4351, %v4383
      %v4416 = vmax.bf16 %v4352, %v4384
      %v4417 = vmax.bf16 %v4353, %v4385
      %v4418 = vmax.bf16 %v4354, %v4386
      %v4419 = vmax.bf16 %v4355, %v4387
      %v4420 = vmax.bf16 %v4356, %v4388
      %v4421 = vmax.bf16 %v4357, %v4389
      %v4422 = vmax.bf16 %v4358, %v4390
      %v4423 = vmax.bf16 %v4359, %v4391
      %v4424 = vmax.bf16 %v4360, %v4392
      %v4425 = vmax.bf16 %v4361, %v4393
      %v4426 = vmax.bf16 %v4362, %v4394
      %v4427 = vmax.bf16 %v4363, %v4395
      %v4428 = vmax.bf16 %v4364, %v4396
      %v4429 = vmax.bf16 %v4365, %v4397
      %v4430 = vmax.bf16 %v4366, %v4398
      %v4431 = vmax.bf16 %v4367, %v4399
      %v4432 = vmax.bf16 %v4368, %v4400
      %v4433 = vmax.bf16 %v4369, %v4401
      %v4434 = vmax.bf16 %v4370, %v4402
      %v4435 = vmax.bf16 %v4371, %v4403
      %v4436 = vmax.bf16 %v4372, %v4404
      %v4437 = vmax.bf16 %v4373, %v4405
      %v4438 = vmax.bf16 %v4374, %v4406
      %v4439 = vld [vmem:[%s1908] sm:$0xff]
      %v4440 = vld [vmem:[%s1908 + $0x8] sm:$0xff]
      %v4441 = vld [vmem:[%s1908 + $0x10] sm:$0xff]
      %v4442 = vld [vmem:[%s1908 + $0x18] sm:$0xff]
      %v4443 = vld [vmem:[%s1908 + $0x20] sm:$0xff]
      %v4444 = vld [vmem:[%s1908 + $0x28] sm:$0xff]
      %v4445 = vld [vmem:[%s1908 + $0x30] sm:$0xff]
      %v4446 = vld [vmem:[%s1908 + $0x38] sm:$0xff]
      %v4447 = vld [vmem:[%s1908 + $0x40] sm:$0xff]
      %v4448 = vld [vmem:[%s1908 + $0x48] sm:$0xff]
      %v4449 = vld [vmem:[%s1908 + $0x50] sm:$0xff]
      %v4450 = vld [vmem:[%s1908 + $0x58] sm:$0xff]
      %v4451 = vld [vmem:[%s1908 + $0x60] sm:$0xff]
      %v4452 = vld [vmem:[%s1908 + $0x68] sm:$0xff]
      %v4453 = vld [vmem:[%s1908 + $0x70] sm:$0xff]
      %v4454 = vld [vmem:[%s1908 + $0x78] sm:$0xff]
      %v4455 = vld [vmem:[%s1908 + $0x80] sm:$0xff]
      %v4456 = vld [vmem:[%s1908 + $0x88] sm:$0xff]
      %v4457 = vld [vmem:[%s1908 + $0x90] sm:$0xff]
      %v4458 = vld [vmem:[%s1908 + $0x98] sm:$0xff]
      %v4459 = vld [vmem:[%s1908 + $0xa0] sm:$0xff]
      %v4460 = vld [vmem:[%s1908 + $0xa8] sm:$0xff]
      %v4461 = vld [vmem:[%s1908 + $0xb0] sm:$0xff]
      %v4462 = vld [vmem:[%s1908 + $0xb8] sm:$0xff]
      %v4463 = vld [vmem:[%s1908 + $0xc0] sm:$0xff]
      %v4464 = vld [vmem:[%s1908 + $0xc8] sm:$0xff]
      %v4465 = vld [vmem:[%s1908 + $0xd0] sm:$0xff]
      %v4466 = vld [vmem:[%s1908 + $0xd8] sm:$0xff]
      %v4467 = vld [vmem:[%s1908 + $0xe0] sm:$0xff]
      %v4468 = vld [vmem:[%s1908 + $0xe8] sm:$0xff]
      %v4469 = vld [vmem:[%s1908 + $0xf0] sm:$0xff]
      %v4470 = vld [vmem:[%s1908 + $0xf8] sm:$0xff]
      %v4471 = vld [vmem:[%s1941] sm:$0x3]
      %v4504 = vunpack.c.l.b16 %v4439
      %v4505 = vunpack.c.h.b16 %v4439
      %v4506 = vunpack.c.l.b16 %v4440
      %v4507 = vunpack.c.h.b16 %v4440
      %v4508 = vunpack.c.l.b16 %v4441
      %v4509 = vunpack.c.h.b16 %v4441
      %v4510 = vunpack.c.l.b16 %v4442
      %v4511 = vunpack.c.h.b16 %v4442
      %v4512 = vunpack.c.l.b16 %v4443
      %v4513 = vunpack.c.h.b16 %v4443
      %v4514 = vunpack.c.l.b16 %v4444
      %v4515 = vunpack.c.h.b16 %v4444
      %v4516 = vunpack.c.l.b16 %v4445
      %v4517 = vunpack.c.h.b16 %v4445
      %v4518 = vunpack.c.l.b16 %v4446
      %v4519 = vunpack.c.h.b16 %v4446
      %v4520 = vunpack.c.l.b16 %v4447
      %v4521 = vunpack.c.h.b16 %v4447
      %v4522 = vunpack.c.l.b16 %v4448
      %v4523 = vunpack.c.h.b16 %v4448
      %v4524 = vunpack.c.l.b16 %v4449
      %v4525 = vunpack.c.h.b16 %v4449
      %v4526 = vunpack.c.l.b16 %v4450
      %v4527 = vunpack.c.h.b16 %v4450
      %v4528 = vunpack.c.l.b16 %v4451
      %v4529 = vunpack.c.h.b16 %v4451
      %v4530 = vunpack.c.l.b16 %v4452
      %v4531 = vunpack.c.h.b16 %v4452
      %v4532 = vunpack.c.l.b16 %v4453
      %v4533 = vunpack.c.h.b16 %v4453
      %v4534 = vunpack.c.l.b16 %v4454
      %v4535 = vunpack.c.h.b16 %v4454
      %v4536 = vunpack.c.l.b16 %v4455
      %v4537 = vunpack.c.h.b16 %v4455
      %v4538 = vunpack.c.l.b16 %v4456
      %v4539 = vunpack.c.h.b16 %v4456
      %v4540 = vunpack.c.l.b16 %v4457
      %v4541 = vunpack.c.h.b16 %v4457
      %v4542 = vunpack.c.l.b16 %v4458
      %v4543 = vunpack.c.h.b16 %v4458
      %v4544 = vunpack.c.l.b16 %v4459
      %v4545 = vunpack.c.h.b16 %v4459
      %v4546 = vunpack.c.l.b16 %v4460
      %v4547 = vunpack.c.h.b16 %v4460
      %v4548 = vunpack.c.l.b16 %v4461
      %v4549 = vunpack.c.h.b16 %v4461
      %v4550 = vunpack.c.l.b16 %v4462
      %v4551 = vunpack.c.h.b16 %v4462
      %v4552 = vunpack.c.l.b16 %v4463
      %v4553 = vunpack.c.h.b16 %v4463
      %v4554 = vunpack.c.l.b16 %v4464
      %v4555 = vunpack.c.h.b16 %v4464
      %v4556 = vunpack.c.l.b16 %v4465
      %v4557 = vunpack.c.h.b16 %v4465
      %v4558 = vunpack.c.l.b16 %v4466
      %v4559 = vunpack.c.h.b16 %v4466
      %v4560 = vunpack.c.l.b16 %v4467
      %v4561 = vunpack.c.h.b16 %v4467
      %v4562 = vunpack.c.l.b16 %v4468
      %v4563 = vunpack.c.h.b16 %v4468
      %v4564 = vunpack.c.l.b16 %v4469
      %v4565 = vunpack.c.h.b16 %v4469
      %v4566 = vunpack.c.l.b16 %v4470
      %v4567 = vunpack.c.h.b16 %v4470
      %v4568 = vpack.c.b16 %v4506, %v4504
      %v4569 = vpack.c.b16 %v4507, %v4505
      %v4570 = vpack.c.b16 %v4510, %v4508
      %v4571 = vpack.c.b16 %v4511, %v4509
      %v4572 = vpack.c.b16 %v4514, %v4512
      %v4573 = vpack.c.b16 %v4515, %v4513
      %v4574 = vpack.c.b16 %v4518, %v4516
      %v4575 = vpack.c.b16 %v4519, %v4517
      %v4576 = vpack.c.b16 %v4522, %v4520
      %v4577 = vpack.c.b16 %v4523, %v4521
      %v4578 = vpack.c.b16 %v4526, %v4524
      %v4579 = vpack.c.b16 %v4527, %v4525
      %v4580 = vpack.c.b16 %v4530, %v4528
      %v4581 = vpack.c.b16 %v4531, %v4529
      %v4582 = vpack.c.b16 %v4534, %v4532
      %v4583 = vpack.c.b16 %v4535, %v4533
      %v4584 = vpack.c.b16 %v4538, %v4536
      %v4585 = vpack.c.b16 %v4539, %v4537
      %v4586 = vpack.c.b16 %v4542, %v4540
      %v4587 = vpack.c.b16 %v4543, %v4541
      %v4588 = vpack.c.b16 %v4546, %v4544
      %v4589 = vpack.c.b16 %v4547, %v4545
      %v4590 = vpack.c.b16 %v4550, %v4548
      %v4591 = vpack.c.b16 %v4551, %v4549
      %v4592 = vpack.c.b16 %v4554, %v4552
      %v4593 = vpack.c.b16 %v4555, %v4553
      %v4594 = vpack.c.b16 %v4558, %v4556
      %v4595 = vpack.c.b16 %v4559, %v4557
      %v4596 = vpack.c.b16 %v4562, %v4560
      %v4597 = vpack.c.b16 %v4563, %v4561
      %v4598 = vpack.c.b16 %v4566, %v4564
      %v4599 = vpack.c.b16 %v4567, %v4565
      %4632 = vmatprep.subr.bf16.mxu0 %v4569
      %4633 = vmatpush1.bf16.msra.mxu0 %v4568
      %4634 = vmatprep.subr.bf16.mxu0 %v4571
      %4635 = vmatpush1.bf16.msra.mxu0 %v4570
      %4636 = vmatprep.subr.bf16.mxu0 %v4573
      %4637 = vmatpush1.bf16.msra.mxu0 %v4572
      %4638 = vmatprep.subr.bf16.mxu0 %v4575
      %4639 = vmatpush1.bf16.msra.mxu0 %v4574
      %4640 = vmatprep.subr.bf16.mxu0 %v4577
      %4641 = vmatpush1.bf16.msra.mxu0 %v4576
      %4642 = vmatprep.subr.bf16.mxu0 %v4579
      %4643 = vmatpush1.bf16.msra.mxu0 %v4578
      %4644 = vmatprep.subr.bf16.mxu0 %v4581
      %4645 = vmatpush1.bf16.msra.mxu0 %v4580
      %4646 = vmatprep.subr.bf16.mxu0 %v4583
      %4647 = vmatpush1.bf16.msra.mxu0 %v4582
      %4648 = vmatprep.subr.bf16.mxu0 %v4585
      %4649 = vmatpush1.bf16.msra.mxu0 %v4584
      %4650 = vmatprep.subr.bf16.mxu0 %v4587
      %4651 = vmatpush1.bf16.msra.mxu0 %v4586
      %4652 = vmatprep.subr.bf16.mxu0 %v4589
      %4653 = vmatpush1.bf16.msra.mxu0 %v4588
      %4654 = vmatprep.subr.bf16.mxu0 %v4591
      %4655 = vmatpush1.bf16.msra.mxu0 %v4590
      %4656 = vmatprep.subr.bf16.mxu0 %v4593
      %4657 = vmatpush1.bf16.msra.mxu0 %v4592
      %4658 = vmatprep.subr.bf16.mxu0 %v4595
      %4659 = vmatpush1.bf16.msra.mxu0 %v4594
      %4660 = vmatprep.subr.bf16.mxu0 %v4597
      %4661 = vmatpush1.bf16.msra.mxu0 %v4596
      %4662 = vmatprep.subr.bf16.mxu0 %v4599
      %4663 = vmatpush1.bf16.msra.mxu0 %v4598
      %4664 = vmatprep.mubr.bf16.mxu0 %v4408
      %4665 = vmatmul.mubr.bf16.gmra.mrb[0].mxu0 %v4407
      %v4666 = vpop.f32.mrb[0].mxu0
      %v4667 = vadd.f32 0.0, %v4666
      %v4668 = vpop.f32.mrb[0].mxu0
      %v4669 = vadd.f32 0.0, %v4668
      %v4670 = vpop.f32.mrb[0].mxu0
      %v4671 = vadd.f32 0.0, %v4670
      %v4672 = vpop.f32.mrb[0].mxu0
      %v4673 = vadd.f32 0.0, %v4672
      %4674 = vmatprep.mubr.bf16.mxu0 %v4410
      %4675 = vmatmul.mubr.bf16.gmra.mrb[0].mxu0 %v4409
      %v4676 = vpop.f32.mrb[0].mxu0
      %v4677 = vadd.f32 0.0, %v4676
      %v4678 = vpop.f32.mrb[0].mxu0
      %v4679 = vadd.f32 0.0, %v4678
      %v4680 = vpop.f32.mrb[0].mxu0
      %v4681 = vadd.f32 0.0, %v4680
      %v4682 = vpop.f32.mrb[0].mxu0
      %v4683 = vadd.f32 0.0, %v4682
      %4684 = vmatprep.mubr.bf16.mxu0 %v4412
      %4685 = vmatmul.mubr.bf16.gmra.mrb[0].mxu0 %v4411
      %v4686 = vpop.f32.mrb[0].mxu0
      %v4687 = vadd.f32 0.0, %v4686
      %v4688 = vpop.f32.mrb[0].mxu0
      %v4689 = vadd.f32 0.0, %v4688
      %v4690 = vpop.f32.mrb[0].mxu0
      %v4691 = vadd.f32 0.0, %v4690
      %v4692 = vpop.f32.mrb[0].mxu0
      %v4693 = vadd.f32 0.0, %v4692
      %4694 = vmatprep.mubr.bf16.mxu0 %v4414
      %4695 = vmatmul.mubr.bf16.gmra.mrb[0].mxu0 %v4413
      %v4696 = vpop.f32.mrb[0].mxu0
      %v4697 = vadd.f32 0.0, %v4696
      %v4698 = vpop.f32.mrb[0].mxu0
      %v4699 = vadd.f32 0.0, %v4698
      %v4700 = vpop.f32.mrb[0].mxu0
      %v4701 = vadd.f32 0.0, %v4700
      %v4702 = vpop.f32.mrb[0].mxu0
      %v4703 = vadd.f32 0.0, %v4702
      %4704 = vmatprep.mubr.bf16.mxu0 %v4416
      %4705 = vmatmul.mubr.bf16.gmra.mrb[0].mxu0 %v4415
      %v4706 = vpop.f32.mrb[0].mxu0
      %v4707 = vadd.f32 0.0, %v4706
      %v4708 = vpop.f32.mrb[0].mxu0
      %v4709 = vadd.f32 0.0, %v4708
      %v4710 = vpop.f32.mrb[0].mxu0
      %v4711 = vadd.f32 0.0, %v4710
      %v4712 = vpop.f32.mrb[0].mxu0
      %v4713 = vadd.f32 0.0, %v4712
      %4714 = vmatprep.mubr.bf16.mxu0 %v4418
      %4715 = vmatmul.mubr.bf16.gmra.mrb[0].mxu0 %v4417
      %v4716 = vpop.f32.mrb[0].mxu0
      %v4717 = vadd.f32 0.0, %v4716
      %v4718 = vpop.f32.mrb[0].mxu0
      %v4719 = vadd.f32 0.0, %v4718
      %v4720 = vpop.f32.mrb[0].mxu0
      %v4721 = vadd.f32 0.0, %v4720
      %v4722 = vpop.f32.mrb[0].mxu0
      %v4723 = vadd.f32 0.0, %v4722
      %4724 = vmatprep.mubr.bf16.mxu0 %v4420
      %4725 = vmatmul.mubr.bf16.gmra.mrb[0].mxu0 %v4419
      %v4726 = vpop.f32.mrb[0].mxu0
      %v4727 = vadd.f32 0.0, %v4726
      %v4728 = vpop.f32.mrb[0].mxu0
      %v4729 = vadd.f32 0.0, %v4728
      %v4730 = vpop.f32.mrb[0].mxu0
      %v4731 = vadd.f32 0.0, %v4730
      %v4732 = vpop.f32.mrb[0].mxu0
      %v4733 = vadd.f32 0.0, %v4732
      %4734 = vmatprep.mubr.bf16.mxu0 %v4422
      %4735 = vmatmul.mubr.bf16.gmra.mrb[0].mxu0 %v4421
      %v4736 = vpop.f32.mrb[0].mxu0
      %v4737 = vadd.f32 0.0, %v4736
      %v4738 = vpop.f32.mrb[0].mxu0
      %v4739 = vadd.f32 0.0, %v4738
      %v4740 = vpop.f32.mrb[0].mxu0
      %v4741 = vadd.f32 0.0, %v4740
      %v4742 = vpop.f32.mrb[0].mxu0
      %v4743 = vadd.f32 0.0, %v4742
      %4744 = vmatprep.mubr.bf16.mxu0 %v4424
      %4745 = vmatmul.mubr.bf16.gmra.mrb[0].mxu0 %v4423
      %v4746 = vpop.f32.mrb[0].mxu0
      %v4747 = vadd.f32 0.0, %v4746
      %v4748 = vpop.f32.mrb[0].mxu0
      %v4749 = vadd.f32 0.0, %v4748
      %v4750 = vpop.f32.mrb[0].mxu0
      %v4751 = vadd.f32 0.0, %v4750
      %v4752 = vpop.f32.mrb[0].mxu0
      %v4753 = vadd.f32 0.0, %v4752
      %4754 = vmatprep.mubr.bf16.mxu0 %v4426
      %4755 = vmatmul.mubr.bf16.gmra.mrb[0].mxu0 %v4425
      %v4756 = vpop.f32.mrb[0].mxu0
      %v4757 = vadd.f32 0.0, %v4756
      %v4758 = vpop.f32.mrb[0].mxu0
      %v4759 = vadd.f32 0.0, %v4758
      %v4760 = vpop.f32.mrb[0].mxu0
      %v4761 = vadd.f32 0.0, %v4760
      %v4762 = vpop.f32.mrb[0].mxu0
      %v4763 = vadd.f32 0.0, %v4762
      %4764 = vmatprep.mubr.bf16.mxu0 %v4428
      %4765 = vmatmul.mubr.bf16.gmra.mrb[0].mxu0 %v4427
      %v4766 = vpop.f32.mrb[0].mxu0
      %v4767 = vadd.f32 0.0, %v4766
      %v4768 = vpop.f32.mrb[0].mxu0
      %v4769 = vadd.f32 0.0, %v4768
      %v4770 = vpop.f32.mrb[0].mxu0
      %v4771 = vadd.f32 0.0, %v4770
      %v4772 = vpop.f32.mrb[0].mxu0
      %v4773 = vadd.f32 0.0, %v4772
      %4774 = vmatprep.mubr.bf16.mxu0 %v4430
      %4775 = vmatmul.mubr.bf16.gmra.mrb[0].mxu0 %v4429
      %v4776 = vpop.f32.mrb[0].mxu0
      %v4777 = vadd.f32 0.0, %v4776
      %v4778 = vpop.f32.mrb[0].mxu0
      %v4779 = vadd.f32 0.0, %v4778
      %v4780 = vpop.f32.mrb[0].mxu0
      %v4781 = vadd.f32 0.0, %v4780
      %v4782 = vpop.f32.mrb[0].mxu0
      %v4783 = vadd.f32 0.0, %v4782
      %4784 = vmatprep.mubr.bf16.mxu0 %v4432
      %4785 = vmatmul.mubr.bf16.gmra.mrb[0].mxu0 %v4431
      %v4786 = vpop.f32.mrb[0].mxu0
      %v4787 = vadd.f32 0.0, %v4786
      %v4788 = vpop.f32.mrb[0].mxu0
      %v4789 = vadd.f32 0.0, %v4788
      %v4790 = vpop.f32.mrb[0].mxu0
      %v4791 = vadd.f32 0.0, %v4790
      %v4792 = vpop.f32.mrb[0].mxu0
      %v4793 = vadd.f32 0.0, %v4792
      %4794 = vmatprep.mubr.bf16.mxu0 %v4434
      %4795 = vmatmul.mubr.bf16.gmra.mrb[0].mxu0 %v4433
      %v4796 = vpop.f32.mrb[0].mxu0
      %v4797 = vadd.f32 0.0, %v4796
      %v4798 = vpop.f32.mrb[0].mxu0
      %v4799 = vadd.f32 0.0, %v4798
      %v4800 = vpop.f32.mrb[0].mxu0
      %v4801 = vadd.f32 0.0, %v4800
      %v4802 = vpop.f32.mrb[0].mxu0
      %v4803 = vadd.f32 0.0, %v4802
      %4804 = vmatprep.mubr.bf16.mxu0 %v4436
      %4805 = vmatmul.mubr.bf16.gmra.mrb[0].mxu0 %v4435
      %v4806 = vpop.f32.mrb[0].mxu0
      %v4807 = vadd.f32 0.0, %v4806
      %v4808 = vpop.f32.mrb[0].mxu0
      %v4809 = vadd.f32 0.0, %v4808
      %v4810 = vpop.f32.mrb[0].mxu0
      %v4811 = vadd.f32 0.0, %v4810
      %v4812 = vpop.f32.mrb[0].mxu0
      %v4813 = vadd.f32 0.0, %v4812
      %4814 = vmatprep.mubr.bf16.mxu0 %v4438
      %4815 = vmatmul.mubr.bf16.gmra.mrb[0].mxu0 %v4437
      %v4816 = vpop.f32.mrb[0].mxu0
      %v4817 = vadd.f32 0.0, %v4816
      %v4818 = vpop.f32.mrb[0].mxu0
      %v4819 = vadd.f32 0.0, %v4818
      %v4820 = vpop.f32.mrb[0].mxu0
      %v4821 = vadd.f32 0.0, %v4820
      %v4822 = vpop.f32.mrb[0].mxu0
      %v4823 = vadd.f32 0.0, %v4822
      %4824 = vdwg.mxu0
      %v4825 = vpack.c.bf16 %v4671, %v4667
      %v4826 = vpack.c.bf16 %v4673, %v4669
      %v4827 = vpack.c.bf16 %v4681, %v4677
      %v4828 = vpack.c.bf16 %v4683, %v4679
      %v4829 = vpack.c.bf16 %v4691, %v4687
      %v4830 = vpack.c.bf16 %v4693, %v4689
      %v4831 = vpack.c.bf16 %v4701, %v4697
      %v4832 = vpack.c.bf16 %v4703, %v4699
      %v4833 = vpack.c.bf16 %v4711, %v4707
      %v4834 = vpack.c.bf16 %v4713, %v4709
      %v4835 = vpack.c.bf16 %v4721, %v4717
      %v4836 = vpack.c.bf16 %v4723, %v4719
      %v4837 = vpack.c.bf16 %v4731, %v4727
      %v4838 = vpack.c.bf16 %v4733, %v4729
      %v4839 = vpack.c.bf16 %v4741, %v4737
      %v4840 = vpack.c.bf16 %v4743, %v4739
      %v4841 = vpack.c.bf16 %v4751, %v4747
      %v4842 = vpack.c.bf16 %v4753, %v4749
      %v4843 = vpack.c.bf16 %v4761, %v4757
      %v4844 = vpack.c.bf16 %v4763, %v4759
      %v4845 = vpack.c.bf16 %v4771, %v4767
      %v4846 = vpack.c.bf16 %v4773, %v4769
      %v4847 = vpack.c.bf16 %v4781, %v4777
      %v4848 = vpack.c.bf16 %v4783, %v4779
      %v4849 = vpack.c.bf16 %v4791, %v4787
      %v4850 = vpack.c.bf16 %v4793, %v4789
      %v4851 = vpack.c.bf16 %v4801, %v4797
      %v4852 = vpack.c.bf16 %v4803, %v4799
      %v4853 = vpack.c.bf16 %v4811, %v4807
      %v4854 = vpack.c.bf16 %v4813, %v4809
      %v4855 = vpack.c.bf16 %v4821, %v4817
      %v4856 = vpack.c.bf16 %v4823, %v4819
      %v4859 = vunpack.c.l.s4 1966171168
      %v4860 = vunpack.c.0.s8 %v4859
      %v4861 = vlaneseq
      %v4862 = vshrl.u32 %v4861, 7
      %v4863 = vsub.s32 %v4860, %v4862
      %v4864 = vrot.slane %v4471, %v4863
      %v4865 = vcombine.high %v4864, %v4864
      %v4867 = vunpack.c.l.s4 1966171168
      %v4868 = vunpack.c.0.s8 %v4867
      %v4869 = vlaneseq
      %v4870 = vshrl.u32 %v4869, 7
      %v4871 = vsub.s32 %v4868, %v4870
      %v4872 = vrot.slane %v4864, %v4871
      %v4874 = vunpack.c.l.s4 1966171168
      %v4875 = vunpack.c.0.s8 %v4874
      %v4876 = vlaneseq
      %v4877 = vshrl.u32 %v4876, 7
      %v4878 = vsub.s32 %v4875, %v4877
      %v4879 = vrot.slane %v4865, %v4878
      %v4881 = vpack.i.b16 %v4872, %v4872
      %v4883 = vlaneseq
      %v4884 = vshrl.u32 %v4883, 7
      %v4885 = vsub.s32 0, %v4884
      %v4886 = vrot.slane %v4881, %v4885
      %v4888 = vpack.i.b16 %v4879, %v4879
      %v4890 = vlaneseq
      %v4891 = vshrl.u32 %v4890, 7
      %v4892 = vsub.s32 0, %v4891
      %v4893 = vrot.slane %v4888, %v4892
      %v4894 = vadd.bf16 %v4825, %v4886
      %v4895 = vadd.bf16 %v4826, %v4893
      %v4896 = vadd.bf16 %v4827, %v4886
      %v4897 = vadd.bf16 %v4828, %v4893
      %v4898 = vadd.bf16 %v4829, %v4886
      %v4899 = vadd.bf16 %v4830, %v4893
      %v4900 = vadd.bf16 %v4831, %v4886
      %v4901 = vadd.bf16 %v4832, %v4893
      %v4902 = vadd.bf16 %v4833, %v4886
      %v4903 = vadd.bf16 %v4834, %v4893
      %v4904 = vadd.bf16 %v4835, %v4886
      %v4905 = vadd.bf16 %v4836, %v4893
      %v4906 = vadd.bf16 %v4837, %v4886
      %v4907 = vadd.bf16 %v4838, %v4893
      %v4908 = vadd.bf16 %v4839, %v4886
      %v4909 = vadd.bf16 %v4840, %v4893
      %v4910 = vadd.bf16 %v4841, %v4886
      %v4911 = vadd.bf16 %v4842, %v4893
      %v4912 = vadd.bf16 %v4843, %v4886
      %v4913 = vadd.bf16 %v4844, %v4893
      %v4914 = vadd.bf16 %v4845, %v4886
      %v4915 = vadd.bf16 %v4846, %v4893
      %v4916 = vadd.bf16 %v4847, %v4886
      %v4917 = vadd.bf16 %v4848, %v4893
      %v4918 = vadd.bf16 %v4849, %v4886
      %v4919 = vadd.bf16 %v4850, %v4893
      %v4920 = vadd.bf16 %v4851, %v4886
      %v4921 = vadd.bf16 %v4852, %v4893
      %v4922 = vadd.bf16 %v4853, %v4886
      %v4923 = vadd.bf16 %v4854, %v4893
      %v4924 = vadd.bf16 %v4855, %v4886
      %v4925 = vadd.bf16 %v4856, %v4893
      %v4926 = vmul.bf16 %v4894, 1045249613
      %v4927 = vmul.bf16 %v4895, 1045249613
      %v4928 = vmul.bf16 %v4896, 1045249613
      %v4929 = vmul.bf16 %v4897, 1045249613
      %v4930 = vmul.bf16 %v4898, 1045249613
      %v4931 = vmul.bf16 %v4899, 1045249613
      %v4932 = vmul.bf16 %v4900, 1045249613
      %v4933 = vmul.bf16 %v4901, 1045249613
      %v4934 = vmul.bf16 %v4902, 1045249613
      %v4935 = vmul.bf16 %v4903, 1045249613
      %v4936 = vmul.bf16 %v4904, 1045249613
      %v4937 = vmul.bf16 %v4905, 1045249613
      %v4938 = vmul.bf16 %v4906, 1045249613
      %v4939 = vmul.bf16 %v4907, 1045249613
      %v4940 = vmul.bf16 %v4908, 1045249613
      %v4941 = vmul.bf16 %v4909, 1045249613
      %v4942 = vmul.bf16 %v4910, 1045249613
      %v4943 = vmul.bf16 %v4911, 1045249613
      %v4944 = vmul.bf16 %v4912, 1045249613
      %v4945 = vmul.bf16 %v4913, 1045249613
      %v4946 = vmul.bf16 %v4914, 1045249613
      %v4947 = vmul.bf16 %v4915, 1045249613
      %v4948 = vmul.bf16 %v4916, 1045249613
      %v4949 = vmul.bf16 %v4917, 1045249613
      %v4950 = vmul.bf16 %v4918, 1045249613
      %v4951 = vmul.bf16 %v4919, 1045249613
      %v4952 = vmul.bf16 %v4920, 1045249613
      %v4953 = vmul.bf16 %v4921, 1045249613
      %v4954 = vmul.bf16 %v4922, 1045249613
      %v4955 = vmul.bf16 %v4923, 1045249613
      %v4956 = vmul.bf16 %v4924, 1045249613
      %v4957 = vmul.bf16 %v4925, 1045249613
      %v4958 = vmax.bf16 %v4894, %v4926
      %v4959 = vmax.bf16 %v4895, %v4927
      %v4960 = vmax.bf16 %v4896, %v4928
      %v4961 = vmax.bf16 %v4897, %v4929
      %v4962 = vmax.bf16 %v4898, %v4930
      %v4963 = vmax.bf16 %v4899, %v4931
      %v4964 = vmax.bf16 %v4900, %v4932
      %v4965 = vmax.bf16 %v4901, %v4933
      %v4966 = vmax.bf16 %v4902, %v4934
      %v4967 = vmax.bf16 %v4903, %v4935
      %v4968 = vmax.bf16 %v4904, %v4936
      %v4969 = vmax.bf16 %v4905, %v4937
      %v4970 = vmax.bf16 %v4906, %v4938
      %v4971 = vmax.bf16 %v4907, %v4939
      %v4972 = vmax.bf16 %v4908, %v4940
      %v4973 = vmax.bf16 %v4909, %v4941
      %v4974 = vmax.bf16 %v4910, %v4942
      %v4975 = vmax.bf16 %v4911, %v4943
      %v4976 = vmax.bf16 %v4912, %v4944
      %v4977 = vmax.bf16 %v4913, %v4945
      %v4978 = vmax.bf16 %v4914, %v4946
      %v4979 = vmax.bf16 %v4915, %v4947
      %v4980 = vmax.bf16 %v4916, %v4948
      %v4981 = vmax.bf16 %v4917, %v4949
      %v4982 = vmax.bf16 %v4918, %v4950
      %v4983 = vmax.bf16 %v4919, %v4951
      %v4984 = vmax.bf16 %v4920, %v4952
      %v4985 = vmax.bf16 %v4921, %v4953
      %v4986 = vmax.bf16 %v4922, %v4954
      %v4987 = vmax.bf16 %v4923, %v4955
      %v4988 = vmax.bf16 %v4924, %v4956
      %v4989 = vmax.bf16 %v4925, %v4957
      %v4990 = vld [vmem:[%s5] sm:$0xf]
      %v4991 = vld [vmem:[%s5 + $0x4] sm:$0xf]
      %v4992 = vld [vmem:[%s5 + $0x8] sm:$0xf]
      %v4993 = vld [vmem:[%s5 + $0xc] sm:$0xf]
      %v4994 = vld [vmem:[%s5 + $0x10] sm:$0xf]
      %v4995 = vld [vmem:[%s5 + $0x14] sm:$0xf]
      %v4996 = vld [vmem:[%s5 + $0x18] sm:$0xf]
      %v4997 = vld [vmem:[%s5 + $0x1c] sm:$0xf]
      %v4998 = vld [vmem:[%s5 + $0x20] sm:$0xf]
      %v4999 = vld [vmem:[%s5 + $0x24] sm:$0xf]
      %v5000 = vld [vmem:[%s5 + $0x28] sm:$0xf]
      %v5001 = vld [vmem:[%s5 + $0x2c] sm:$0xf]
      %v5002 = vld [vmem:[%s5 + $0x30] sm:$0xf]
      %v5003 = vld [vmem:[%s5 + $0x34] sm:$0xf]
      %v5004 = vld [vmem:[%s5 + $0x38] sm:$0xf]
      %v5005 = vld [vmem:[%s5 + $0x3c] sm:$0xf]
      %v5006 = vld [vmem:[%s5 + $0x40] sm:$0xf]
      %v5007 = vld [vmem:[%s5 + $0x44] sm:$0xf]
      %v5008 = vld [vmem:[%s5 + $0x48] sm:$0xf]
      %v5009 = vld [vmem:[%s5 + $0x4c] sm:$0xf]
      %v5010 = vld [vmem:[%s5 + $0x50] sm:$0xf]
      %v5011 = vld [vmem:[%s5 + $0x54] sm:$0xf]
      %v5012 = vld [vmem:[%s5 + $0x58] sm:$0xf]
      %v5013 = vld [vmem:[%s5 + $0x5c] sm:$0xf]
      %v5014 = vld [vmem:[%s5 + $0x60] sm:$0xf]
      %v5015 = vld [vmem:[%s5 + $0x64] sm:$0xf]
      %v5016 = vld [vmem:[%s5 + $0x68] sm:$0xf]
      %v5017 = vld [vmem:[%s5 + $0x6c] sm:$0xf]
      %v5018 = vld [vmem:[%s5 + $0x70] sm:$0xf]
      %v5019 = vld [vmem:[%s5 + $0x74] sm:$0xf]
      %v5020 = vld [vmem:[%s5 + $0x78] sm:$0xf]
      %v5021 = vld [vmem:[%s5 + $0x7c] sm:$0xf]
      %v5054 = vunpack.c.l.b16 %v4990
      %v5055 = vunpack.c.l.b16 %v4991
      %v5056 = vunpack.c.l.b16 %v4992
      %v5057 = vunpack.c.l.b16 %v4993
      %v5058 = vunpack.c.l.b16 %v4994
      %v5059 = vunpack.c.l.b16 %v4995
      %v5060 = vunpack.c.l.b16 %v4996
      %v5061 = vunpack.c.l.b16 %v4997
      %v5062 = vunpack.c.l.b16 %v4998
      %v5063 = vunpack.c.l.b16 %v4999
      %v5064 = vunpack.c.l.b16 %v5000
      %v5065 = vunpack.c.l.b16 %v5001
      %v5066 = vunpack.c.l.b16 %v5002
      %v5067 = vunpack.c.l.b16 %v5003
      %v5068 = vunpack.c.l.b16 %v5004
      %v5069 = vunpack.c.l.b16 %v5005
      %v5070 = vunpack.c.l.b16 %v5006
      %v5071 = vunpack.c.l.b16 %v5007
      %v5072 = vunpack.c.l.b16 %v5008
      %v5073 = vunpack.c.l.b16 %v5009
      %v5074 = vunpack.c.l.b16 %v5010
      %v5075 = vunpack.c.l.b16 %v5011
      %v5076 = vunpack.c.l.b16 %v5012
      %v5077 = vunpack.c.l.b16 %v5013
      %v5078 = vunpack.c.l.b16 %v5014
      %v5079 = vunpack.c.l.b16 %v5015
      %v5080 = vunpack.c.l.b16 %v5016
      %v5081 = vunpack.c.l.b16 %v5017
      %v5082 = vunpack.c.l.b16 %v5018
      %v5083 = vunpack.c.l.b16 %v5019
      %v5084 = vunpack.c.l.b16 %v5020
      %v5085 = vunpack.c.l.b16 %v5021
      %v5086 = vpack.c.b16 %v5055, %v5054
      %v5087 = vpack.c.b16 %v5057, %v5056
      %v5088 = vpack.c.b16 %v5059, %v5058
      %v5089 = vpack.c.b16 %v5061, %v5060
      %v5090 = vpack.c.b16 %v5063, %v5062
      %v5091 = vpack.c.b16 %v5065, %v5064
      %v5092 = vpack.c.b16 %v5067, %v5066
      %v5093 = vpack.c.b16 %v5069, %v5068
      %v5094 = vpack.c.b16 %v5071, %v5070
      %v5095 = vpack.c.b16 %v5073, %v5072
      %v5096 = vpack.c.b16 %v5075, %v5074
      %v5097 = vpack.c.b16 %v5077, %v5076
      %v5098 = vpack.c.b16 %v5079, %v5078
      %v5099 = vpack.c.b16 %v5081, %v5080
      %v5100 = vpack.c.b16 %v5083, %v5082
      %v5101 = vpack.c.b16 %v5085, %v5084
      %5118 = vmatprep.subr.bf16.mxu0 0
      %5119 = vmatpush1.bf16.msra.mxu0 %v5086
      %5120 = vmatprep.subr.bf16.mxu0 0
      %5121 = vmatpush1.bf16.msra.mxu0 %v5087
      %5122 = vmatprep.subr.bf16.mxu0 0
      %5123 = vmatpush1.bf16.msra.mxu0 %v5088
      %5124 = vmatprep.subr.bf16.mxu0 0
      %5125 = vmatpush1.bf16.msra.mxu0 %v5089
      %5126 = vmatprep.subr.bf16.mxu0 0
      %5127 = vmatpush1.bf16.msra.mxu0 %v5090
      %5128 = vmatprep.subr.bf16.mxu0 0
      %5129 = vmatpush1.bf16.msra.mxu0 %v5091
      %5130 = vmatprep.subr.bf16.mxu0 0
      %5131 = vmatpush1.bf16.msra.mxu0 %v5092
      %5132 = vmatprep.subr.bf16.mxu0 0
      %5133 = vmatpush1.bf16.msra.mxu0 %v5093
      %5134 = vmatprep.subr.bf16.mxu0 0
      %5135 = vmatpush1.bf16.msra.mxu0 %v5094
      %5136 = vmatprep.subr.bf16.mxu0 0
      %5137 = vmatpush1.bf16.msra.mxu0 %v5095
      %5138 = vmatprep.subr.bf16.mxu0 0
      %5139 = vmatpush1.bf16.msra.mxu0 %v5096
      %5140 = vmatprep.subr.bf16.mxu0 0
      %5141 = vmatpush1.bf16.msra.mxu0 %v5097
      %5142 = vmatprep.subr.bf16.mxu0 0
      %5143 = vmatpush1.bf16.msra.mxu0 %v5098
      %5144 = vmatprep.subr.bf16.mxu0 0
      %5145 = vmatpush1.bf16.msra.mxu0 %v5099
      %5146 = vmatprep.subr.bf16.mxu0 0
      %5147 = vmatpush1.bf16.msra.mxu0 %v5100
      %5148 = vmatprep.subr.bf16.mxu0 0
      %5149 = vmatpush1.bf16.msra.mxu0 %v5101
      %5150 = vmatprep.mubr.bf16.mxu0 %v4959
      %5151 = vmatmul.mubr.bf16.gmra.mrb[0].mxu0 %v4958
      %v5152 = vpop.f32.mrb[0].mxu0
      %v5153 = vadd.f32 0.0, %v5152
      %v5154 = vpop.f32.mrb[0].mxu0
      %v5155 = vpop.f32.mrb[0].mxu0
      %v5156 = vadd.f32 0.0, %v5155
      %v5157 = vpop.f32.mrb[0].mxu0
      %5158 = vmatprep.mubr.bf16.mxu0 %v4961
      %5159 = vmatmul.mubr.bf16.gmra.mrb[0].mxu0 %v4960
      %v5160 = vpop.f32.mrb[0].mxu0
      %v5161 = vadd.f32 0.0, %v5160
      %v5162 = vpop.f32.mrb[0].mxu0
      %v5163 = vpop.f32.mrb[0].mxu0
      %v5164 = vadd.f32 0.0, %v5163
      %v5165 = vpop.f32.mrb[0].mxu0
      %5166 = vmatprep.mubr.bf16.mxu0 %v4963
      %5167 = vmatmul.mubr.bf16.gmra.mrb[0].mxu0 %v4962
      %v5168 = vpop.f32.mrb[0].mxu0
      %v5169 = vadd.f32 0.0, %v5168
      %v5170 = vpop.f32.mrb[0].mxu0
      %v5171 = vpop.f32.mrb[0].mxu0
      %v5172 = vadd.f32 0.0, %v5171
      %v5173 = vpop.f32.mrb[0].mxu0
      %5174 = vmatprep.mubr.bf16.mxu0 %v4965
      %5175 = vmatmul.mubr.bf16.gmra.mrb[0].mxu0 %v4964
      %v5176 = vpop.f32.mrb[0].mxu0
      %v5177 = vadd.f32 0.0, %v5176
      %v5178 = vpop.f32.mrb[0].mxu0
      %v5179 = vpop.f32.mrb[0].mxu0
      %v5180 = vadd.f32 0.0, %v5179
      %v5181 = vpop.f32.mrb[0].mxu0
      %5182 = vmatprep.mubr.bf16.mxu0 %v4967
      %5183 = vmatmul.mubr.bf16.gmra.mrb[0].mxu0 %v4966
      %v5184 = vpop.f32.mrb[0].mxu0
      %v5185 = vadd.f32 0.0, %v5184
      %v5186 = vpop.f32.mrb[0].mxu0
      %v5187 = vpop.f32.mrb[0].mxu0
      %v5188 = vadd.f32 0.0, %v5187
      %v5189 = vpop.f32.mrb[0].mxu0
      %5190 = vmatprep.mubr.bf16.mxu0 %v4969
      %5191 = vmatmul.mubr.bf16.gmra.mrb[0].mxu0 %v4968
      %v5192 = vpop.f32.mrb[0].mxu0
      %v5193 = vadd.f32 0.0, %v5192
      %v5194 = vpop.f32.mrb[0].mxu0
      %v5195 = vpop.f32.mrb[0].mxu0
      %v5196 = vadd.f32 0.0, %v5195
      %v5197 = vpop.f32.mrb[0].mxu0
      %5198 = vmatprep.mubr.bf16.mxu0 %v4971
      %5199 = vmatmul.mubr.bf16.gmra.mrb[0].mxu0 %v4970
      %v5200 = vpop.f32.mrb[0].mxu0
      %v5201 = vadd.f32 0.0, %v5200
      %v5202 = vpop.f32.mrb[0].mxu0
      %v5203 = vpop.f32.mrb[0].mxu0
      %v5204 = vadd.f32 0.0, %v5203
      %v5205 = vpop.f32.mrb[0].mxu0
      %5206 = vmatprep.mubr.bf16.mxu0 %v4973
      %5207 = vmatmul.mubr.bf16.gmra.mrb[0].mxu0 %v4972
      %v5208 = vpop.f32.mrb[0].mxu0
      %v5209 = vadd.f32 0.0, %v5208
      %v5210 = vpop.f32.mrb[0].mxu0
      %v5211 = vpop.f32.mrb[0].mxu0
      %v5212 = vadd.f32 0.0, %v5211
      %v5213 = vpop.f32.mrb[0].mxu0
      %5214 = vmatprep.mubr.bf16.mxu0 %v4975
      %5215 = vmatmul.mubr.bf16.gmra.mrb[0].mxu0 %v4974
      %v5216 = vpop.f32.mrb[0].mxu0
      %v5217 = vadd.f32 0.0, %v5216
      %v5218 = vpop.f32.mrb[0].mxu0
      %v5219 = vpop.f32.mrb[0].mxu0
      %v5220 = vadd.f32 0.0, %v5219
      %v5221 = vpop.f32.mrb[0].mxu0
      %5222 = vmatprep.mubr.bf16.mxu0 %v4977
      %5223 = vmatmul.mubr.bf16.gmra.mrb[0].mxu0 %v4976
      %v5224 = vpop.f32.mrb[0].mxu0
      %v5225 = vadd.f32 0.0, %v5224
      %v5226 = vpop.f32.mrb[0].mxu0
      %v5227 = vpop.f32.mrb[0].mxu0
      %v5228 = vadd.f32 0.0, %v5227
      %v5229 = vpop.f32.mrb[0].mxu0
      %5230 = vmatprep.mubr.bf16.mxu0 %v4979
      %5231 = vmatmul.mubr.bf16.gmra.mrb[0].mxu0 %v4978
      %v5232 = vpop.f32.mrb[0].mxu0
      %v5233 = vadd.f32 0.0, %v5232
      %v5234 = vpop.f32.mrb[0].mxu0
      %v5235 = vpop.f32.mrb[0].mxu0
      %v5236 = vadd.f32 0.0, %v5235
      %v5237 = vpop.f32.mrb[0].mxu0
      %5238 = vmatprep.mubr.bf16.mxu0 %v4981
      %5239 = vmatmul.mubr.bf16.gmra.mrb[0].mxu0 %v4980
      %v5240 = vpop.f32.mrb[0].mxu0
      %v5241 = vadd.f32 0.0, %v5240
      %v5242 = vpop.f32.mrb[0].mxu0
      %v5243 = vpop.f32.mrb[0].mxu0
      %v5244 = vadd.f32 0.0, %v5243
      %v5245 = vpop.f32.mrb[0].mxu0
      %5246 = vmatprep.mubr.bf16.mxu0 %v4983
      %5247 = vmatmul.mubr.bf16.gmra.mrb[0].mxu0 %v4982
      %v5248 = vpop.f32.mrb[0].mxu0
      %v5249 = vadd.f32 0.0, %v5248
      %v5250 = vpop.f32.mrb[0].mxu0
      %v5251 = vpop.f32.mrb[0].mxu0
      %v5252 = vadd.f32 0.0, %v5251
      %v5253 = vpop.f32.mrb[0].mxu0
      %5254 = vmatprep.mubr.bf16.mxu0 %v4985
      %5255 = vmatmul.mubr.bf16.gmra.mrb[0].mxu0 %v4984
      %v5256 = vpop.f32.mrb[0].mxu0
      %v5257 = vadd.f32 0.0, %v5256
      %v5258 = vpop.f32.mrb[0].mxu0
      %v5259 = vpop.f32.mrb[0].mxu0
      %v5260 = vadd.f32 0.0, %v5259
      %v5261 = vpop.f32.mrb[0].mxu0
      %5262 = vmatprep.mubr.bf16.mxu0 %v4987
      %5263 = vmatmul.mubr.bf16.gmra.mrb[0].mxu0 %v4986
      %v5264 = vpop.f32.mrb[0].mxu0
      %v5265 = vadd.f32 0.0, %v5264
      %v5266 = vpop.f32.mrb[0].mxu0
      %v5267 = vpop.f32.mrb[0].mxu0
      %v5268 = vadd.f32 0.0, %v5267
      %v5269 = vpop.f32.mrb[0].mxu0
      %5270 = vmatprep.mubr.bf16.mxu0 %v4989
      %5271 = vmatmul.mubr.bf16.gmra.mrb[0].mxu0 %v4988
      %v5272 = vpop.f32.mrb[0].mxu0
      %v5273 = vadd.f32 0.0, %v5272
      %v5274 = vpop.f32.mrb[0].mxu0
      %v5275 = vpop.f32.mrb[0].mxu0
      %v5276 = vadd.f32 0.0, %v5275
      %v5277 = vpop.f32.mrb[0].mxu0
      %5278 = vdwg.mxu0
      %v5279 = vld [vmem:[%s6] sm:$0x1]
      %v5281 = vlaneseq
      %v5282 = vshrl.u32 %v5281, 7
      %v5283 = vsub.s32 0, %v5282
      %v5284 = vrot.slane %v5279, %v5283
      %v5286 = vadd.f32 %v5153, %v5284
      %v5287 = vadd.f32 %v5156, %v5284
      %v5288 = vadd.f32 %v5161, %v5284
      %v5289 = vadd.f32 %v5164, %v5284
      %v5290 = vadd.f32 %v5169, %v5284
      %v5291 = vadd.f32 %v5172, %v5284
      %v5292 = vadd.f32 %v5177, %v5284
      %v5293 = vadd.f32 %v5180, %v5284
      %v5294 = vadd.f32 %v5185, %v5284
      %v5295 = vadd.f32 %v5188, %v5284
      %v5296 = vadd.f32 %v5193, %v5284
      %v5297 = vadd.f32 %v5196, %v5284
      %v5298 = vadd.f32 %v5201, %v5284
      %v5299 = vadd.f32 %v5204, %v5284
      %v5300 = vadd.f32 %v5209, %v5284
      %v5301 = vadd.f32 %v5212, %v5284
      %v5302 = vadd.f32 %v5217, %v5284
      %v5303 = vadd.f32 %v5220, %v5284
      %v5304 = vadd.f32 %v5225, %v5284
      %v5305 = vadd.f32 %v5228, %v5284
      %v5306 = vadd.f32 %v5233, %v5284
      %v5307 = vadd.f32 %v5236, %v5284
      %v5308 = vadd.f32 %v5241, %v5284
      %v5309 = vadd.f32 %v5244, %v5284
      %v5310 = vadd.f32 %v5249, %v5284
      %v5311 = vadd.f32 %v5252, %v5284
      %v5312 = vadd.f32 %v5257, %v5284
      %v5313 = vadd.f32 %v5260, %v5284
      %v5314 = vadd.f32 %v5265, %v5284
      %v5315 = vadd.f32 %v5268, %v5284
      %v5316 = vadd.f32 %v5273, %v5284
      %v5317 = vadd.f32 %v5276, %v5284
      %5318 = vst.msk [vmem:[%s280 + $0x100] sm:$0xff] %vm2789, %v5286
      %5319 = vst.msk [vmem:[%s280 + $0x108] sm:$0xff] %vm2789, %v5287
      %5320 = vst.msk [vmem:[%s280 + $0x110] sm:$0xff] %vm2789, %v5288
      %5321 = vst.msk [vmem:[%s280 + $0x118] sm:$0xff] %vm2789, %v5289
      %5322 = vst.msk [vmem:[%s280 + $0x120] sm:$0xff] %vm2789, %v5290
      %5323 = vst.msk [vmem:[%s280 + $0x128] sm:$0xff] %vm2789, %v5291
      %5324 = vst.msk [vmem:[%s280 + $0x130] sm:$0xff] %vm2789, %v5292
      %5325 = vst.msk [vmem:[%s280 + $0x138] sm:$0xff] %vm2789, %v5293
      %5326 = vst.msk [vmem:[%s280 + $0x140] sm:$0xff] %vm2789, %v5294
      %5327 = vst.msk [vmem:[%s280 + $0x148] sm:$0xff] %vm2789, %v5295
      %5328 = vst.msk [vmem:[%s280 + $0x150] sm:$0xff] %vm2789, %v5296
      %5329 = vst.msk [vmem:[%s280 + $0x158] sm:$0xff] %vm2789, %v5297
      %5330 = vst.msk [vmem:[%s280 + $0x160] sm:$0xff] %vm2789, %v5298
      %5331 = vst.msk [vmem:[%s280 + $0x168] sm:$0xff] %vm2789, %v5299
      %5332 = vst.msk [vmem:[%s280 + $0x170] sm:$0xff] %vm2789, %v5300
      %5333 = vst.msk [vmem:[%s280 + $0x178] sm:$0xff] %vm2789, %v5301
      %5334 = vst.msk [vmem:[%s280 + $0x180] sm:$0xff] %vm2789, %v5302
      %5335 = vst.msk [vmem:[%s280 + $0x188] sm:$0xff] %vm2789, %v5303
      %5336 = vst.msk [vmem:[%s280 + $0x190] sm:$0xff] %vm2789, %v5304
      %5337 = vst.msk [vmem:[%s280 + $0x198] sm:$0xff] %vm2789, %v5305
      %5338 = vst.msk [vmem:[%s280 + $0x1a0] sm:$0xff] %vm2789, %v5306
      %5339 = vst.msk [vmem:[%s280 + $0x1a8] sm:$0xff] %vm2789, %v5307
      %5340 = vst.msk [vmem:[%s280 + $0x1b0] sm:$0xff] %vm2789, %v5308
      %5341 = vst.msk [vmem:[%s280 + $0x1b8] sm:$0xff] %vm2789, %v5309
      %5342 = vst.msk [vmem:[%s280 + $0x1c0] sm:$0xff] %vm2789, %v5310
      %5343 = vst.msk [vmem:[%s280 + $0x1c8] sm:$0xff] %vm2789, %v5311
      %5344 = vst.msk [vmem:[%s280 + $0x1d0] sm:$0xff] %vm2789, %v5312
      %5345 = vst.msk [vmem:[%s280 + $0x1d8] sm:$0xff] %vm2789, %v5313
      %5346 = vst.msk [vmem:[%s280 + $0x1e0] sm:$0xff] %vm2789, %v5314
      %5347 = vst.msk [vmem:[%s280 + $0x1e8] sm:$0xff] %vm2789, %v5315
      %5348 = vst.msk [vmem:[%s280 + $0x1f0] sm:$0xff] %vm2789, %v5316
      %5349 = vst.msk [vmem:[%s280 + $0x1f8] sm:$0xff] %vm2789, %v5317
      %s5350 = smul.u32 64, %s18
      %p5351 = scmp.lt.s32.totalorder %s5350, 127
      %s5352 = scalar_select %p5351, %s5350, 127
      %s5353 = smul.addr %s5352, 8
      %s5354 = scalar_lea.vmem %s7, %s5353
      // Predicated region
      $region49: #{tpu_custom_call.1} parent=47 // pred_check
        %p5355 = pneg %p188
      $region50: #{tpu_custom_call.1} parent=47 // pred_check_branch
        %5357 = sbr.rel (%p5355) target = $region52
      $region51: #{tpu_custom_call.1} parent=47 // pred_region
        %s5358 = smul.u32 64, %s18
      $region52: #{tpu_custom_call.1} parent=47 // pred_fallthru
        _
    $region48: #{tpu_custom_call.1} parent=5 // pred_fallthru
      _
    %p5359 = scmp.le.s32.totalorder 2, %s13
    // Predicated region
    $region53: #{tpu_custom_call.1} parent=5 // pred_check
      %p5360 = pneg %p5359
    $region54: #{tpu_custom_call.1} parent=5 // pred_check_branch
      %5362 = sbr.rel (%p5360) target = $region56
    $region55: #{tpu_custom_call.1} parent=5 // pred_region
      %s5363 = ssub.s32 %s13, 2
      // Predicated region
      $region57: #{tpu_custom_call.1} parent=55 // pred_check
        %p5364 = pneg %p194
      $region58: #{tpu_custom_call.1} parent=55 // pred_check_branch
        %5366 = sbr.rel (%p5364) target = $region60
      $region59: #{tpu_custom_call.1} parent=55 // pred_region
        %s5367 = smul.u32 64, %s19
        %p5368 = scmp.lt.s32.totalorder %s5367, 127
        %s5369 = scalar_select %p5368, %s5367, 127
        %s5370 = smul.addr %s5369, 8
        %s5371 = scalar_lea.vmem %s7, %s5370
      $region60: #{tpu_custom_call.1} parent=55 // pred_fallthru
        _
    $region56: #{tpu_custom_call.1} parent=5 // pred_fallthru
      _
  $region6: #{tpu_custom_call.1} parent=0 // loop_footer
    %s17 = sadd.s32 1, %s13
  $region7: #{tpu_custom_call.1} parent=0 // loop_footer_branch
    %12 = sbr.rel target = $region3
  $region8: #{tpu_custom_call.1} parent=0 // loop_exit
    _

</llo_original>
